<compile_context>
chip_gen: v6e
topology: v6e:2x2x1
jax: 0.10.0
libtpu: 0.0.40
codegen_flags: <defaults>
</compile_context>

<pallas_src>
import jax
import jax.numpy as jnp
from jax import lax
from jax.experimental import pallas as pl
from jax.experimental.pallas import tpu as pltpu

# ---- Actor / SimBa dimensions (Actor defaults: mlp_depth=2, 4 residual streams)
STATE_DIM = 32
HIDDEN_DIM = 32
NUM_ACTIONS = 8
DIM_HIDDEN = 2 * HIDDEN_DIM            # SimBa dim_hidden = hidden_dim * 2 = 64
EXPANSION = 2
DIM_INNER = DIM_HIDDEN * EXPANSION     # 128
DEPTH = 2                              # Actor mlp_depth default
S = 4                                  # num_residual_streams
AB_COLS = 8                            # (S+1) alpha cols + 1 beta col, padded to 8
OUT_PAD = 128                          # lane-dense packed output width
EPS = 1.1920928955078125e-07           # nn.RMSNorm default eps (f32 finfo eps)
RSM_EPS = 1e-5                         # RSMNorm std clamp
BF16 = jnp.bfloat16


def _rms_raw(v):
    ms = jnp.mean(v * v, axis=-1, keepdims=True)
    return v * lax.rsqrt(ms + EPS)


def _rmsnorm(v, w):
    return _rms_raw(v) * w


# --------------------------------------------------------------------------- #
# kernel
# --------------------------------------------------------------------------- #
def actor_kernel(x_ref, w_in_ref, b_in_ref,
                 w_ab_ref, ab_scale_ref, ab_static_ref,
                 w1_ref, b1_ref, w2_ref, b2_ref,
                 head_w1_ref, head_b1_ref, head_w2_ref, head_b2_ref,
                 out_ref):
    # ---------- RSMNorm (eval mode) already folded into proj_in ----------
    # TODO(synk): RSMNorm running-statistics update is a training-time buffer
    # mutation; only eval-mode normalization is implemented here.
    h = jnp.dot(x_ref[...].astype(BF16), w_in_ref[...],
                preferred_element_type=jnp.float32) + b_in_ref[0]          # (tb, DH)

    # expand_stream: all residual streams start as the same value (no copy).
    res = [h] * S

    for l in range(DEPTH):                                                 # static unroll
        ab_scale = ab_scale_ref[l]                                         # (8,)
        ab_static = ab_static_ref[l]                                       # (S, 8)

        # ---------- hyper-connection: dynamic alpha/beta projection ----------
        # hc RMSNorm weight folded into w_ab; identical streams deduped.
        proj_cache = {}
        ab = []
        for s in range(S):
            r_s = res[s]
            key = id(r_s)
            if key not in proj_cache:
                proj_cache[key] = jnp.tanh(
                    jnp.dot(_rms_raw(r_s), w_ab_ref[l],
                            preferred_element_type=jnp.float32))           # (tb, 8)
            ab.append(proj_cache[key] * ab_scale + ab_static[s])           # (tb, 8)

        # ---------- width connection: mix[t] = sum_s alpha[s, t] * res[s] ----
        if all(r is res[0] for r in res):
            ab_tot = ab[0]
            for s in range(1, S):
                ab_tot = ab_tot + ab[s]
            mix = [ab_tot[:, t:t + 1] * res[0] for t in range(S + 1)]
        else:
            mix = [None] * (S + 1)
            for s in range(S):
                for t in range(S + 1):
                    c = ab[s][:, t:t + 1] * res[s]
                    mix[t] = c if mix[t] is None else mix[t] + c
        beta = [ab[s][:, S + 1:S + 2] for s in range(S)]                   # (tb, 1)

        # ---------- branch: RMSNorm (folded) -> Linear -> relu^2 -> Linear ----
        # Dropout is identity at inference; sign(x)*relu(x)^2 == relu(x)^2.
        bn = _rms_raw(mix[0])
        h1 = jnp.dot(bn.astype(BF16), w1_ref[l],
                     preferred_element_type=jnp.float32) + b1_ref[l]       # (tb, DI)
        r = jnp.maximum(h1, 0.0)
        h1 = r * r
        bout = jnp.dot(h1.astype(BF16), w2_ref[l],
                       preferred_element_type=jnp.float32) + b2_ref[l]     # (tb, DH)

        # ---------- hyper-connection: depth connection ----------
        res = [bout * beta[s] + mix[s + 1] for s in range(S)]

    # ---------- reduce_stream (sum) + final RMSNorm (weight folded into heads)
    hid = res[0]
    for s in range(1, S):
        hid = hid + res[s]
    hid = _rms_raw(hid)                                                    # (tb, DH)

    # ---------- fused action + value heads, lane-dense packed output ----------
    hh = jnp.dot(hid.astype(BF16), head_w1_ref[...],
                 preferred_element_type=jnp.float32) + head_b1_ref[0]      # (tb, 2H)
    r = jnp.maximum(hh, 0.0)
    hh = r * r
    logits = jnp.dot(hh.astype(BF16), head_w2_ref[...],
                     preferred_element_type=jnp.float32) + head_b2_ref[0]  # (tb, 128)

    col = lax.broadcasted_iota(jnp.int32, logits.shape, dimension=1)
    is_act = col < NUM_ACTIONS
    masked = jnp.where(is_act, logits, -jnp.inf)
    mx = jnp.max(masked, axis=-1, keepdims=True)
    e = jnp.exp(masked - mx)
    inv = pl.reciprocal(jnp.sum(e, axis=-1, keepdims=True), approx=True)
    probs = e * inv
    out = jnp.where(is_act, probs, jnp.where(col == NUM_ACTIONS, logits, 0.0))
    out_ref[...] = out.astype(out_ref.dtype)


# --------------------------------------------------------------------------- #
# wrapper
# --------------------------------------------------------------------------- #
def _round_up(n, m):
    return ((n + m - 1) // m) * m


def _pack_params(p):
    """Fold PyTorch-layout params into kernel-friendly layouts (pure plumbing)."""
    # RSMNorm (eval) folded into the proj_in affine.
    rsm_scale = 1.0 / jnp.maximum(jnp.sqrt(p["rsm_var"]), RSM_EPS)         # (DIM,)
    w_in = p["w_in"] * rsm_scale[:, None]                                  # (DIM, DH)
    b_in = p["b_in"] - (p["rsm_mean"] * rsm_scale) @ p["w_in"]             # (DH,)

    # fused dyn-alpha/dyn-beta projection; hc RMSNorm weight folded in.
    w_ab = jnp.zeros((DEPTH, DIM_HIDDEN, AB_COLS), jnp.float32)
    w_ab = w_ab.at[:, :, :S + 1].set(p["dyn_alpha_fn"])
    w_ab = w_ab.at[:, :, S + 1].set(p["dyn_beta_fn"])
    w_ab = w_ab * p["hc_norm_w"][:, :, None]
    ab_scale = jnp.zeros((DEPTH, AB_COLS), jnp.float32)
    ab_scale = ab_scale.at[:, :S + 1].set(p["dyn_alpha_scale"][:, None])
    ab_scale = ab_scale.at[:, S + 1].set(p["dyn_beta_scale"])
    ab_static = jnp.zeros((DEPTH, S, AB_COLS), jnp.float32)
    ab_static = ab_static.at[:, :, :S + 1].set(p["static_alpha"])
    ab_static = ab_static.at[:, :, S + 1].set(p["static_beta"])

    # branch RMSNorm weight folded into first branch linear.
    w1 = p["w1"] * p["br_norm_w"][:, :, None]                              # (DEPTH, DH, DI)

    # fused action + value heads; final RMSNorm weight folded into the first
    # head linear; second layer block-structured and padded to a lane-dense
    # 128-wide output (cols 0..A-1 = action logits, col A = value).
    head_w1 = jnp.concatenate([p["wa1"], p["wv1"]], axis=1)                # (DH, 2H)
    head_w1 = head_w1 * p["final_norm_w"][:, None]
    head_b1 = jnp.concatenate([p["ba1"], p["bv1"]])[None, :]               # (1, 2H)
    head_w2 = jnp.zeros((2 * HIDDEN_DIM, OUT_PAD), jnp.float32)
    head_w2 = head_w2.at[:HIDDEN_DIM, :NUM_ACTIONS].set(p["wa2"])
    head_w2 = head_w2.at[HIDDEN_DIM:, NUM_ACTIONS].set(p["wv2"][:, 0])
    head_b2 = jnp.zeros((OUT_PAD,), jnp.float32)
    head_b2 = head_b2.at[:NUM_ACTIONS].set(p["ba2"])
    head_b2 = head_b2.at[NUM_ACTIONS].set(p["bv2"][0])

    return (
        w_in.astype(BF16), b_in[None, :],
        w_ab, ab_scale, ab_static,
        w1.astype(BF16), p["b1"],
        p["w2"].astype(BF16), p["b2"],
        head_w1.astype(BF16), head_b1,
        head_w2.astype(BF16), head_b2[None, :],
    )


def actor_forward(x, params, *, tile_b=1024):
    """Actor forward: returns (action_probs (B, A), values (B, 1))."""
    B = x.shape[0]
    tb = _round_up(min(tile_b, _round_up(B, 8)), 8)
    bp = _round_up(B, tb)
    xp = jnp.pad(x, ((0, bp - B), (0, 0))) if bp != B else x
    weights = _pack_params(params)

    def const_spec(a):
        nd = a.ndim
        return pl.BlockSpec(a.shape, lambda i, _n=nd: (0,) * _n)   # VMEM-resident

    in_specs = [pl.BlockSpec((tb, STATE_DIM), lambda i: (i, 0))]
    in_specs += [const_spec(a) for a in weights]

    out = pl.pallas_call(
        actor_kernel,
        out_shape=jax.ShapeDtypeStruct((bp, OUT_PAD), jnp.float32),
        grid_spec=pltpu.PrefetchScalarGridSpec(
            num_scalar_prefetch=0,
            grid=(bp // tb,),
            in_specs=in_specs,
            out_specs=pl.BlockSpec((tb, OUT_PAD), lambda i: (i, 0)),
        ),
        compiler_params=pltpu.CompilerParams(
            dimension_semantics=("parallel",),            # megacore-shardable batch axis
            vmem_limit_bytes=32 * 1024 * 1024,
        ),
    )(xp, *weights)

    action_probs = out[:B, :NUM_ACTIONS]
    values = out[:B, NUM_ACTIONS:NUM_ACTIONS + 1]
    return action_probs, values


# --------------------------------------------------------------------------- #
# pure-JAX f32 reference (mirrors the PyTorch Actor forward, eval mode)
# --------------------------------------------------------------------------- #
def actor_reference(x, p):
    std = jnp.maximum(jnp.sqrt(p["rsm_var"]), RSM_EPS)
    xn = (x - p["rsm_mean"]) / std
    h = xn @ p["w_in"] + p["b_in"]
    B = h.shape[0]
    res = jnp.broadcast_to(h[:, None, :], (B, S, DIM_HIDDEN))
    for l in range(DEPTH):
        normed = _rmsnorm(res, p["hc_norm_w"][l])
        wc = jnp.tanh(jnp.einsum("bsd,dt->bst", normed, p["dyn_alpha_fn"][l]))
        alpha = wc * p["dyn_alpha_scale"][l] + p["static_alpha"][l]
        dc = jnp.tanh(jnp.einsum("bsd,d->bs", normed, p["dyn_beta_fn"][l]))
        beta = dc * p["dyn_beta_scale"][l] + p["static_beta"][l]
        mix = jnp.einsum("bst,bsd->btd", alpha, res)
        branch_in, res_mixed = mix[:, 0, :], mix[:, 1:, :]
        bn = _rmsnorm(branch_in, p["br_norm_w"][l])
        h1 = bn @ p["w1"][l] + p["b1"][l]
        h1 = jnp.sign(h1) * jnp.square(jnp.maximum(h1, 0.0))
        bout = h1 @ p["w2"][l] + p["b2"][l]
        res = bout[:, None, :] * beta[:, :, None] + res_mixed
    hid = _rmsnorm(jnp.sum(res, axis=1), p["final_norm_w"])
    a1 = hid @ p["wa1"] + p["ba1"]
    a1 = jnp.sign(a1) * jnp.square(jnp.maximum(a1, 0.0))
    probs = jax.nn.softmax(a1 @ p["wa2"] + p["ba2"], axis=-1)
    v1 = hid @ p["wv1"] + p["bv1"]
    v1 = jnp.sign(v1) * jnp.square(jnp.maximum(v1, 0.0))
    values = v1 @ p["wv2"] + p["bv2"]
    return probs, values


def make_params(key):
    ks = jax.random.split(key, 10)

    def linear(k, fan_in, fan_out):
        kw, kb = jax.random.split(k)
        bound = float(fan_in) ** -0.5
        w = jax.random.uniform(kw, (fan_in, fan_out), jnp.float32, -bound, bound)
        b = jax.random.uniform(kb, (fan_out,), jnp.float32, -bound, bound)
        return w, b

    w_in, b_in = linear(ks[0], STATE_DIM, DIM_HIDDEN)

    w1s, b1s, w2s, b2s, static_alpha = [], [], [], [], []
    for l in range(DEPTH):
        k1, k2 = jax.random.split(jax.random.fold_in(ks[1], l))
        w1, b1 = linear(k1, DIM_HIDDEN, DIM_INNER)
        w2, b2 = linear(k2, DIM_INNER, DIM_HIDDEN)
        w1s.append(w1); b1s.append(b1); w2s.append(w2); b2s.append(b2)
        col0 = jnp.zeros((S, 1), jnp.float32).at[l % S, 0].set(1.0)
        static_alpha.append(jnp.concatenate([col0, jnp.eye(S, dtype=jnp.float32)], axis=1))

    # dynamic hyper-connection params are zeros at PyTorch init; use small
    # deterministic values so the tanh dynamic path is actually exercised.
    dyn_alpha_fn = 0.02 * jax.random.normal(ks[2], (DEPTH, DIM_HIDDEN, S + 1), jnp.float32)
    dyn_beta_fn = 0.02 * jax.random.normal(ks[3], (DEPTH, DIM_HIDDEN), jnp.float32)

    wa1, ba1 = linear(ks[4], DIM_HIDDEN, HIDDEN_DIM)
    wa2, ba2 = linear(ks[5], HIDDEN_DIM, NUM_ACTIONS)
    wv1, bv1 = linear(ks[6], DIM_HIDDEN, HIDDEN_DIM)
    wv2, bv2 = linear(ks[7], HIDDEN_DIM, 1)

    return dict(
        rsm_mean=0.1 * jax.random.normal(ks[8], (STATE_DIM,), jnp.float32),
        rsm_var=jax.random.uniform(ks[9], (STATE_DIM,), jnp.float32, 0.5, 1.5),
        w_in=w_in, b_in=b_in,
        hc_norm_w=jnp.ones((DEPTH, DIM_HIDDEN), jnp.float32),
        static_alpha=jnp.stack(static_alpha),                  # (DEPTH, S, S+1)
        static_beta=jnp.ones((DEPTH, S), jnp.float32),
        dyn_alpha_fn=dyn_alpha_fn, dyn_beta_fn=dyn_beta_fn,
        dyn_alpha_scale=jnp.full((DEPTH,), 1e-2, jnp.float32),
        dyn_beta_scale=jnp.full((DEPTH,), 1e-2, jnp.float32),
        br_norm_w=jnp.ones((DEPTH, DIM_HIDDEN), jnp.float32),
        w1=jnp.stack(w1s), b1=jnp.stack(b1s),
        w2=jnp.stack(w2s), b2=jnp.stack(b2s),
        final_norm_w=jnp.ones((DIM_HIDDEN,), jnp.float32),
        wa1=wa1, ba1=ba1, wa2=wa2, ba2=ba2,
        wv1=wv1, bv1=bv1, wv2=wv2, bv2=bv2,
    )


if __name__ == "__main__":
    key = jax.random.PRNGKey(0)
    kx, kp = jax.random.split(key)
    B = 64
    x = jax.random.normal(kx, (B, STATE_DIM), jnp.float32)
    params = make_params(kp)

    probs, values = jax.block_until_ready(actor_forward(x, params, tile_b=32))
    p_ref, v_ref = actor_reference(x, params)

    assert probs.shape == (B, NUM_ACTIONS) and values.shape == (B, 1)
    assert jnp.allclose(probs, p_ref, rtol=2e-2, atol=2e-2), "action_probs mismatch"
    assert jnp.allclose(values, v_ref, rtol=2e-2, atol=2e-2), "values mismatch"
    print("KERNEL_OK")
</pallas_src>

<mosaic_0001>
module attributes {stable_mosaic.version = 11 : i64} {
  func.func @actor_kernel(%arg0: i32, %arg1: memref<32x32xf32, #tpu.memory_space<vmem>>, %arg2: memref<32x64xbf16, #tpu.memory_space<vmem>>, %arg3: memref<1x64xf32, #tpu.memory_space<vmem>>, %arg4: memref<2x64x8xf32, #tpu.memory_space<vmem>>, %arg5: memref<2x8xf32, #tpu.memory_space<vmem>>, %arg6: memref<2x4x8xf32, #tpu.memory_space<vmem>>, %arg7: memref<2x64x128xbf16, #tpu.memory_space<vmem>>, %arg8: memref<2x128xf32, #tpu.memory_space<vmem>>, %arg9: memref<2x128x64xbf16, #tpu.memory_space<vmem>>, %arg10: memref<2x64xf32, #tpu.memory_space<vmem>>, %arg11: memref<64x64xbf16, #tpu.memory_space<vmem>>, %arg12: memref<1x64xf32, #tpu.memory_space<vmem>>, %arg13: memref<64x128xbf16, #tpu.memory_space<vmem>>, %arg14: memref<1x128xf32, #tpu.memory_space<vmem>>, %arg15: memref<32x128xf32, #tpu.memory_space<vmem>>) attributes {dimension_semantics = [#tpu.dimension_semantics<parallel>], iteration_bounds = array<i64: 2>, scalar_prefetch = 0 : i64, scratch_operands = 0 : i64, tpu.core_type = #tpu.core_type<tc>, window_params = [{transform_indices = @transform_0, window_bounds = array<i64: 32, 32>}, {pipeline_mode = #tpu.pipeline_mode<synchronous>, transform_indices = @transform_1, window_bounds = array<i64: 32, 64>}, {pipeline_mode = #tpu.pipeline_mode<synchronous>, transform_indices = @transform_2, window_bounds = array<i64: 1, 64>}, {pipeline_mode = #tpu.pipeline_mode<synchronous>, transform_indices = @transform_3, window_bounds = array<i64: 2, 64, 8>}, {pipeline_mode = #tpu.pipeline_mode<synchronous>, transform_indices = @transform_4, window_bounds = array<i64: 2, 8>}, {pipeline_mode = #tpu.pipeline_mode<synchronous>, transform_indices = @transform_5, window_bounds = array<i64: 2, 4, 8>}, {pipeline_mode = #tpu.pipeline_mode<synchronous>, transform_indices = @transform_6, window_bounds = array<i64: 2, 64, 128>}, {pipeline_mode = #tpu.pipeline_mode<synchronous>, transform_indices = @transform_7, window_bounds = array<i64: 2, 128>}, {pipeline_mode = #tpu.pipeline_mode<synchronous>, transform_indices = @transform_8, window_bounds = array<i64: 2, 128, 64>}, {pipeline_mode = #tpu.pipeline_mode<synchronous>, transform_indices = @transform_9, window_bounds = array<i64: 2, 64>}, {pipeline_mode = #tpu.pipeline_mode<synchronous>, transform_indices = @transform_10, window_bounds = array<i64: 64, 64>}, {pipeline_mode = #tpu.pipeline_mode<synchronous>, transform_indices = @transform_11, window_bounds = array<i64: 1, 64>}, {pipeline_mode = #tpu.pipeline_mode<synchronous>, transform_indices = @transform_12, window_bounds = array<i64: 64, 128>}, {pipeline_mode = #tpu.pipeline_mode<synchronous>, transform_indices = @transform_13, window_bounds = array<i64: 1, 128>}, {transform_indices = @transform_14, window_bounds = array<i64: 32, 128>}]} {
    %c0 = arith.constant 0 : index
    %c0_0 = arith.constant 0 : index
    %0 = vector.load %arg1[%c0, %c0_0] : memref<32x32xf32, #tpu.memory_space<vmem>>, vector<32x32xf32>
    %1 = arith.truncf %0 : vector<32x32xf32> to vector<32x32xbf16>
    %c0_1 = arith.constant 0 : index
    %c0_2 = arith.constant 0 : index
    %2 = vector.load %arg2[%c0_1, %c0_2] : memref<32x64xbf16, #tpu.memory_space<vmem>>, vector<32x64xbf16>
    %cst = arith.constant dense<0.000000e+00> : vector<32x64xf32>
    %3 = tpu.matmul %1, %2, %cst {dimension_numbers = #tpu.dot_dimension_numbers<[1], [0], [0], [1], [0, 0, 1, 1], [], []>} : vector<32x32xbf16>, vector<32x64xbf16>, vector<32x64xf32> -> vector<32x64xf32>
    %c0_3 = arith.constant 0 : index
    %c0_4 = arith.constant 0 : index
    %4 = vector.load %arg3[%c0_3, %c0_4] : memref<1x64xf32, #tpu.memory_space<vmem>>, vector<1x64xf32>
    %5 = vector.shape_cast %4 : vector<1x64xf32> to vector<64xf32>
    %6 = vector.shape_cast %5 : vector<64xf32> to vector<1x64xf32>
    %7 = vector.broadcast %6 : vector<1x64xf32> to vector<32x64xf32>
    %8 = arith.addf %3, %7 : vector<32x64xf32>
    %c0_5 = arith.constant 0 : index
    %c0_6 = arith.constant 0 : index
    %9 = vector.load %arg5[%c0_5, %c0_6] : memref<2x8xf32, #tpu.memory_space<vmem>>, vector<1x8xf32>
    %10 = vector.shape_cast %9 : vector<1x8xf32> to vector<8xf32>
    %c0_7 = arith.constant 0 : index
    %c0_8 = arith.constant 0 : index
    %c0_9 = arith.constant 0 : index
    %11 = vector.load %arg6[%c0_7, %c0_8, %c0_9] : memref<2x4x8xf32, #tpu.memory_space<vmem>>, vector<1x4x8xf32>
    %12 = vector.shape_cast %11 : vector<1x4x8xf32> to vector<4x8xf32>
    %13 = arith.mulf %8, %8 : vector<32x64xf32>
    %cst_10 = arith.constant dense<0.000000e+00> : vector<32xf32>
    %14 = vector.multi_reduction <add>, %13, %cst_10 [1] : vector<32x64xf32> to vector<32xf32>
    %15 = vector.shape_cast %14 : vector<32xf32> to vector<32x1xf32>
    %cst_11 = arith.constant 6.400000e+01 : f32
    %16 = vector.broadcast %cst_11 : f32 to vector<32x1xf32>
    %17 = arith.divf %15, %16 : vector<32x1xf32>
    %cst_12 = arith.constant 1.1920929E-7 : f32
    %18 = vector.broadcast %cst_12 : f32 to vector<32x1xf32>
    %19 = arith.addf %17, %18 : vector<32x1xf32>
    %20 = math.rsqrt %19 : vector<32x1xf32>
    %21 = vector.broadcast %20 : vector<32x1xf32> to vector<32x64xf32>
    %22 = arith.mulf %8, %21 : vector<32x64xf32>
    %c0_13 = arith.constant 0 : index
    %c0_14 = arith.constant 0 : index
    %c0_15 = arith.constant 0 : index
    %23 = vector.load %arg4[%c0_13, %c0_14, %c0_15] : memref<2x64x8xf32, #tpu.memory_space<vmem>>, vector<1x64x8xf32>
    %24 = vector.shape_cast %23 : vector<1x64x8xf32> to vector<64x8xf32>
    %cst_16 = arith.constant dense<0.000000e+00> : vector<32x8xf32>
    %25 = tpu.matmul %22, %24, %cst_16 {dimension_numbers = #tpu.dot_dimension_numbers<[1], [0], [0], [1], [0, 0, 1, 1], [], []>} : vector<32x64xf32>, vector<64x8xf32>, vector<32x8xf32> -> vector<32x8xf32>
    %26 = math.tanh %25 : vector<32x8xf32>
    %27 = vector.shape_cast %10 : vector<8xf32> to vector<1x8xf32>
    %28 = vector.broadcast %27 : vector<1x8xf32> to vector<32x8xf32>
    %29 = arith.mulf %26, %28 : vector<32x8xf32>
    %30 = vector.extract_strided_slice %12 {offsets = [0, 0], sizes = [1, 8], strides = [1, 1]} : vector<4x8xf32> to vector<1x8xf32>
    %31 = vector.shape_cast %30 : vector<1x8xf32> to vector<8xf32>
    %32 = vector.shape_cast %31 : vector<8xf32> to vector<1x8xf32>
    %33 = vector.broadcast %32 : vector<1x8xf32> to vector<32x8xf32>
    %34 = arith.addf %29, %33 : vector<32x8xf32>
    %35 = vector.shape_cast %10 : vector<8xf32> to vector<1x8xf32>
    %36 = vector.broadcast %35 : vector<1x8xf32> to vector<32x8xf32>
    %37 = arith.mulf %26, %36 : vector<32x8xf32>
    %38 = vector.extract_strided_slice %12 {offsets = [1, 0], sizes = [1, 8], strides = [1, 1]} : vector<4x8xf32> to vector<1x8xf32>
    %39 = vector.shape_cast %38 : vector<1x8xf32> to vector<8xf32>
    %40 = vector.shape_cast %39 : vector<8xf32> to vector<1x8xf32>
    %41 = vector.broadcast %40 : vector<1x8xf32> to vector<32x8xf32>
    %42 = arith.addf %37, %41 : vector<32x8xf32>
    %43 = vector.shape_cast %10 : vector<8xf32> to vector<1x8xf32>
    %44 = vector.broadcast %43 : vector<1x8xf32> to vector<32x8xf32>
    %45 = arith.mulf %26, %44 : vector<32x8xf32>
    %46 = vector.extract_strided_slice %12 {offsets = [2, 0], sizes = [1, 8], strides = [1, 1]} : vector<4x8xf32> to vector<1x8xf32>
    %47 = vector.shape_cast %46 : vector<1x8xf32> to vector<8xf32>
    %48 = vector.shape_cast %47 : vector<8xf32> to vector<1x8xf32>
    %49 = vector.broadcast %48 : vector<1x8xf32> to vector<32x8xf32>
    %50 = arith.addf %45, %49 : vector<32x8xf32>
    %51 = vector.shape_cast %10 : vector<8xf32> to vector<1x8xf32>
    %52 = vector.broadcast %51 : vector<1x8xf32> to vector<32x8xf32>
    %53 = arith.mulf %26, %52 : vector<32x8xf32>
    %54 = vector.extract_strided_slice %12 {offsets = [3, 0], sizes = [1, 8], strides = [1, 1]} : vector<4x8xf32> to vector<1x8xf32>
    %55 = vector.shape_cast %54 : vector<1x8xf32> to vector<8xf32>
    %56 = vector.shape_cast %55 : vector<8xf32> to vector<1x8xf32>
    %57 = vector.broadcast %56 : vector<1x8xf32> to vector<32x8xf32>
    %58 = arith.addf %53, %57 : vector<32x8xf32>
    %59 = arith.addf %34, %42 : vector<32x8xf32>
    %60 = arith.addf %59, %50 : vector<32x8xf32>
    %61 = arith.addf %60, %58 : vector<32x8xf32>
    %62 = vector.extract_strided_slice %61 {offsets = [0, 0], sizes = [32, 1], strides = [1, 1]} : vector<32x8xf32> to vector<32x1xf32>
    %63 = vector.broadcast %62 : vector<32x1xf32> to vector<32x64xf32>
    %64 = arith.mulf %63, %8 : vector<32x64xf32>
    %65 = vector.extract_strided_slice %61 {offsets = [0, 1], sizes = [32, 1], strides = [1, 1]} : vector<32x8xf32> to vector<32x1xf32>
    %66 = vector.broadcast %65 : vector<32x1xf32> to vector<32x64xf32>
    %67 = arith.mulf %66, %8 : vector<32x64xf32>
    %68 = vector.extract_strided_slice %61 {offsets = [0, 2], sizes = [32, 1], strides = [1, 1]} : vector<32x8xf32> to vector<32x1xf32>
    %69 = vector.broadcast %68 : vector<32x1xf32> to vector<32x64xf32>
    %70 = arith.mulf %69, %8 : vector<32x64xf32>
    %71 = vector.extract_strided_slice %61 {offsets = [0, 3], sizes = [32, 1], strides = [1, 1]} : vector<32x8xf32> to vector<32x1xf32>
    %72 = vector.broadcast %71 : vector<32x1xf32> to vector<32x64xf32>
    %73 = arith.mulf %72, %8 : vector<32x64xf32>
    %74 = vector.extract_strided_slice %61 {offsets = [0, 4], sizes = [32, 1], strides = [1, 1]} : vector<32x8xf32> to vector<32x1xf32>
    %75 = vector.broadcast %74 : vector<32x1xf32> to vector<32x64xf32>
    %76 = arith.mulf %75, %8 : vector<32x64xf32>
    %77 = vector.extract_strided_slice %34 {offsets = [0, 5], sizes = [32, 1], strides = [1, 1]} : vector<32x8xf32> to vector<32x1xf32>
    %78 = vector.extract_strided_slice %42 {offsets = [0, 5], sizes = [32, 1], strides = [1, 1]} : vector<32x8xf32> to vector<32x1xf32>
    %79 = vector.extract_strided_slice %50 {offsets = [0, 5], sizes = [32, 1], strides = [1, 1]} : vector<32x8xf32> to vector<32x1xf32>
    %80 = vector.extract_strided_slice %58 {offsets = [0, 5], sizes = [32, 1], strides = [1, 1]} : vector<32x8xf32> to vector<32x1xf32>
    %81 = arith.mulf %64, %64 : vector<32x64xf32>
    %cst_17 = arith.constant dense<0.000000e+00> : vector<32xf32>
    %82 = vector.multi_reduction <add>, %81, %cst_17 [1] : vector<32x64xf32> to vector<32xf32>
    %83 = vector.shape_cast %82 : vector<32xf32> to vector<32x1xf32>
    %cst_18 = arith.constant 6.400000e+01 : f32
    %84 = vector.broadcast %cst_18 : f32 to vector<32x1xf32>
    %85 = arith.divf %83, %84 : vector<32x1xf32>
    %cst_19 = arith.constant 1.1920929E-7 : f32
    %86 = vector.broadcast %cst_19 : f32 to vector<32x1xf32>
    %87 = arith.addf %85, %86 : vector<32x1xf32>
    %88 = math.rsqrt %87 : vector<32x1xf32>
    %89 = vector.broadcast %88 : vector<32x1xf32> to vector<32x64xf32>
    %90 = arith.mulf %64, %89 : vector<32x64xf32>
    %91 = arith.truncf %90 : vector<32x64xf32> to vector<32x64xbf16>
    %c0_20 = arith.constant 0 : index
    %c0_21 = arith.constant 0 : index
    %c0_22 = arith.constant 0 : index
    %92 = vector.load %arg7[%c0_20, %c0_21, %c0_22] : memref<2x64x128xbf16, #tpu.memory_space<vmem>>, vector<1x64x128xbf16>
    %93 = vector.shape_cast %92 : vector<1x64x128xbf16> to vector<64x128xbf16>
    %cst_23 = arith.constant dense<0.000000e+00> : vector<32x128xf32>
    %94 = tpu.matmul %91, %93, %cst_23 {dimension_numbers = #tpu.dot_dimension_numbers<[1], [0], [0], [1], [0, 0, 1, 1], [], []>} : vector<32x64xbf16>, vector<64x128xbf16>, vector<32x128xf32> -> vector<32x128xf32>
    %c0_24 = arith.constant 0 : index
    %c0_25 = arith.constant 0 : index
    %95 = vector.load %arg8[%c0_24, %c0_25] : memref<2x128xf32, #tpu.memory_space<vmem>>, vector<1x128xf32>
    %96 = vector.shape_cast %95 : vector<1x128xf32> to vector<128xf32>
    %97 = vector.shape_cast %96 : vector<128xf32> to vector<1x128xf32>
    %98 = vector.broadcast %97 : vector<1x128xf32> to vector<32x128xf32>
    %99 = arith.addf %94, %98 : vector<32x128xf32>
    %cst_26 = arith.constant 0.000000e+00 : f32
    %100 = vector.broadcast %cst_26 : f32 to vector<32x128xf32>
    %101 = arith.maximumf %99, %100 : vector<32x128xf32>
    %102 = arith.mulf %101, %101 : vector<32x128xf32>
    %103 = arith.truncf %102 : vector<32x128xf32> to vector<32x128xbf16>
    %c0_27 = arith.constant 0 : index
    %c0_28 = arith.constant 0 : index
    %c0_29 = arith.constant 0 : index
    %104 = vector.load %arg9[%c0_27, %c0_28, %c0_29] : memref<2x128x64xbf16, #tpu.memory_space<vmem>>, vector<1x128x64xbf16>
    %105 = vector.shape_cast %104 : vector<1x128x64xbf16> to vector<128x64xbf16>
    %cst_30 = arith.constant dense<0.000000e+00> : vector<32x64xf32>
    %106 = tpu.matmul %103, %105, %cst_30 {dimension_numbers = #tpu.dot_dimension_numbers<[1], [0], [0], [1], [0, 0, 1, 1], [], []>} : vector<32x128xbf16>, vector<128x64xbf16>, vector<32x64xf32> -> vector<32x64xf32>
    %c0_31 = arith.constant 0 : index
    %c0_32 = arith.constant 0 : index
    %107 = vector.load %arg10[%c0_31, %c0_32] : memref<2x64xf32, #tpu.memory_space<vmem>>, vector<1x64xf32>
    %108 = vector.shape_cast %107 : vector<1x64xf32> to vector<64xf32>
    %109 = vector.shape_cast %108 : vector<64xf32> to vector<1x64xf32>
    %110 = vector.broadcast %109 : vector<1x64xf32> to vector<32x64xf32>
    %111 = arith.addf %106, %110 : vector<32x64xf32>
    %112 = vector.broadcast %77 : vector<32x1xf32> to vector<32x64xf32>
    %113 = arith.mulf %111, %112 : vector<32x64xf32>
    %114 = arith.addf %113, %67 : vector<32x64xf32>
    %115 = vector.broadcast %78 : vector<32x1xf32> to vector<32x64xf32>
    %116 = arith.mulf %111, %115 : vector<32x64xf32>
    %117 = arith.addf %116, %70 : vector<32x64xf32>
    %118 = vector.broadcast %79 : vector<32x1xf32> to vector<32x64xf32>
    %119 = arith.mulf %111, %118 : vector<32x64xf32>
    %120 = arith.addf %119, %73 : vector<32x64xf32>
    %121 = vector.broadcast %80 : vector<32x1xf32> to vector<32x64xf32>
    %122 = arith.mulf %111, %121 : vector<32x64xf32>
    %123 = arith.addf %122, %76 : vector<32x64xf32>
    %c1 = arith.constant 1 : index
    %c0_33 = arith.constant 0 : index
    %124 = vector.load %arg5[%c1, %c0_33] : memref<2x8xf32, #tpu.memory_space<vmem>>, vector<1x8xf32>
    %125 = vector.shape_cast %124 : vector<1x8xf32> to vector<8xf32>
    %c1_34 = arith.constant 1 : index
    %c0_35 = arith.constant 0 : index
    %c0_36 = arith.constant 0 : index
    %126 = vector.load %arg6[%c1_34, %c0_35, %c0_36] : memref<2x4x8xf32, #tpu.memory_space<vmem>>, vector<1x4x8xf32>
    %127 = vector.shape_cast %126 : vector<1x4x8xf32> to vector<4x8xf32>
    %128 = arith.mulf %114, %114 : vector<32x64xf32>
    %cst_37 = arith.constant dense<0.000000e+00> : vector<32xf32>
    %129 = vector.multi_reduction <add>, %128, %cst_37 [1] : vector<32x64xf32> to vector<32xf32>
    %130 = vector.shape_cast %129 : vector<32xf32> to vector<32x1xf32>
    %cst_38 = arith.constant 6.400000e+01 : f32
    %131 = vector.broadcast %cst_38 : f32 to vector<32x1xf32>
    %132 = arith.divf %130, %131 : vector<32x1xf32>
    %cst_39 = arith.constant 1.1920929E-7 : f32
    %133 = vector.broadcast %cst_39 : f32 to vector<32x1xf32>
    %134 = arith.addf %132, %133 : vector<32x1xf32>
    %135 = math.rsqrt %134 : vector<32x1xf32>
    %136 = vector.broadcast %135 : vector<32x1xf32> to vector<32x64xf32>
    %137 = arith.mulf %114, %136 : vector<32x64xf32>
    %c1_40 = arith.constant 1 : index
    %c0_41 = arith.constant 0 : index
    %c0_42 = arith.constant 0 : index
    %138 = vector.load %arg4[%c1_40, %c0_41, %c0_42] : memref<2x64x8xf32, #tpu.memory_space<vmem>>, vector<1x64x8xf32>
    %139 = vector.shape_cast %138 : vector<1x64x8xf32> to vector<64x8xf32>
    %cst_43 = arith.constant dense<0.000000e+00> : vector<32x8xf32>
    %140 = tpu.matmul %137, %139, %cst_43 {dimension_numbers = #tpu.dot_dimension_numbers<[1], [0], [0], [1], [0, 0, 1, 1], [], []>} : vector<32x64xf32>, vector<64x8xf32>, vector<32x8xf32> -> vector<32x8xf32>
    %141 = math.tanh %140 : vector<32x8xf32>
    %142 = vector.shape_cast %125 : vector<8xf32> to vector<1x8xf32>
    %143 = vector.broadcast %142 : vector<1x8xf32> to vector<32x8xf32>
    %144 = arith.mulf %141, %143 : vector<32x8xf32>
    %145 = vector.extract_strided_slice %127 {offsets = [0, 0], sizes = [1, 8], strides = [1, 1]} : vector<4x8xf32> to vector<1x8xf32>
    %146 = vector.shape_cast %145 : vector<1x8xf32> to vector<8xf32>
    %147 = vector.shape_cast %146 : vector<8xf32> to vector<1x8xf32>
    %148 = vector.broadcast %147 : vector<1x8xf32> to vector<32x8xf32>
    %149 = arith.addf %144, %148 : vector<32x8xf32>
    %150 = arith.mulf %117, %117 : vector<32x64xf32>
    %cst_44 = arith.constant dense<0.000000e+00> : vector<32xf32>
    %151 = vector.multi_reduction <add>, %150, %cst_44 [1] : vector<32x64xf32> to vector<32xf32>
    %152 = vector.shape_cast %151 : vector<32xf32> to vector<32x1xf32>
    %cst_45 = arith.constant 6.400000e+01 : f32
    %153 = vector.broadcast %cst_45 : f32 to vector<32x1xf32>
    %154 = arith.divf %152, %153 : vector<32x1xf32>
    %cst_46 = arith.constant 1.1920929E-7 : f32
    %155 = vector.broadcast %cst_46 : f32 to vector<32x1xf32>
    %156 = arith.addf %154, %155 : vector<32x1xf32>
    %157 = math.rsqrt %156 : vector<32x1xf32>
    %158 = vector.broadcast %157 : vector<32x1xf32> to vector<32x64xf32>
    %159 = arith.mulf %117, %158 : vector<32x64xf32>
    %c1_47 = arith.constant 1 : index
    %c0_48 = arith.constant 0 : index
    %c0_49 = arith.constant 0 : index
    %160 = vector.load %arg4[%c1_47, %c0_48, %c0_49] : memref<2x64x8xf32, #tpu.memory_space<vmem>>, vector<1x64x8xf32>
    %161 = vector.shape_cast %160 : vector<1x64x8xf32> to vector<64x8xf32>
    %cst_50 = arith.constant dense<0.000000e+00> : vector<32x8xf32>
    %162 = tpu.matmul %159, %161, %cst_50 {dimension_numbers = #tpu.dot_dimension_numbers<[1], [0], [0], [1], [0, 0, 1, 1], [], []>} : vector<32x64xf32>, vector<64x8xf32>, vector<32x8xf32> -> vector<32x8xf32>
    %163 = math.tanh %162 : vector<32x8xf32>
    %164 = vector.shape_cast %125 : vector<8xf32> to vector<1x8xf32>
    %165 = vector.broadcast %164 : vector<1x8xf32> to vector<32x8xf32>
    %166 = arith.mulf %163, %165 : vector<32x8xf32>
    %167 = vector.extract_strided_slice %127 {offsets = [1, 0], sizes = [1, 8], strides = [1, 1]} : vector<4x8xf32> to vector<1x8xf32>
    %168 = vector.shape_cast %167 : vector<1x8xf32> to vector<8xf32>
    %169 = vector.shape_cast %168 : vector<8xf32> to vector<1x8xf32>
    %170 = vector.broadcast %169 : vector<1x8xf32> to vector<32x8xf32>
    %171 = arith.addf %166, %170 : vector<32x8xf32>
    %172 = arith.mulf %120, %120 : vector<32x64xf32>
    %cst_51 = arith.constant dense<0.000000e+00> : vector<32xf32>
    %173 = vector.multi_reduction <add>, %172, %cst_51 [1] : vector<32x64xf32> to vector<32xf32>
    %174 = vector.shape_cast %173 : vector<32xf32> to vector<32x1xf32>
    %cst_52 = arith.constant 6.400000e+01 : f32
    %175 = vector.broadcast %cst_52 : f32 to vector<32x1xf32>
    %176 = arith.divf %174, %175 : vector<32x1xf32>
    %cst_53 = arith.constant 1.1920929E-7 : f32
    %177 = vector.broadcast %cst_53 : f32 to vector<32x1xf32>
    %178 = arith.addf %176, %177 : vector<32x1xf32>
    %179 = math.rsqrt %178 : vector<32x1xf32>
    %180 = vector.broadcast %179 : vector<32x1xf32> to vector<32x64xf32>
    %181 = arith.mulf %120, %180 : vector<32x64xf32>
    %c1_54 = arith.constant 1 : index
    %c0_55 = arith.constant 0 : index
    %c0_56 = arith.constant 0 : index
    %182 = vector.load %arg4[%c1_54, %c0_55, %c0_56] : memref<2x64x8xf32, #tpu.memory_space<vmem>>, vector<1x64x8xf32>
    %183 = vector.shape_cast %182 : vector<1x64x8xf32> to vector<64x8xf32>
    %cst_57 = arith.constant dense<0.000000e+00> : vector<32x8xf32>
    %184 = tpu.matmul %181, %183, %cst_57 {dimension_numbers = #tpu.dot_dimension_numbers<[1], [0], [0], [1], [0, 0, 1, 1], [], []>} : vector<32x64xf32>, vector<64x8xf32>, vector<32x8xf32> -> vector<32x8xf32>
    %185 = math.tanh %184 : vector<32x8xf32>
    %186 = vector.shape_cast %125 : vector<8xf32> to vector<1x8xf32>
    %187 = vector.broadcast %186 : vector<1x8xf32> to vector<32x8xf32>
    %188 = arith.mulf %185, %187 : vector<32x8xf32>
    %189 = vector.extract_strided_slice %127 {offsets = [2, 0], sizes = [1, 8], strides = [1, 1]} : vector<4x8xf32> to vector<1x8xf32>
    %190 = vector.shape_cast %189 : vector<1x8xf32> to vector<8xf32>
    %191 = vector.shape_cast %190 : vector<8xf32> to vector<1x8xf32>
    %192 = vector.broadcast %191 : vector<1x8xf32> to vector<32x8xf32>
    %193 = arith.addf %188, %192 : vector<32x8xf32>
    %194 = arith.mulf %123, %123 : vector<32x64xf32>
    %cst_58 = arith.constant dense<0.000000e+00> : vector<32xf32>
    %195 = vector.multi_reduction <add>, %194, %cst_58 [1] : vector<32x64xf32> to vector<32xf32>
    %196 = vector.shape_cast %195 : vector<32xf32> to vector<32x1xf32>
    %cst_59 = arith.constant 6.400000e+01 : f32
    %197 = vector.broadcast %cst_59 : f32 to vector<32x1xf32>
    %198 = arith.divf %196, %197 : vector<32x1xf32>
    %cst_60 = arith.constant 1.1920929E-7 : f32
    %199 = vector.broadcast %cst_60 : f32 to vector<32x1xf32>
    %200 = arith.addf %198, %199 : vector<32x1xf32>
    %201 = math.rsqrt %200 : vector<32x1xf32>
    %202 = vector.broadcast %201 : vector<32x1xf32> to vector<32x64xf32>
    %203 = arith.mulf %123, %202 : vector<32x64xf32>
    %c1_61 = arith.constant 1 : index
    %c0_62 = arith.constant 0 : index
    %c0_63 = arith.constant 0 : index
    %204 = vector.load %arg4[%c1_61, %c0_62, %c0_63] : memref<2x64x8xf32, #tpu.memory_space<vmem>>, vector<1x64x8xf32>
    %205 = vector.shape_cast %204 : vector<1x64x8xf32> to vector<64x8xf32>
    %cst_64 = arith.constant dense<0.000000e+00> : vector<32x8xf32>
    %206 = tpu.matmul %203, %205, %cst_64 {dimension_numbers = #tpu.dot_dimension_numbers<[1], [0], [0], [1], [0, 0, 1, 1], [], []>} : vector<32x64xf32>, vector<64x8xf32>, vector<32x8xf32> -> vector<32x8xf32>
    %207 = math.tanh %206 : vector<32x8xf32>
    %208 = vector.shape_cast %125 : vector<8xf32> to vector<1x8xf32>
    %209 = vector.broadcast %208 : vector<1x8xf32> to vector<32x8xf32>
    %210 = arith.mulf %207, %209 : vector<32x8xf32>
    %211 = vector.extract_strided_slice %127 {offsets = [3, 0], sizes = [1, 8], strides = [1, 1]} : vector<4x8xf32> to vector<1x8xf32>
    %212 = vector.shape_cast %211 : vector<1x8xf32> to vector<8xf32>
    %213 = vector.shape_cast %212 : vector<8xf32> to vector<1x8xf32>
    %214 = vector.broadcast %213 : vector<1x8xf32> to vector<32x8xf32>
    %215 = arith.addf %210, %214 : vector<32x8xf32>
    %216 = vector.extract_strided_slice %149 {offsets = [0, 0], sizes = [32, 1], strides = [1, 1]} : vector<32x8xf32> to vector<32x1xf32>
    %217 = vector.broadcast %216 : vector<32x1xf32> to vector<32x64xf32>
    %218 = arith.mulf %217, %114 : vector<32x64xf32>
    %219 = vector.extract_strided_slice %149 {offsets = [0, 1], sizes = [32, 1], strides = [1, 1]} : vector<32x8xf32> to vector<32x1xf32>
    %220 = vector.broadcast %219 : vector<32x1xf32> to vector<32x64xf32>
    %221 = arith.mulf %220, %114 : vector<32x64xf32>
    %222 = vector.extract_strided_slice %149 {offsets = [0, 2], sizes = [32, 1], strides = [1, 1]} : vector<32x8xf32> to vector<32x1xf32>
    %223 = vector.broadcast %222 : vector<32x1xf32> to vector<32x64xf32>
    %224 = arith.mulf %223, %114 : vector<32x64xf32>
    %225 = vector.extract_strided_slice %149 {offsets = [0, 3], sizes = [32, 1], strides = [1, 1]} : vector<32x8xf32> to vector<32x1xf32>
    %226 = vector.broadcast %225 : vector<32x1xf32> to vector<32x64xf32>
    %227 = arith.mulf %226, %114 : vector<32x64xf32>
    %228 = vector.extract_strided_slice %149 {offsets = [0, 4], sizes = [32, 1], strides = [1, 1]} : vector<32x8xf32> to vector<32x1xf32>
    %229 = vector.broadcast %228 : vector<32x1xf32> to vector<32x64xf32>
    %230 = arith.mulf %229, %114 : vector<32x64xf32>
    %231 = vector.extract_strided_slice %171 {offsets = [0, 0], sizes = [32, 1], strides = [1, 1]} : vector<32x8xf32> to vector<32x1xf32>
    %232 = vector.broadcast %231 : vector<32x1xf32> to vector<32x64xf32>
    %233 = arith.mulf %232, %117 : vector<32x64xf32>
    %234 = arith.addf %218, %233 : vector<32x64xf32>
    %235 = vector.extract_strided_slice %171 {offsets = [0, 1], sizes = [32, 1], strides = [1, 1]} : vector<32x8xf32> to vector<32x1xf32>
    %236 = vector.broadcast %235 : vector<32x1xf32> to vector<32x64xf32>
    %237 = arith.mulf %236, %117 : vector<32x64xf32>
    %238 = arith.addf %221, %237 : vector<32x64xf32>
    %239 = vector.extract_strided_slice %171 {offsets = [0, 2], sizes = [32, 1], strides = [1, 1]} : vector<32x8xf32> to vector<32x1xf32>
    %240 = vector.broadcast %239 : vector<32x1xf32> to vector<32x64xf32>
    %241 = arith.mulf %240, %117 : vector<32x64xf32>
    %242 = arith.addf %224, %241 : vector<32x64xf32>
    %243 = vector.extract_strided_slice %171 {offsets = [0, 3], sizes = [32, 1], strides = [1, 1]} : vector<32x8xf32> to vector<32x1xf32>
    %244 = vector.broadcast %243 : vector<32x1xf32> to vector<32x64xf32>
    %245 = arith.mulf %244, %117 : vector<32x64xf32>
    %246 = arith.addf %227, %245 : vector<32x64xf32>
    %247 = vector.extract_strided_slice %171 {offsets = [0, 4], sizes = [32, 1], strides = [1, 1]} : vector<32x8xf32> to vector<32x1xf32>
    %248 = vector.broadcast %247 : vector<32x1xf32> to vector<32x64xf32>
    %249 = arith.mulf %248, %117 : vector<32x64xf32>
    %250 = arith.addf %230, %249 : vector<32x64xf32>
    %251 = vector.extract_strided_slice %193 {offsets = [0, 0], sizes = [32, 1], strides = [1, 1]} : vector<32x8xf32> to vector<32x1xf32>
    %252 = vector.broadcast %251 : vector<32x1xf32> to vector<32x64xf32>
    %253 = arith.mulf %252, %120 : vector<32x64xf32>
    %254 = arith.addf %234, %253 : vector<32x64xf32>
    %255 = vector.extract_strided_slice %193 {offsets = [0, 1], sizes = [32, 1], strides = [1, 1]} : vector<32x8xf32> to vector<32x1xf32>
    %256 = vector.broadcast %255 : vector<32x1xf32> to vector<32x64xf32>
    %257 = arith.mulf %256, %120 : vector<32x64xf32>
    %258 = arith.addf %238, %257 : vector<32x64xf32>
    %259 = vector.extract_strided_slice %193 {offsets = [0, 2], sizes = [32, 1], strides = [1, 1]} : vector<32x8xf32> to vector<32x1xf32>
    %260 = vector.broadcast %259 : vector<32x1xf32> to vector<32x64xf32>
    %261 = arith.mulf %260, %120 : vector<32x64xf32>
    %262 = arith.addf %242, %261 : vector<32x64xf32>
    %263 = vector.extract_strided_slice %193 {offsets = [0, 3], sizes = [32, 1], strides = [1, 1]} : vector<32x8xf32> to vector<32x1xf32>
    %264 = vector.broadcast %263 : vector<32x1xf32> to vector<32x64xf32>
    %265 = arith.mulf %264, %120 : vector<32x64xf32>
    %266 = arith.addf %246, %265 : vector<32x64xf32>
    %267 = vector.extract_strided_slice %193 {offsets = [0, 4], sizes = [32, 1], strides = [1, 1]} : vector<32x8xf32> to vector<32x1xf32>
    %268 = vector.broadcast %267 : vector<32x1xf32> to vector<32x64xf32>
    %269 = arith.mulf %268, %120 : vector<32x64xf32>
    %270 = arith.addf %250, %269 : vector<32x64xf32>
    %271 = vector.extract_strided_slice %215 {offsets = [0, 0], sizes = [32, 1], strides = [1, 1]} : vector<32x8xf32> to vector<32x1xf32>
    %272 = vector.broadcast %271 : vector<32x1xf32> to vector<32x64xf32>
    %273 = arith.mulf %272, %123 : vector<32x64xf32>
    %274 = arith.addf %254, %273 : vector<32x64xf32>
    %275 = vector.extract_strided_slice %215 {offsets = [0, 1], sizes = [32, 1], strides = [1, 1]} : vector<32x8xf32> to vector<32x1xf32>
    %276 = vector.broadcast %275 : vector<32x1xf32> to vector<32x64xf32>
    %277 = arith.mulf %276, %123 : vector<32x64xf32>
    %278 = arith.addf %258, %277 : vector<32x64xf32>
    %279 = vector.extract_strided_slice %215 {offsets = [0, 2], sizes = [32, 1], strides = [1, 1]} : vector<32x8xf32> to vector<32x1xf32>
    %280 = vector.broadcast %279 : vector<32x1xf32> to vector<32x64xf32>
    %281 = arith.mulf %280, %123 : vector<32x64xf32>
    %282 = arith.addf %262, %281 : vector<32x64xf32>
    %283 = vector.extract_strided_slice %215 {offsets = [0, 3], sizes = [32, 1], strides = [1, 1]} : vector<32x8xf32> to vector<32x1xf32>
    %284 = vector.broadcast %283 : vector<32x1xf32> to vector<32x64xf32>
    %285 = arith.mulf %284, %123 : vector<32x64xf32>
    %286 = arith.addf %266, %285 : vector<32x64xf32>
    %287 = vector.extract_strided_slice %215 {offsets = [0, 4], sizes = [32, 1], strides = [1, 1]} : vector<32x8xf32> to vector<32x1xf32>
    %288 = vector.broadcast %287 : vector<32x1xf32> to vector<32x64xf32>
    %289 = arith.mulf %288, %123 : vector<32x64xf32>
    %290 = arith.addf %270, %289 : vector<32x64xf32>
    %291 = vector.extract_strided_slice %149 {offsets = [0, 5], sizes = [32, 1], strides = [1, 1]} : vector<32x8xf32> to vector<32x1xf32>
    %292 = vector.extract_strided_slice %171 {offsets = [0, 5], sizes = [32, 1], strides = [1, 1]} : vector<32x8xf32> to vector<32x1xf32>
    %293 = vector.extract_strided_slice %193 {offsets = [0, 5], sizes = [32, 1], strides = [1, 1]} : vector<32x8xf32> to vector<32x1xf32>
    %294 = vector.extract_strided_slice %215 {offsets = [0, 5], sizes = [32, 1], strides = [1, 1]} : vector<32x8xf32> to vector<32x1xf32>
    %295 = arith.mulf %274, %274 : vector<32x64xf32>
    %cst_65 = arith.constant dense<0.000000e+00> : vector<32xf32>
    %296 = vector.multi_reduction <add>, %295, %cst_65 [1] : vector<32x64xf32> to vector<32xf32>
    %297 = vector.shape_cast %296 : vector<32xf32> to vector<32x1xf32>
    %cst_66 = arith.constant 6.400000e+01 : f32
    %298 = vector.broadcast %cst_66 : f32 to vector<32x1xf32>
    %299 = arith.divf %297, %298 : vector<32x1xf32>
    %cst_67 = arith.constant 1.1920929E-7 : f32
    %300 = vector.broadcast %cst_67 : f32 to vector<32x1xf32>
    %301 = arith.addf %299, %300 : vector<32x1xf32>
    %302 = math.rsqrt %301 : vector<32x1xf32>
    %303 = vector.broadcast %302 : vector<32x1xf32> to vector<32x64xf32>
    %304 = arith.mulf %274, %303 : vector<32x64xf32>
    %305 = arith.truncf %304 : vector<32x64xf32> to vector<32x64xbf16>
    %c1_68 = arith.constant 1 : index
    %c0_69 = arith.constant 0 : index
    %c0_70 = arith.constant 0 : index
    %306 = vector.load %arg7[%c1_68, %c0_69, %c0_70] : memref<2x64x128xbf16, #tpu.memory_space<vmem>>, vector<1x64x128xbf16>
    %307 = vector.shape_cast %306 : vector<1x64x128xbf16> to vector<64x128xbf16>
    %cst_71 = arith.constant dense<0.000000e+00> : vector<32x128xf32>
    %308 = tpu.matmul %305, %307, %cst_71 {dimension_numbers = #tpu.dot_dimension_numbers<[1], [0], [0], [1], [0, 0, 1, 1], [], []>} : vector<32x64xbf16>, vector<64x128xbf16>, vector<32x128xf32> -> vector<32x128xf32>
    %c1_72 = arith.constant 1 : index
    %c0_73 = arith.constant 0 : index
    %309 = vector.load %arg8[%c1_72, %c0_73] : memref<2x128xf32, #tpu.memory_space<vmem>>, vector<1x128xf32>
    %310 = vector.shape_cast %309 : vector<1x128xf32> to vector<128xf32>
    %311 = vector.shape_cast %310 : vector<128xf32> to vector<1x128xf32>
    %312 = vector.broadcast %311 : vector<1x128xf32> to vector<32x128xf32>
    %313 = arith.addf %308, %312 : vector<32x128xf32>
    %cst_74 = arith.constant 0.000000e+00 : f32
    %314 = vector.broadcast %cst_74 : f32 to vector<32x128xf32>
    %315 = arith.maximumf %313, %314 : vector<32x128xf32>
    %316 = arith.mulf %315, %315 : vector<32x128xf32>
    %317 = arith.truncf %316 : vector<32x128xf32> to vector<32x128xbf16>
    %c1_75 = arith.constant 1 : index
    %c0_76 = arith.constant 0 : index
    %c0_77 = arith.constant 0 : index
    %318 = vector.load %arg9[%c1_75, %c0_76, %c0_77] : memref<2x128x64xbf16, #tpu.memory_space<vmem>>, vector<1x128x64xbf16>
    %319 = vector.shape_cast %318 : vector<1x128x64xbf16> to vector<128x64xbf16>
    %cst_78 = arith.constant dense<0.000000e+00> : vector<32x64xf32>
    %320 = tpu.matmul %317, %319, %cst_78 {dimension_numbers = #tpu.dot_dimension_numbers<[1], [0], [0], [1], [0, 0, 1, 1], [], []>} : vector<32x128xbf16>, vector<128x64xbf16>, vector<32x64xf32> -> vector<32x64xf32>
    %c1_79 = arith.constant 1 : index
    %c0_80 = arith.constant 0 : index
    %321 = vector.load %arg10[%c1_79, %c0_80] : memref<2x64xf32, #tpu.memory_space<vmem>>, vector<1x64xf32>
    %322 = vector.shape_cast %321 : vector<1x64xf32> to vector<64xf32>
    %323 = vector.shape_cast %322 : vector<64xf32> to vector<1x64xf32>
    %324 = vector.broadcast %323 : vector<1x64xf32> to vector<32x64xf32>
    %325 = arith.addf %320, %324 : vector<32x64xf32>
    %326 = vector.broadcast %291 : vector<32x1xf32> to vector<32x64xf32>
    %327 = arith.mulf %325, %326 : vector<32x64xf32>
    %328 = arith.addf %327, %278 : vector<32x64xf32>
    %329 = vector.broadcast %292 : vector<32x1xf32> to vector<32x64xf32>
    %330 = arith.mulf %325, %329 : vector<32x64xf32>
    %331 = arith.addf %330, %282 : vector<32x64xf32>
    %332 = vector.broadcast %293 : vector<32x1xf32> to vector<32x64xf32>
    %333 = arith.mulf %325, %332 : vector<32x64xf32>
    %334 = arith.addf %333, %286 : vector<32x64xf32>
    %335 = vector.broadcast %294 : vector<32x1xf32> to vector<32x64xf32>
    %336 = arith.mulf %325, %335 : vector<32x64xf32>
    %337 = arith.addf %336, %290 : vector<32x64xf32>
    %338 = arith.addf %328, %331 : vector<32x64xf32>
    %339 = arith.addf %338, %334 : vector<32x64xf32>
    %340 = arith.addf %339, %337 : vector<32x64xf32>
    %341 = arith.mulf %340, %340 : vector<32x64xf32>
    %cst_81 = arith.constant dense<0.000000e+00> : vector<32xf32>
    %342 = vector.multi_reduction <add>, %341, %cst_81 [1] : vector<32x64xf32> to vector<32xf32>
    %343 = vector.shape_cast %342 : vector<32xf32> to vector<32x1xf32>
    %cst_82 = arith.constant 6.400000e+01 : f32
    %344 = vector.broadcast %cst_82 : f32 to vector<32x1xf32>
    %345 = arith.divf %343, %344 : vector<32x1xf32>
    %cst_83 = arith.constant 1.1920929E-7 : f32
    %346 = vector.broadcast %cst_83 : f32 to vector<32x1xf32>
    %347 = arith.addf %345, %346 : vector<32x1xf32>
    %348 = math.rsqrt %347 : vector<32x1xf32>
    %349 = vector.broadcast %348 : vector<32x1xf32> to vector<32x64xf32>
    %350 = arith.mulf %340, %349 : vector<32x64xf32>
    %351 = arith.truncf %350 : vector<32x64xf32> to vector<32x64xbf16>
    %c0_84 = arith.constant 0 : index
    %c0_85 = arith.constant 0 : index
    %352 = vector.load %arg11[%c0_84, %c0_85] : memref<64x64xbf16, #tpu.memory_space<vmem>>, vector<64x64xbf16>
    %cst_86 = arith.constant dense<0.000000e+00> : vector<32x64xf32>
    %353 = tpu.matmul %351, %352, %cst_86 {dimension_numbers = #tpu.dot_dimension_numbers<[1], [0], [0], [1], [0, 0, 1, 1], [], []>} : vector<32x64xbf16>, vector<64x64xbf16>, vector<32x64xf32> -> vector<32x64xf32>
    %c0_87 = arith.constant 0 : index
    %c0_88 = arith.constant 0 : index
    %354 = vector.load %arg12[%c0_87, %c0_88] : memref<1x64xf32, #tpu.memory_space<vmem>>, vector<1x64xf32>
    %355 = vector.shape_cast %354 : vector<1x64xf32> to vector<64xf32>
    %356 = vector.shape_cast %355 : vector<64xf32> to vector<1x64xf32>
    %357 = vector.broadcast %356 : vector<1x64xf32> to vector<32x64xf32>
    %358 = arith.addf %353, %357 : vector<32x64xf32>
    %cst_89 = arith.constant 0.000000e+00 : f32
    %359 = vector.broadcast %cst_89 : f32 to vector<32x64xf32>
    %360 = arith.maximumf %358, %359 : vector<32x64xf32>
    %361 = arith.mulf %360, %360 : vector<32x64xf32>
    %362 = arith.truncf %361 : vector<32x64xf32> to vector<32x64xbf16>
    %c0_90 = arith.constant 0 : index
    %c0_91 = arith.constant 0 : index
    %363 = vector.load %arg13[%c0_90, %c0_91] : memref<64x128xbf16, #tpu.memory_space<vmem>>, vector<64x128xbf16>
    %cst_92 = arith.constant dense<0.000000e+00> : vector<32x128xf32>
    %364 = tpu.matmul %362, %363, %cst_92 {dimension_numbers = #tpu.dot_dimension_numbers<[1], [0], [0], [1], [0, 0, 1, 1], [], []>} : vector<32x64xbf16>, vector<64x128xbf16>, vector<32x128xf32> -> vector<32x128xf32>
    %c0_93 = arith.constant 0 : index
    %c0_94 = arith.constant 0 : index
    %365 = vector.load %arg14[%c0_93, %c0_94] : memref<1x128xf32, #tpu.memory_space<vmem>>, vector<1x128xf32>
    %366 = vector.shape_cast %365 : vector<1x128xf32> to vector<128xf32>
    %367 = vector.shape_cast %366 : vector<128xf32> to vector<1x128xf32>
    %368 = vector.broadcast %367 : vector<1x128xf32> to vector<32x128xf32>
    %369 = arith.addf %364, %368 : vector<32x128xf32>
    %370 = tpu.iota {dimensions = array<i32: 1>} : vector<32x128xi32>
    %c8_i32 = arith.constant 8 : i32
    %371 = vector.broadcast %c8_i32 : i32 to vector<32x128xi32>
    %372 = arith.cmpi slt, %370, %371 : vector<32x128xi32>
    %cst_95 = arith.constant 0xFF800000 : f32
    %373 = vector.broadcast %cst_95 : f32 to vector<32x128xf32>
    %374 = arith.select %372, %369, %373 : vector<32x128xi1>, vector<32x128xf32>
    %cst_96 = arith.constant dense<0xFF800000> : vector<32xf32>
    %375 = vector.multi_reduction <maximumf>, %374, %cst_96 [1] : vector<32x128xf32> to vector<32xf32>
    %376 = vector.shape_cast %375 : vector<32xf32> to vector<32x1xf32>
    %377 = vector.broadcast %376 : vector<32x1xf32> to vector<32x128xf32>
    %378 = arith.subf %374, %377 : vector<32x128xf32>
    %379 = math.exp %378 : vector<32x128xf32>
    %cst_97 = arith.constant dense<0.000000e+00> : vector<32xf32>
    %380 = vector.multi_reduction <add>, %379, %cst_97 [1] : vector<32x128xf32> to vector<32xf32>
    %381 = vector.shape_cast %380 : vector<32xf32> to vector<32x1xf32>
    %382 = tpu.reciprocal %381 {approx = true} : vector<32x1xf32> -> vector<32x1xf32>
    %383 = vector.broadcast %382 : vector<32x1xf32> to vector<32x128xf32>
    %384 = arith.mulf %379, %383 : vector<32x128xf32>
    %c8_i32_98 = arith.constant 8 : i32
    %385 = vector.broadcast %c8_i32_98 : i32 to vector<32x128xi32>
    %386 = arith.cmpi eq, %370, %385 : vector<32x128xi32>
    %cst_99 = arith.constant 0.000000e+00 : f32
    %387 = vector.broadcast %cst_99 : f32 to vector<32x128xf32>
    %388 = arith.select %386, %369, %387 : vector<32x128xi1>, vector<32x128xf32>
    %389 = arith.select %372, %384, %388 : vector<32x128xi1>, vector<32x128xf32>
    %c0_100 = arith.constant 0 : index
    %c0_101 = arith.constant 0 : index
    %390 = vector.load %arg15[%c0_100, %c0_101] : memref<32x128xf32, #tpu.memory_space<vmem>>, vector<32x128xf32>
    tpu.vector_store %arg15[%c0_100, %c0_101], %389 {strides = array<i32>} : memref<32x128xf32, #tpu.memory_space<vmem>>, vector<32x128xf32>,
    return
  }
  func.func @transform_0(%arg0: i32) -> (i32, i32) {
    %c0_i32 = arith.constant 0 : i32
    %c0_i32_0 = arith.constant 0 : i32
    return %arg0, %c0_i32 : i32, i32
  }
  func.func @transform_1(%arg0: i32) -> (i32, i32) {
    %c0_i32 = arith.constant 0 : i32
    %c0_i32_0 = arith.constant 0 : i32
    %c0_i32_1 = arith.constant 0 : i32
    return %c0_i32, %c0_i32_0 : i32, i32
  }
  func.func @transform_2(%arg0: i32) -> (i32, i32) {
    %c0_i32 = arith.constant 0 : i32
    %c0_i32_0 = arith.constant 0 : i32
    %c0_i32_1 = arith.constant 0 : i32
    return %c0_i32, %c0_i32_0 : i32, i32
  }
  func.func @transform_3(%arg0: i32) -> (i32, i32, i32) {
    %c0_i32 = arith.constant 0 : i32
    %c0_i32_0 = arith.constant 0 : i32
    %c0_i32_1 = arith.constant 0 : i32
    %c0_i32_2 = arith.constant 0 : i32
    return %c0_i32, %c0_i32_0, %c0_i32_1 : i32, i32, i32
  }
  func.func @transform_4(%arg0: i32) -> (i32, i32) {
    %c0_i32 = arith.constant 0 : i32
    %c0_i32_0 = arith.constant 0 : i32
    %c0_i32_1 = arith.constant 0 : i32
    return %c0_i32, %c0_i32_0 : i32, i32
  }
  func.func @transform_5(%arg0: i32) -> (i32, i32, i32) {
    %c0_i32 = arith.constant 0 : i32
    %c0_i32_0 = arith.constant 0 : i32
    %c0_i32_1 = arith.constant 0 : i32
    %c0_i32_2 = arith.constant 0 : i32
    return %c0_i32, %c0_i32_0, %c0_i32_1 : i32, i32, i32
  }
  func.func @transform_6(%arg0: i32) -> (i32, i32, i32) {
    %c0_i32 = arith.constant 0 : i32
    %c0_i32_0 = arith.constant 0 : i32
    %c0_i32_1 = arith.constant 0 : i32
    %c0_i32_2 = arith.constant 0 : i32
    return %c0_i32, %c0_i32_0, %c0_i32_1 : i32, i32, i32
  }
  func.func @transform_7(%arg0: i32) -> (i32, i32) {
    %c0_i32 = arith.constant 0 : i32
    %c0_i32_0 = arith.constant 0 : i32
    %c0_i32_1 = arith.constant 0 : i32
    return %c0_i32, %c0_i32_0 : i32, i32
  }
  func.func @transform_8(%arg0: i32) -> (i32, i32, i32) {
    %c0_i32 = arith.constant 0 : i32
    %c0_i32_0 = arith.constant 0 : i32
    %c0_i32_1 = arith.constant 0 : i32
    %c0_i32_2 = arith.constant 0 : i32
    return %c0_i32, %c0_i32_0, %c0_i32_1 : i32, i32, i32
  }
  func.func @transform_9(%arg0: i32) -> (i32, i32) {
    %c0_i32 = arith.constant 0 : i32
    %c0_i32_0 = arith.constant 0 : i32
    %c0_i32_1 = arith.constant 0 : i32
    return %c0_i32, %c0_i32_0 : i32, i32
  }
  func.func @transform_10(%arg0: i32) -> (i32, i32) {
    %c0_i32 = arith.constant 0 : i32
    %c0_i32_0 = arith.constant 0 : i32
    %c0_i32_1 = arith.constant 0 : i32
    return %c0_i32, %c0_i32_0 : i32, i32
  }
  func.func @transform_11(%arg0: i32) -> (i32, i32) {
    %c0_i32 = arith.constant 0 : i32
    %c0_i32_0 = arith.constant 0 : i32
    %c0_i32_1 = arith.constant 0 : i32
    return %c0_i32, %c0_i32_0 : i32, i32
  }
  func.func @transform_12(%arg0: i32) -> (i32, i32) {
    %c0_i32 = arith.constant 0 : i32
    %c0_i32_0 = arith.constant 0 : i32
    %c0_i32_1 = arith.constant 0 : i32
    return %c0_i32, %c0_i32_0 : i32, i32
  }
  func.func @transform_13(%arg0: i32) -> (i32, i32) {
    %c0_i32 = arith.constant 0 : i32
    %c0_i32_0 = arith.constant 0 : i32
    %c0_i32_1 = arith.constant 0 : i32
    return %c0_i32, %c0_i32_0 : i32, i32
  }
  func.func @transform_14(%arg0: i32) -> (i32, i32) {
    %c0_i32 = arith.constant 0 : i32
    %c0_i32_0 = arith.constant 0 : i32
    return %arg0, %c0_i32 : i32, i32
  }
}

</mosaic_0001>

<llo_original>
// kernel: tpu_custom_call.1
$region0: #{tpu_custom_call.1}
  #allocation0 [shape = 'u32[]', space=smem, size = 0x4, offset = 0x4, fixed_abs, tag = 'smem constant byte address 0x4 - core index']
  #allocation1 [shape = 'u32[144,128]{1,0:T(1,128)}', space=vmem, size = 0x12000, scoped, tag = 'internal scratch']
  %s0 = inlined_call_operand.vmem [shape: f32[64,32], index: 0, kind: input, shape index: {}]
  %s1 = inlined_call_operand.vmem [shape: bf16[32,64], index: 1, kind: input, shape index: {}]
  %s2 = inlined_call_operand.vmem [shape: f32[1,64], index: 2, kind: input, shape index: {}]
  %s3 = inlined_call_operand.vmem [shape: f32[2,64,8], index: 3, kind: input, shape index: {}]
  %s4 = inlined_call_operand.vmem [shape: f32[2,8], index: 4, kind: input, shape index: {}]
  %s5 = inlined_call_operand.vmem [shape: f32[2,4,8], index: 5, kind: input, shape index: {}]
  %s6 = inlined_call_operand.vmem [shape: bf16[2,64,128], index: 6, kind: input, shape index: {}]
  %s7 = inlined_call_operand.vmem [shape: f32[2,128], index: 7, kind: input, shape index: {}]
  %s8 = inlined_call_operand.vmem [shape: bf16[2,128,64], index: 8, kind: input, shape index: {}]
  %s9 = inlined_call_operand.vmem [shape: f32[2,64], index: 9, kind: input, shape index: {}]
  %s10 = inlined_call_operand.vmem [shape: bf16[64,64], index: 10, kind: input, shape index: {}]
  %s11 = inlined_call_operand.vmem [shape: f32[1,64], index: 11, kind: input, shape index: {}]
  %s12 = inlined_call_operand.vmem [shape: bf16[64,128], index: 12, kind: input, shape index: {}]
  %s13 = inlined_call_operand.vmem [shape: f32[1,128], index: 13, kind: input, shape index: {}]
  %s14 = inlined_call_operand.hbm [shape: f32[64,128], index: 14, kind: output, shape index: {}]
  %s15 = sld [smem:[#allocation0]]
  $region89: #{tpu_custom_call.1} parent=0
    _
  %s17 = ssub.s32 1, %s15
  %s18 = scalar_select 0, %s17, %s15
  $region1: #{tpu_custom_call.1} parent=0
    #allocation2 [shape = 'u8[32768]{0}', space=vmem, size = 0x8000, scoped, tag = 'output window, operand 0']
    #allocation3 [shape = 's32[2]{0}', space=sflag, size = 0x8, scoped, tag = 'scoped memory for tpu_custom_call.1']
    %19 = vsyncpa [#allocation3], 0
    %s20 = scalar_lea.sflag [#allocation3], 1
    %21 = vsyncpa %s20, 0
    loop: start=0, step=1, limit=4
    $region2: #{tpu_custom_call.1} parent=1 // loop_pre_header
      _
    $region3: #{tpu_custom_call.1} parent=1 // loop_header
      %s23 = sphi 0, %s27
      %p24 = scmp.ge.s32.totalorder %s23, 4
      %s33 = sphi 0, %s35
      %s36 = sphi 0, %s33
      %s37 = sphi 0, %s36
      %s53 = sphi 0, %s37
      %s57 = sphi 0, %s57
      %s59 = sphi 0, %s57
      %s60 = sphi 0, %s59
      %s74 = sphi 0, %s60
      %s78 = sphi 0, %s78
      %s80 = sphi 0, %s78
      %s81 = sphi 0, %s80
      %s95 = sphi 0, %s81
      %s99 = sphi 0, %s99
      %s101 = sphi 0, %s99
      %s102 = sphi 0, %s101
      %s116 = sphi 0, %s102
      %s120 = sphi 0, %s120
      %s122 = sphi 0, %s120
      %s123 = sphi 0, %s122
      %s137 = sphi 0, %s123
      %s141 = sphi 0, %s141
      %s143 = sphi 0, %s141
      %s144 = sphi 0, %s143
      %s158 = sphi 0, %s144
      %s162 = sphi 0, %s162
      %s164 = sphi 0, %s162
      %s165 = sphi 0, %s164
      %s179 = sphi 0, %s165
      %s183 = sphi 0, %s183
      %s185 = sphi 0, %s183
      %s186 = sphi 0, %s185
      %s200 = sphi 0, %s186
      %s204 = sphi 0, %s204
      %s206 = sphi 0, %s204
      %s207 = sphi 0, %s206
      %s221 = sphi 0, %s207
      %s225 = sphi 0, %s225
      %s227 = sphi 0, %s225
      %s228 = sphi 0, %s227
      %s242 = sphi 0, %s228
      %s246 = sphi 0, %s246
      %s248 = sphi 0, %s246
      %s249 = sphi 0, %s248
      %s263 = sphi 0, %s249
      %s267 = sphi 0, %s267
      %s269 = sphi 0, %s267
      %s270 = sphi 0, %s269
      %s284 = sphi 0, %s270
      %s288 = sphi 0, %s288
      %s290 = sphi 0, %s288
      %s291 = sphi 0, %s290
      %s305 = sphi 0, %s291
      %s309 = sphi 0, %s309
      %s311 = sphi 0, %s309
      %s312 = sphi 0, %s311
      %s326 = sphi 0, %s312
      %s332 = sphi 0, %s334
      %s335 = sphi 0, %s332
      %s336 = sphi 0, %s335
      %s352 = sphi 0, %s336
    $region4: #{tpu_custom_call.1} parent=1 // loop_header_branch
      %26 = sbr.rel (%p24) target = $region8
    $region5: #{tpu_custom_call.1} parent=1 // loop_body
      %s28 = ssub.s32 %s23, 1
      %s29 = ssub.s32 %s23, 2
      %s30 = sadd.s32 %s23, 1
      %s31 = ssub.s32 %s23, %s30
      %p32 = scmp.eq.s32.totalorder %s31, 0
      %s34 = sadd.s32 %s33, 1
      %s35 = scalar_select %p32, %s33, %s34
      %p38 = pneg %p32
      %p39 = scmp.eq.s32.totalorder %s23, 1
      %p40 = por %p38, %p39
      %p41 = scmp.ne.s32.totalorder %s33, %s36
      %p42 = scmp.eq.s32.totalorder %s23, 0
      %p43 = por %p41, %p42
      %p44 = scmp.ne.s32.totalorder %s33, %s36
      %p45 = scmp.eq.s32.totalorder %s28, 1
      %p46 = por %p44, %p45
      %p47 = scmp.ne.s32.totalorder %s36, %s37
      %p48 = scmp.eq.s32.totalorder %s28, 0
      %p49 = por %p47, %p48
      %p50 = scmp.ne.s32.totalorder %s36, %s37
      %p51 = scmp.eq.s32.totalorder %s29, 1
      %p52 = por %p50, %p51
      %p54 = scmp.ne.s32.totalorder %s37, %s53
      %p55 = scmp.eq.s32.totalorder %s29, 0
      %p56 = por %p54, %p55
      %s58 = sadd.s32 %s57, 1
      %p61 = scmp.eq.s32.totalorder %s23, 1
      %p62 = scmp.ne.s32.totalorder %s57, %s59
      %p63 = scmp.eq.s32.totalorder %s23, 0
      %p64 = por %p62, %p63
      %p65 = scmp.ne.s32.totalorder %s57, %s59
      %p66 = scmp.eq.s32.totalorder %s28, 1
      %p67 = por %p65, %p66
      %p68 = scmp.ne.s32.totalorder %s59, %s60
      %p69 = scmp.eq.s32.totalorder %s28, 0
      %p70 = por %p68, %p69
      %p71 = scmp.ne.s32.totalorder %s59, %s60
      %p72 = scmp.eq.s32.totalorder %s29, 1
      %p73 = por %p71, %p72
      %p75 = scmp.ne.s32.totalorder %s60, %s74
      %p76 = scmp.eq.s32.totalorder %s29, 0
      %p77 = por %p75, %p76
      %s79 = sadd.s32 %s78, 1
      %p82 = scmp.eq.s32.totalorder %s23, 1
      %p83 = scmp.ne.s32.totalorder %s78, %s80
      %p84 = scmp.eq.s32.totalorder %s23, 0
      %p85 = por %p83, %p84
      %p86 = scmp.ne.s32.totalorder %s78, %s80
      %p87 = scmp.eq.s32.totalorder %s28, 1
      %p88 = por %p86, %p87
      %p89 = scmp.ne.s32.totalorder %s80, %s81
      %p90 = scmp.eq.s32.totalorder %s28, 0
      %p91 = por %p89, %p90
      %p92 = scmp.ne.s32.totalorder %s80, %s81
      %p93 = scmp.eq.s32.totalorder %s29, 1
      %p94 = por %p92, %p93
      %p96 = scmp.ne.s32.totalorder %s81, %s95
      %p97 = scmp.eq.s32.totalorder %s29, 0
      %p98 = por %p96, %p97
      %s100 = sadd.s32 %s99, 1
      %p103 = scmp.eq.s32.totalorder %s23, 1
      %p104 = scmp.ne.s32.totalorder %s99, %s101
      %p105 = scmp.eq.s32.totalorder %s23, 0
      %p106 = por %p104, %p105
      %p107 = scmp.ne.s32.totalorder %s99, %s101
      %p108 = scmp.eq.s32.totalorder %s28, 1
      %p109 = por %p107, %p108
      %p110 = scmp.ne.s32.totalorder %s101, %s102
      %p111 = scmp.eq.s32.totalorder %s28, 0
      %p112 = por %p110, %p111
      %p113 = scmp.ne.s32.totalorder %s101, %s102
      %p114 = scmp.eq.s32.totalorder %s29, 1
      %p115 = por %p113, %p114
      %p117 = scmp.ne.s32.totalorder %s102, %s116
      %p118 = scmp.eq.s32.totalorder %s29, 0
      %p119 = por %p117, %p118
      %s121 = sadd.s32 %s120, 1
      %p124 = scmp.eq.s32.totalorder %s23, 1
      %p125 = scmp.ne.s32.totalorder %s120, %s122
      %p126 = scmp.eq.s32.totalorder %s23, 0
      %p127 = por %p125, %p126
      %p128 = scmp.ne.s32.totalorder %s120, %s122
      %p129 = scmp.eq.s32.totalorder %s28, 1
      %p130 = por %p128, %p129
      %p131 = scmp.ne.s32.totalorder %s122, %s123
      %p132 = scmp.eq.s32.totalorder %s28, 0
      %p133 = por %p131, %p132
      %p134 = scmp.ne.s32.totalorder %s122, %s123
      %p135 = scmp.eq.s32.totalorder %s29, 1
      %p136 = por %p134, %p135
      %p138 = scmp.ne.s32.totalorder %s123, %s137
      %p139 = scmp.eq.s32.totalorder %s29, 0
      %p140 = por %p138, %p139
      %s142 = sadd.s32 %s141, 1
      %p145 = scmp.eq.s32.totalorder %s23, 1
      %p146 = scmp.ne.s32.totalorder %s141, %s143
      %p147 = scmp.eq.s32.totalorder %s23, 0
      %p148 = por %p146, %p147
      %p149 = scmp.ne.s32.totalorder %s141, %s143
      %p150 = scmp.eq.s32.totalorder %s28, 1
      %p151 = por %p149, %p150
      %p152 = scmp.ne.s32.totalorder %s143, %s144
      %p153 = scmp.eq.s32.totalorder %s28, 0
      %p154 = por %p152, %p153
      %p155 = scmp.ne.s32.totalorder %s143, %s144
      %p156 = scmp.eq.s32.totalorder %s29, 1
      %p157 = por %p155, %p156
      %p159 = scmp.ne.s32.totalorder %s144, %s158
      %p160 = scmp.eq.s32.totalorder %s29, 0
      %p161 = por %p159, %p160
      %s163 = sadd.s32 %s162, 1
      %p166 = scmp.eq.s32.totalorder %s23, 1
      %p167 = scmp.ne.s32.totalorder %s162, %s164
      %p168 = scmp.eq.s32.totalorder %s23, 0
      %p169 = por %p167, %p168
      %p170 = scmp.ne.s32.totalorder %s162, %s164
      %p171 = scmp.eq.s32.totalorder %s28, 1
      %p172 = por %p170, %p171
      %p173 = scmp.ne.s32.totalorder %s164, %s165
      %p174 = scmp.eq.s32.totalorder %s28, 0
      %p175 = por %p173, %p174
      %p176 = scmp.ne.s32.totalorder %s164, %s165
      %p177 = scmp.eq.s32.totalorder %s29, 1
      %p178 = por %p176, %p177
      %p180 = scmp.ne.s32.totalorder %s165, %s179
      %p181 = scmp.eq.s32.totalorder %s29, 0
      %p182 = por %p180, %p181
      %s184 = sadd.s32 %s183, 1
      %p187 = scmp.eq.s32.totalorder %s23, 1
      %p188 = scmp.ne.s32.totalorder %s183, %s185
      %p189 = scmp.eq.s32.totalorder %s23, 0
      %p190 = por %p188, %p189
      %p191 = scmp.ne.s32.totalorder %s183, %s185
      %p192 = scmp.eq.s32.totalorder %s28, 1
      %p193 = por %p191, %p192
      %p194 = scmp.ne.s32.totalorder %s185, %s186
      %p195 = scmp.eq.s32.totalorder %s28, 0
      %p196 = por %p194, %p195
      %p197 = scmp.ne.s32.totalorder %s185, %s186
      %p198 = scmp.eq.s32.totalorder %s29, 1
      %p199 = por %p197, %p198
      %p201 = scmp.ne.s32.totalorder %s186, %s200
      %p202 = scmp.eq.s32.totalorder %s29, 0
      %p203 = por %p201, %p202
      %s205 = sadd.s32 %s204, 1
      %p208 = scmp.eq.s32.totalorder %s23, 1
      %p209 = scmp.ne.s32.totalorder %s204, %s206
      %p210 = scmp.eq.s32.totalorder %s23, 0
      %p211 = por %p209, %p210
      %p212 = scmp.ne.s32.totalorder %s204, %s206
      %p213 = scmp.eq.s32.totalorder %s28, 1
      %p214 = por %p212, %p213
      %p215 = scmp.ne.s32.totalorder %s206, %s207
      %p216 = scmp.eq.s32.totalorder %s28, 0
      %p217 = por %p215, %p216
      %p218 = scmp.ne.s32.totalorder %s206, %s207
      %p219 = scmp.eq.s32.totalorder %s29, 1
      %p220 = por %p218, %p219
      %p222 = scmp.ne.s32.totalorder %s207, %s221
      %p223 = scmp.eq.s32.totalorder %s29, 0
      %p224 = por %p222, %p223
      %s226 = sadd.s32 %s225, 1
      %p229 = scmp.eq.s32.totalorder %s23, 1
      %p230 = scmp.ne.s32.totalorder %s225, %s227
      %p231 = scmp.eq.s32.totalorder %s23, 0
      %p232 = por %p230, %p231
      %p233 = scmp.ne.s32.totalorder %s225, %s227
      %p234 = scmp.eq.s32.totalorder %s28, 1
      %p235 = por %p233, %p234
      %p236 = scmp.ne.s32.totalorder %s227, %s228
      %p237 = scmp.eq.s32.totalorder %s28, 0
      %p238 = por %p236, %p237
      %p239 = scmp.ne.s32.totalorder %s227, %s228
      %p240 = scmp.eq.s32.totalorder %s29, 1
      %p241 = por %p239, %p240
      %p243 = scmp.ne.s32.totalorder %s228, %s242
      %p244 = scmp.eq.s32.totalorder %s29, 0
      %p245 = por %p243, %p244
      %s247 = sadd.s32 %s246, 1
      %p250 = scmp.eq.s32.totalorder %s23, 1
      %p251 = scmp.ne.s32.totalorder %s246, %s248
      %p252 = scmp.eq.s32.totalorder %s23, 0
      %p253 = por %p251, %p252
      %p254 = scmp.ne.s32.totalorder %s246, %s248
      %p255 = scmp.eq.s32.totalorder %s28, 1
      %p256 = por %p254, %p255
      %p257 = scmp.ne.s32.totalorder %s248, %s249
      %p258 = scmp.eq.s32.totalorder %s28, 0
      %p259 = por %p257, %p258
      %p260 = scmp.ne.s32.totalorder %s248, %s249
      %p261 = scmp.eq.s32.totalorder %s29, 1
      %p262 = por %p260, %p261
      %p264 = scmp.ne.s32.totalorder %s249, %s263
      %p265 = scmp.eq.s32.totalorder %s29, 0
      %p266 = por %p264, %p265
      %s268 = sadd.s32 %s267, 1
      %p271 = scmp.eq.s32.totalorder %s23, 1
      %p272 = scmp.ne.s32.totalorder %s267, %s269
      %p273 = scmp.eq.s32.totalorder %s23, 0
      %p274 = por %p272, %p273
      %p275 = scmp.ne.s32.totalorder %s267, %s269
      %p276 = scmp.eq.s32.totalorder %s28, 1
      %p277 = por %p275, %p276
      %p278 = scmp.ne.s32.totalorder %s269, %s270
      %p279 = scmp.eq.s32.totalorder %s28, 0
      %p280 = por %p278, %p279
      %p281 = scmp.ne.s32.totalorder %s269, %s270
      %p282 = scmp.eq.s32.totalorder %s29, 1
      %p283 = por %p281, %p282
      %p285 = scmp.ne.s32.totalorder %s270, %s284
      %p286 = scmp.eq.s32.totalorder %s29, 0
      %p287 = por %p285, %p286
      %s289 = sadd.s32 %s288, 1
      %p292 = scmp.eq.s32.totalorder %s23, 1
      %p293 = scmp.ne.s32.totalorder %s288, %s290
      %p294 = scmp.eq.s32.totalorder %s23, 0
      %p295 = por %p293, %p294
      %p296 = scmp.ne.s32.totalorder %s288, %s290
      %p297 = scmp.eq.s32.totalorder %s28, 1
      %p298 = por %p296, %p297
      %p299 = scmp.ne.s32.totalorder %s290, %s291
      %p300 = scmp.eq.s32.totalorder %s28, 0
      %p301 = por %p299, %p300
      %p302 = scmp.ne.s32.totalorder %s290, %s291
      %p303 = scmp.eq.s32.totalorder %s29, 1
      %p304 = por %p302, %p303
      %p306 = scmp.ne.s32.totalorder %s291, %s305
      %p307 = scmp.eq.s32.totalorder %s29, 0
      %p308 = por %p306, %p307
      %s310 = sadd.s32 %s309, 1
      %p313 = scmp.eq.s32.totalorder %s23, 1
      %p314 = scmp.ne.s32.totalorder %s309, %s311
      %p315 = scmp.eq.s32.totalorder %s23, 0
      %p316 = por %p314, %p315
      %p317 = scmp.ne.s32.totalorder %s309, %s311
      %p318 = scmp.eq.s32.totalorder %s28, 1
      %p319 = por %p317, %p318
      %p320 = scmp.ne.s32.totalorder %s311, %s312
      %p321 = scmp.eq.s32.totalorder %s28, 0
      %p322 = por %p320, %p321
      %p323 = scmp.ne.s32.totalorder %s311, %s312
      %p324 = scmp.eq.s32.totalorder %s29, 1
      %p325 = por %p323, %p324
      %p327 = scmp.ne.s32.totalorder %s312, %s326
      %p328 = scmp.eq.s32.totalorder %s29, 0
      %p329 = por %p327, %p328
      %s330 = ssub.s32 %s23, %s30
      %p331 = scmp.eq.s32.totalorder %s330, 0
      %s333 = sadd.s32 %s332, 1
      %s334 = scalar_select %p331, %s332, %s333
      %p337 = pneg %p331
      %p338 = scmp.eq.s32.totalorder %s23, 1
      %p339 = por %p337, %p338
      %p340 = scmp.ne.s32.totalorder %s332, %s335
      %p341 = scmp.eq.s32.totalorder %s23, 0
      %p342 = por %p340, %p341
      %p343 = scmp.ne.s32.totalorder %s332, %s335
      %p344 = scmp.eq.s32.totalorder %s28, 1
      %p345 = por %p343, %p344
      %p346 = scmp.ne.s32.totalorder %s335, %s336
      %p347 = scmp.eq.s32.totalorder %s28, 0
      %p348 = por %p346, %p347
      %p349 = scmp.ne.s32.totalorder %s335, %s336
      %p350 = scmp.eq.s32.totalorder %s29, 1
      %p351 = por %p349, %p350
      %p353 = scmp.ne.s32.totalorder %s336, %s352
      %p354 = scmp.eq.s32.totalorder %s29, 0
      %p355 = por %p353, %p354
      %p356 = scmp.le.s32.totalorder 1, %s23
      %p357 = scmp.lt.s32.totalorder %s23, 3
      %p358 = pnand %p356, %p357
      %p359 = pneg %p358
      // Predicated region
      $region9: #{tpu_custom_call.1} parent=5 // pred_check
        _
      $region10: #{tpu_custom_call.1} parent=5 // pred_check_branch
        %361 = sbr.rel (%p358) target = $region12
      $region11: #{tpu_custom_call.1} parent=5 // pred_region
        %s362 = ssub.s32 %s23, 1
        // Predicated region
        $region13: #{tpu_custom_call.1} parent=11 // pred_check
          %p363 = pneg %p70
        $region14: #{tpu_custom_call.1} parent=11 // pred_check_branch
          %365 = sbr.rel (%p363) target = $region16
        $region15: #{tpu_custom_call.1} parent=11 // pred_region
          _
        $region16: #{tpu_custom_call.1} parent=11 // pred_fallthru
          _
        // Predicated region
        $region17: #{tpu_custom_call.1} parent=11 // pred_check
          %p366 = pneg %p91
        $region18: #{tpu_custom_call.1} parent=11 // pred_check_branch
          %368 = sbr.rel (%p366) target = $region20
        $region19: #{tpu_custom_call.1} parent=11 // pred_region
          _
        $region20: #{tpu_custom_call.1} parent=11 // pred_fallthru
          _
        // Predicated region
        $region21: #{tpu_custom_call.1} parent=11 // pred_check
          %p369 = pneg %p112
        $region22: #{tpu_custom_call.1} parent=11 // pred_check_branch
          %371 = sbr.rel (%p369) target = $region24
        $region23: #{tpu_custom_call.1} parent=11 // pred_region
          _
        $region24: #{tpu_custom_call.1} parent=11 // pred_fallthru
          _
        // Predicated region
        $region25: #{tpu_custom_call.1} parent=11 // pred_check
          %p372 = pneg %p133
        $region26: #{tpu_custom_call.1} parent=11 // pred_check_branch
          %374 = sbr.rel (%p372) target = $region28
        $region27: #{tpu_custom_call.1} parent=11 // pred_region
          _
        $region28: #{tpu_custom_call.1} parent=11 // pred_fallthru
          _
        // Predicated region
        $region29: #{tpu_custom_call.1} parent=11 // pred_check
          %p375 = pneg %p154
        $region30: #{tpu_custom_call.1} parent=11 // pred_check_branch
          %377 = sbr.rel (%p375) target = $region32
        $region31: #{tpu_custom_call.1} parent=11 // pred_region
          _
        $region32: #{tpu_custom_call.1} parent=11 // pred_fallthru
          _
        // Predicated region
        $region33: #{tpu_custom_call.1} parent=11 // pred_check
          %p378 = pneg %p175
        $region34: #{tpu_custom_call.1} parent=11 // pred_check_branch
          %380 = sbr.rel (%p378) target = $region36
        $region35: #{tpu_custom_call.1} parent=11 // pred_region
          _
        $region36: #{tpu_custom_call.1} parent=11 // pred_fallthru
          _
        // Predicated region
        $region37: #{tpu_custom_call.1} parent=11 // pred_check
          %p381 = pneg %p196
        $region38: #{tpu_custom_call.1} parent=11 // pred_check_branch
          %383 = sbr.rel (%p381) target = $region40
        $region39: #{tpu_custom_call.1} parent=11 // pred_region
          _
        $region40: #{tpu_custom_call.1} parent=11 // pred_fallthru
          _
        // Predicated region
        $region41: #{tpu_custom_call.1} parent=11 // pred_check
          %p384 = pneg %p217
        $region42: #{tpu_custom_call.1} parent=11 // pred_check_branch
          %386 = sbr.rel (%p384) target = $region44
        $region43: #{tpu_custom_call.1} parent=11 // pred_region
          _
        $region44: #{tpu_custom_call.1} parent=11 // pred_fallthru
          _
        // Predicated region
        $region45: #{tpu_custom_call.1} parent=11 // pred_check
          %p387 = pneg %p238
        $region46: #{tpu_custom_call.1} parent=11 // pred_check_branch
          %389 = sbr.rel (%p387) target = $region48
        $region47: #{tpu_custom_call.1} parent=11 // pred_region
          _
        $region48: #{tpu_custom_call.1} parent=11 // pred_fallthru
          _
        // Predicated region
        $region49: #{tpu_custom_call.1} parent=11 // pred_check
          %p390 = pneg %p259
        $region50: #{tpu_custom_call.1} parent=11 // pred_check_branch
          %392 = sbr.rel (%p390) target = $region52
        $region51: #{tpu_custom_call.1} parent=11 // pred_region
          _
        $region52: #{tpu_custom_call.1} parent=11 // pred_fallthru
          _
        // Predicated region
        $region53: #{tpu_custom_call.1} parent=11 // pred_check
          %p393 = pneg %p280
        $region54: #{tpu_custom_call.1} parent=11 // pred_check_branch
          %395 = sbr.rel (%p393) target = $region56
        $region55: #{tpu_custom_call.1} parent=11 // pred_region
          _
        $region56: #{tpu_custom_call.1} parent=11 // pred_fallthru
          _
        // Predicated region
        $region57: #{tpu_custom_call.1} parent=11 // pred_check
          %p396 = pneg %p301
        $region58: #{tpu_custom_call.1} parent=11 // pred_check_branch
          %398 = sbr.rel (%p396) target = $region60
        $region59: #{tpu_custom_call.1} parent=11 // pred_region
          _
        $region60: #{tpu_custom_call.1} parent=11 // pred_fallthru
          _
        // Predicated region
        $region61: #{tpu_custom_call.1} parent=11 // pred_check
          %p399 = pneg %p322
        $region62: #{tpu_custom_call.1} parent=11 // pred_check_branch
          %401 = sbr.rel (%p399) target = $region64
        $region63: #{tpu_custom_call.1} parent=11 // pred_region
          _
        $region64: #{tpu_custom_call.1} parent=11 // pred_fallthru
          _
      $region12: #{tpu_custom_call.1} parent=5 // pred_fallthru
        _
      %p402 = scmp.lt.s32.totalorder %s23, 2
      // Predicated region
      $region65: #{tpu_custom_call.1} parent=5 // pred_check
        %p403 = pneg %p402
      $region66: #{tpu_custom_call.1} parent=5 // pred_check_branch
        %405 = sbr.rel (%p403) target = $region68
      $region67: #{tpu_custom_call.1} parent=5 // pred_region
        // Predicated region
        $region69: #{tpu_custom_call.1} parent=67 // pred_check
          %p406 = pneg %p43
        $region70: #{tpu_custom_call.1} parent=67 // pred_check_branch
          %408 = sbr.rel (%p406) target = $region72
        $region71: #{tpu_custom_call.1} parent=67 // pred_region
          %s409 = smul.u32 4, %s23
          %p410 = scmp.lt.s32.totalorder %s409, 7
          %s411 = scalar_select %p410, %s409, 7
          %s412 = smul.addr %s411, 8
          %s413 = scalar_lea.vmem %s0, %s412
          %s414 = smul.u32 4, %s23
        $region72: #{tpu_custom_call.1} parent=67 // pred_fallthru
          _
      $region68: #{tpu_custom_call.1} parent=5 // pred_fallthru
        _
      %p415 = scmp.le.s32.totalorder 1, %s23
      %p416 = scmp.lt.s32.totalorder %s23, 3
      %p417 = pnand %p415, %p416
      %p418 = pneg %p417
      // Predicated region
      $region73: #{tpu_custom_call.1} parent=5 // pred_check
        _
      $region74: #{tpu_custom_call.1} parent=5 // pred_check_branch
        %420 = sbr.rel (%p417) target = $region76
      $region75: #{tpu_custom_call.1} parent=5 // pred_region
        %s421 = ssub.s32 %s23, 1
        %s422 = smul.u32 4, %s28
        %p423 = scmp.lt.s32.totalorder %s422, 7
        %s424 = scalar_select %p423, %s422, 7
        %s425 = smul.addr %s424, 8
        %s426 = scalar_lea.vmem %s0, %s425
        %p427 = pneg %p49
        %p428 = pneg %p46
        %p429 = pneg %p70
        %p430 = pneg %p67
        %p431 = pneg %p91
        %p432 = pneg %p88
        %p433 = pneg %p112
        %p434 = pneg %p109
        %p435 = pneg %p133
        %p436 = pneg %p130
        %p437 = pneg %p154
        %p438 = pneg %p151
        %p439 = pneg %p175
        %p440 = pneg %p172
        %p441 = pneg %p196
        %p442 = pneg %p193
        %p443 = pneg %p217
        %p444 = pneg %p214
        %p445 = pneg %p238
        %p446 = pneg %p235
        %p447 = pneg %p259
        %p448 = pneg %p256
        %p449 = pneg %p280
        %p450 = pneg %p277
        %p451 = pneg %p301
        %p452 = pneg %p298
        %p453 = pneg %p322
        %p454 = pneg %p319
        %p455 = pneg %p348
        %p456 = pneg %p345
        %s457 = sand.u32 %s335, 1
        %s458 = scalar_lea.sflag [#allocation3], %s457
        %s459 = sand.u32 %s335, 1
        %s460 = smul.addr %s459, 32
        %s461 = scalar_lea.vmem [#allocation2], %s460
        %s462 = smul.u32 4, %s28
        %p463 = scmp.lt.s32.totalorder %s462, 7
        %s464 = scalar_select %p463, %s462, 7
        %s465 = smul.addr %s464, 8
        %s466 = scalar_lea.vmem %s0, %s465
        %s467 = smul.u32 4, %s28
        %s468 = smul.u32 4, %s28
        %v470 = vld [vmem:[%s466] sm:$0xff]
        %v471 = vld [vmem:[%s466 + $0x8] sm:$0xff]
        %v472 = vld [vmem:[%s466 + $0x10] sm:$0xff]
        %v473 = vld [vmem:[%s466 + $0x18] sm:$0xff]
        %v474 = vpack.c.bf16 %v471, %v470
        %v475 = vpack.c.bf16 %v473, %v472
        %v476 = vld [vmem:[%s1] sm:$0xf]
        %v477 = vld [vmem:[%s1 + $0x4] sm:$0xf]
        %v478 = vld [vmem:[%s1 + $0x8] sm:$0xf]
        %v479 = vld [vmem:[%s1 + $0xc] sm:$0xf]
        %v480 = vld [vmem:[%s2] sm:$0x1]
        %v482 = vlaneseq
        %v483 = vshrl.u32 %v482, 7
        %v484 = vsub.s32 0, %v483
        %v485 = vrot.slane %v480, %v484
        %v491 = vunpack.c.l.b16 %v476
        %v492 = vunpack.c.l.b16 %v477
        %v493 = vunpack.c.l.b16 %v478
        %v494 = vunpack.c.l.b16 %v479
        %v495 = vpack.c.b16 %v492, %v491
        %v496 = vpack.c.b16 %v494, %v493
        %vm499 = vcmask 261120
        %v501 = vsel %vm499, %v474, 0
        %v504 = vsel %vm499, %v475, 0
        %506 = vmatprep.subr.bf16.mxu0 0
        %507 = vmatpush1.bf16.msra.mxu0 0
        %508 = vmatprep.subr.bf16.mxu0 0
        %509 = vmatpush1.bf16.msra.mxu0 0
        %510 = vmatprep.subr.bf16.mxu0 0
        %511 = vmatpush1.bf16.msra.mxu0 0
        %512 = vmatprep.subr.bf16.mxu0 0
        %513 = vmatpush1.bf16.msra.mxu0 0
        %514 = vmatprep.subr.bf16.mxu0 0
        %515 = vmatpush1.bf16.msra.mxu0 0
        %516 = vmatprep.subr.bf16.mxu0 0
        %517 = vmatpush1.bf16.msra.mxu0 0
        %518 = vmatprep.subr.bf16.mxu0 0
        %519 = vmatpush1.bf16.msra.mxu0 %v496
        %520 = vmatprep.subr.bf16.mxu0 0
        %521 = vmatpush1.bf16.msra.mxu0 %v495
        %522 = vmatprep.subr.bf16.mxu0 0
        %523 = vmatpush2.bf16.msra.mxu0 0
        %524 = vmatprep.subr.bf16.mxu0 0
        %525 = vmatpush2.bf16.msra.mxu0 0
        %526 = vmatprep.subr.bf16.mxu0 0
        %527 = vmatpush2.bf16.msra.mxu0 0
        %528 = vmatprep.subr.bf16.mxu0 0
        %529 = vmatpush2.bf16.msra.mxu0 0
        %530 = vmatprep.subr.bf16.mxu0 0
        %531 = vmatpush2.bf16.msra.mxu0 0
        %532 = vmatprep.subr.bf16.mxu0 0
        %533 = vmatpush2.bf16.msra.mxu0 0
        %534 = vmatprep.subr.bf16.mxu0 0
        %535 = vmatpush2.bf16.msra.mxu0 0
        %536 = vmatprep.subr.bf16.mxu0 0
        %537 = vmatpush2.bf16.msra.mxu0 0
        %538 = vmatprep.mubr.bf16.mxu0 0
        %539 = vmatmul.mubr.bf16.gmra.mxu0 %v501
        %v540 = vpop.f32.mrf.mxu0
        %v541 = vadd.f32 %v485, %v540
        %v542 = vpop.f32.mrf.mxu0
        %v543 = vpop.f32.mrf.mxu0
        %v544 = vadd.f32 %v485, %v543
        %v545 = vpop.f32.mrf.mxu0
        %546 = vmatprep.mubr.bf16.mxu0 0
        %547 = vmatmul.mubr.bf16.gmra.mxu0 %v504
        %v548 = vpop.f32.mrf.mxu0
        %v549 = vadd.f32 %v485, %v548
        %v550 = vpop.f32.mrf.mxu0
        %v551 = vpop.f32.mrf.mxu0
        %v552 = vadd.f32 %v485, %v551
        %v553 = vpop.f32.mrf.mxu0
        %554 = vdwg.mxu0
        %v555 = vld [vmem:[%s4] sm:$0x1]
        %v556 = vld [vmem:[%s5] sm:$0xf]
        %v557 = vmul.f32 %v541, %v541
        %v558 = vmul.f32 %v544, %v544
        %v559 = vmul.f32 %v549, %v549
        %v560 = vmul.f32 %v552, %v552
        %vm561 = vcmask 523264
        %v562 = vsel %vm561, %v557, 0.0
        %563 = vadd.xlane.f32.xlu0 %v562
        %v564 = vpop.xlane.xlu0 %563
        %v565 = vsel %vm561, %v558, 0.0
        %566 = vadd.xlane.f32.xlu0 %v565
        %v567 = vpop.xlane.xlu0 %566
        %v568 = vsel %vm561, %v559, 0.0
        %569 = vadd.xlane.f32.xlu0 %v568
        %v570 = vpop.xlane.xlu0 %569
        %v571 = vsel %vm561, %v560, 0.0
        %572 = vadd.xlane.f32.xlu0 %v571
        %v573 = vpop.xlane.xlu0 %572
        %v574 = vrcp.pop 64.0
        %v575 = vmul.f32 %v564, %v574
        %v576 = vmul.f32 %v567, %v574
        %v577 = vmul.f32 %v570, %v574
        %v578 = vmul.f32 %v573, %v574
        %v579 = vadd.f32 %v575, 1.1920929e-07
        %v580 = vadd.f32 %v576, 1.1920929e-07
        %v581 = vadd.f32 %v577, 1.1920929e-07
        %v582 = vadd.f32 %v578, 1.1920929e-07
        %v583 = vrsqrt.pop %v579
        %v584 = vrsqrt.pop %v580
        %v585 = vrsqrt.pop %v581
        %v586 = vrsqrt.pop %v582
        %v587 = vmul.f32 %v541, %v583
        %v588 = vmul.f32 %v544, %v584
        %v589 = vmul.f32 %v549, %v585
        %v590 = vmul.f32 %v552, %v586
        %v591 = vld [vmem:[%s3] sm:$0xff]
        %v592 = vld [vmem:[%s3 + $0x8] sm:$0xff]
        %v593 = vld [vmem:[%s3 + $0x10] sm:$0xff]
        %v594 = vld [vmem:[%s3 + $0x18] sm:$0xff]
        %v595 = vld [vmem:[%s3 + $0x20] sm:$0xff]
        %v596 = vld [vmem:[%s3 + $0x28] sm:$0xff]
        %v597 = vld [vmem:[%s3 + $0x30] sm:$0xff]
        %v598 = vld [vmem:[%s3 + $0x38] sm:$0xff]
        %v600 = vsel %vm561, %v587, 0
        %v603 = vsel %vm561, %v588, 0
        %v606 = vsel %vm561, %v589, 0
        %v609 = vsel %vm561, %v590, 0
        %611 = vmatprep.subr.mxu0 0.0
        %612 = vmatpush1.msra.mxu0 0.0
        %613 = vmatprep.subr.mxu0 0.0
        %614 = vmatpush1.msra.mxu0 0.0
        %615 = vmatprep.subr.mxu0 0.0
        %616 = vmatpush1.msra.mxu0 0.0
        %617 = vmatprep.subr.mxu0 0.0
        %618 = vmatpush1.msra.mxu0 0.0
        %619 = vmatprep.subr.mxu0 0.0
        %620 = vmatpush1.msra.mxu0 0.0
        %621 = vmatprep.subr.mxu0 0.0
        %622 = vmatpush1.msra.mxu0 0.0
        %623 = vmatprep.subr.mxu0 0.0
        %624 = vmatpush1.msra.mxu0 0.0
        %625 = vmatprep.subr.mxu0 0.0
        %626 = vmatpush1.msra.mxu0 0.0
        %627 = vmatprep.subr.mxu0 0.0
        %628 = vmatpush1.msra.mxu0 %v598
        %629 = vmatprep.subr.mxu0 0.0
        %630 = vmatpush1.msra.mxu0 %v597
        %631 = vmatprep.subr.mxu0 0.0
        %632 = vmatpush1.msra.mxu0 %v596
        %633 = vmatprep.subr.mxu0 0.0
        %634 = vmatpush1.msra.mxu0 %v595
        %635 = vmatprep.subr.mxu0 0.0
        %636 = vmatpush1.msra.mxu0 %v594
        %637 = vmatprep.subr.mxu0 0.0
        %638 = vmatpush1.msra.mxu0 %v593
        %639 = vmatprep.subr.mxu0 0.0
        %640 = vmatpush1.msra.mxu0 %v592
        %641 = vmatprep.subr.mxu0 0.0
        %642 = vmatpush1.msra.mxu0 %v591
        %643 = vmatprep.subr.mxu0 0.0
        %644 = vmatpush2.msra.mxu0 0.0
        %645 = vmatprep.subr.mxu0 0.0
        %646 = vmatpush2.msra.mxu0 0.0
        %647 = vmatprep.subr.mxu0 0.0
        %648 = vmatpush2.msra.mxu0 0.0
        %649 = vmatprep.subr.mxu0 0.0
        %650 = vmatpush2.msra.mxu0 0.0
        %651 = vmatprep.subr.mxu0 0.0
        %652 = vmatpush2.msra.mxu0 0.0
        %653 = vmatprep.subr.mxu0 0.0
        %654 = vmatpush2.msra.mxu0 0.0
        %655 = vmatprep.subr.mxu0 0.0
        %656 = vmatpush2.msra.mxu0 0.0
        %657 = vmatprep.subr.mxu0 0.0
        %658 = vmatpush2.msra.mxu0 0.0
        %659 = vmatprep.subr.mxu0 0.0
        %660 = vmatpush2.msra.mxu0 0.0
        %661 = vmatprep.subr.mxu0 0.0
        %662 = vmatpush2.msra.mxu0 0.0
        %663 = vmatprep.subr.mxu0 0.0
        %664 = vmatpush2.msra.mxu0 0.0
        %665 = vmatprep.subr.mxu0 0.0
        %666 = vmatpush2.msra.mxu0 0.0
        %667 = vmatprep.subr.mxu0 0.0
        %668 = vmatpush2.msra.mxu0 0.0
        %669 = vmatprep.subr.mxu0 0.0
        %670 = vmatpush2.msra.mxu0 0.0
        %671 = vmatprep.subr.mxu0 0.0
        %672 = vmatpush2.msra.mxu0 0.0
        %673 = vmatprep.subr.mxu0 0.0
        %674 = vmatpush2.msra.mxu0 0.0
        %675 = vmatprep.mubr.f32.mxu0 0.0
        %676 = vmatmul.mubr.f32.gmra.mxu0 %v600
        %v677 = vpop.f32.mrf.mxu0
        %v678 = vadd.f32 0.0, %v677
        %v679 = vpop.f32.mrf.mxu0
        %680 = vmatprep.mubr.f32.mxu0 0.0
        %681 = vmatmul.mubr.f32.gmra.mxu0 %v603
        %v682 = vpop.f32.mrf.mxu0
        %v683 = vadd.f32 0.0, %v682
        %v684 = vpop.f32.mrf.mxu0
        %685 = vmatprep.mubr.f32.mxu0 0.0
        %686 = vmatmul.mubr.f32.gmra.mxu0 %v606
        %v687 = vpop.f32.mrf.mxu0
        %v688 = vadd.f32 0.0, %v687
        %v689 = vpop.f32.mrf.mxu0
        %690 = vmatprep.mubr.f32.mxu0 0.0
        %691 = vmatmul.mubr.f32.gmra.mxu0 %v609
        %v692 = vpop.f32.mrf.mxu0
        %v693 = vadd.f32 0.0, %v692
        %v694 = vpop.f32.mrf.mxu0
        %695 = vdwg.mxu0
        %v696 = vtanh.pop %v678
        %v697 = vtanh.pop %v683
        %v698 = vtanh.pop %v688
        %v699 = vtanh.pop %v693
        %v700 = vlaneseq
        %v701 = vshrl.u32 %v700, 7
        %v702 = vsub.s32 0, %v701
        %v703 = vrot.slane %v555, %v702
        %v704 = vmul.f32 %v696, %v703
        %v705 = vmul.f32 %v697, %v703
        %v706 = vmul.f32 %v698, %v703
        %v707 = vmul.f32 %v699, %v703
        %v708 = vlaneseq
        %v709 = vshrl.u32 %v708, 7
        %v710 = vsub.s32 0, %v709
        %v711 = vrot.slane %v556, %v710
        %v712 = vadd.f32 %v704, %v711
        %v713 = vadd.f32 %v705, %v711
        %v714 = vadd.f32 %v706, %v711
        %v715 = vadd.f32 %v707, %v711
        %v716 = vlaneseq
        %v717 = vshrl.u32 %v716, 7
        %v718 = vsub.s32 1, %v717
        %v719 = vrot.slane %v556, %v718
        %v720 = vadd.f32 %v704, %v719
        %v721 = vadd.f32 %v705, %v719
        %v722 = vadd.f32 %v706, %v719
        %v723 = vadd.f32 %v707, %v719
        %v724 = vlaneseq
        %v725 = vshrl.u32 %v724, 7
        %v726 = vsub.s32 2, %v725
        %v727 = vrot.slane %v556, %v726
        %v728 = vadd.f32 %v704, %v727
        %v729 = vadd.f32 %v705, %v727
        %v730 = vadd.f32 %v706, %v727
        %v731 = vadd.f32 %v707, %v727
        %v732 = vlaneseq
        %v733 = vshrl.u32 %v732, 7
        %v734 = vsub.s32 3, %v733
        %v735 = vrot.slane %v556, %v734
        %v736 = vadd.f32 %v704, %v735
        %v737 = vadd.f32 %v705, %v735
        %v738 = vadd.f32 %v706, %v735
        %v739 = vadd.f32 %v707, %v735
        %v740 = vadd.f32 %v712, %v720
        %v741 = vadd.f32 %v713, %v721
        %v742 = vadd.f32 %v714, %v722
        %v743 = vadd.f32 %v715, %v723
        %v744 = vadd.f32 %v740, %v728
        %v745 = vadd.f32 %v741, %v729
        %v746 = vadd.f32 %v742, %v730
        %v747 = vadd.f32 %v743, %v731
        %v748 = vadd.f32 %v744, %v736
        %v749 = vadd.f32 %v745, %v737
        %v750 = vadd.f32 %v746, %v738
        %v751 = vadd.f32 %v747, %v739
        %753 = vset.pattern.permute.xlu0 0
        %754 = vperm.xlu0 %753, %v748
        %v755 = vpop.permute.xlu0 %754
        %758 = vset.pattern.permute.xlu0 0
        %759 = vperm.xlu0 %758, %v749
        %v760 = vpop.permute.xlu0 %759
        %763 = vset.pattern.permute.xlu0 0
        %764 = vperm.xlu0 %763, %v750
        %v765 = vpop.permute.xlu0 %764
        %768 = vset.pattern.permute.xlu0 0
        %769 = vperm.xlu0 %768, %v751
        %v770 = vpop.permute.xlu0 %769
        %v772 = vmul.f32 %v755, %v541
        %v773 = vmul.f32 %v760, %v544
        %v774 = vmul.f32 %v765, %v549
        %v775 = vmul.f32 %v770, %v552
        %776 = vset.pattern.permute.xlu0 1
        %777 = vperm.xlu0 %776, %v748
        %v778 = vpop.permute.xlu0 %777
        %780 = vset.pattern.permute.xlu0 1
        %781 = vperm.xlu0 %780, %v749
        %v782 = vpop.permute.xlu0 %781
        %784 = vset.pattern.permute.xlu0 1
        %785 = vperm.xlu0 %784, %v750
        %v786 = vpop.permute.xlu0 %785
        %788 = vset.pattern.permute.xlu0 1
        %789 = vperm.xlu0 %788, %v751
        %v790 = vpop.permute.xlu0 %789
        %v792 = vmul.f32 %v778, %v541
        %v793 = vmul.f32 %v782, %v544
        %v794 = vmul.f32 %v786, %v549
        %v795 = vmul.f32 %v790, %v552
        %796 = vset.pattern.permute.xlu0 2
        %797 = vperm.xlu0 %796, %v748
        %v798 = vpop.permute.xlu0 %797
        %800 = vset.pattern.permute.xlu0 2
        %801 = vperm.xlu0 %800, %v749
        %v802 = vpop.permute.xlu0 %801
        %804 = vset.pattern.permute.xlu0 2
        %805 = vperm.xlu0 %804, %v750
        %v806 = vpop.permute.xlu0 %805
        %808 = vset.pattern.permute.xlu0 2
        %809 = vperm.xlu0 %808, %v751
        %v810 = vpop.permute.xlu0 %809
        %v812 = vmul.f32 %v798, %v541
        %v813 = vmul.f32 %v802, %v544
        %v814 = vmul.f32 %v806, %v549
        %v815 = vmul.f32 %v810, %v552
        %816 = vset.pattern.permute.xlu0 3
        %817 = vperm.xlu0 %816, %v748
        %v818 = vpop.permute.xlu0 %817
        %820 = vset.pattern.permute.xlu0 3
        %821 = vperm.xlu0 %820, %v749
        %v822 = vpop.permute.xlu0 %821
        %824 = vset.pattern.permute.xlu0 3
        %825 = vperm.xlu0 %824, %v750
        %v826 = vpop.permute.xlu0 %825
        %828 = vset.pattern.permute.xlu0 3
        %829 = vperm.xlu0 %828, %v751
        %v830 = vpop.permute.xlu0 %829
        %v832 = vmul.f32 %v818, %v541
        %v833 = vmul.f32 %v822, %v544
        %v834 = vmul.f32 %v826, %v549
        %v835 = vmul.f32 %v830, %v552
        %836 = vset.pattern.permute.xlu0 4
        %837 = vperm.xlu0 %836, %v748
        %v838 = vpop.permute.xlu0 %837
        %840 = vset.pattern.permute.xlu0 4
        %841 = vperm.xlu0 %840, %v749
        %v842 = vpop.permute.xlu0 %841
        %844 = vset.pattern.permute.xlu0 4
        %845 = vperm.xlu0 %844, %v750
        %v846 = vpop.permute.xlu0 %845
        %848 = vset.pattern.permute.xlu0 4
        %849 = vperm.xlu0 %848, %v751
        %v850 = vpop.permute.xlu0 %849
        %v852 = vmul.f32 %v838, %v541
        %v853 = vmul.f32 %v842, %v544
        %v854 = vmul.f32 %v846, %v549
        %v855 = vmul.f32 %v850, %v552
        %v856 = vmul.f32 %v772, %v772
        %v857 = vmul.f32 %v773, %v773
        %v858 = vmul.f32 %v774, %v774
        %v859 = vmul.f32 %v775, %v775
        %v860 = vsel %vm561, %v856, 0.0
        %861 = vadd.xlane.f32.xlu0 %v860
        %v862 = vpop.xlane.xlu0 %861
        %v863 = vsel %vm561, %v857, 0.0
        %864 = vadd.xlane.f32.xlu0 %v863
        %v865 = vpop.xlane.xlu0 %864
        %v866 = vsel %vm561, %v858, 0.0
        %867 = vadd.xlane.f32.xlu0 %v866
        %v868 = vpop.xlane.xlu0 %867
        %v869 = vsel %vm561, %v859, 0.0
        %870 = vadd.xlane.f32.xlu0 %v869
        %v871 = vpop.xlane.xlu0 %870
        %v872 = vmul.f32 %v862, %v574
        %v873 = vmul.f32 %v865, %v574
        %v874 = vmul.f32 %v868, %v574
        %v875 = vmul.f32 %v871, %v574
        %v876 = vadd.f32 %v872, 1.1920929e-07
        %v877 = vadd.f32 %v873, 1.1920929e-07
        %v878 = vadd.f32 %v874, 1.1920929e-07
        %v879 = vadd.f32 %v875, 1.1920929e-07
        %v880 = vrsqrt.pop %v876
        %v881 = vrsqrt.pop %v877
        %v882 = vrsqrt.pop %v878
        %v883 = vrsqrt.pop %v879
        %v884 = vmul.f32 %v772, %v880
        %v885 = vmul.f32 %v773, %v881
        %v886 = vmul.f32 %v774, %v882
        %v887 = vmul.f32 %v775, %v883
        %v888 = vpack.c.bf16 %v885, %v884
        %v889 = vpack.c.bf16 %v887, %v886
        %v890 = vld [vmem:[%s6] sm:$0xf]
        %v891 = vld [vmem:[%s6 + $0x4] sm:$0xf]
        %v892 = vld [vmem:[%s6 + $0x8] sm:$0xf]
        %v893 = vld [vmem:[%s6 + $0xc] sm:$0xf]
        %v894 = vld [vmem:[%s6 + $0x10] sm:$0xf]
        %v895 = vld [vmem:[%s6 + $0x14] sm:$0xf]
        %v896 = vld [vmem:[%s6 + $0x18] sm:$0xf]
        %v897 = vld [vmem:[%s6 + $0x1c] sm:$0xf]
        %v898 = vld [vmem:[%s7] sm:$0x1]
        %v899 = vlaneseq
        %v900 = vshrl.u32 %v899, 7
        %v901 = vsub.s32 0, %v900
        %v902 = vrot.slane %v898, %v901
        %v911 = vunpack.c.l.b16 %v890
        %v912 = vunpack.c.l.b16 %v891
        %v913 = vunpack.c.l.b16 %v892
        %v914 = vunpack.c.l.b16 %v893
        %v915 = vunpack.c.l.b16 %v894
        %v916 = vunpack.c.l.b16 %v895
        %v917 = vunpack.c.l.b16 %v896
        %v918 = vunpack.c.l.b16 %v897
        %v919 = vpack.c.b16 %v912, %v911
        %v920 = vpack.c.b16 %v914, %v913
        %v921 = vpack.c.b16 %v916, %v915
        %v922 = vpack.c.b16 %v918, %v917
        %v928 = vsel %vm561, %v888, 0
        %v931 = vsel %vm561, %v889, 0
        %933 = vmatprep.subr.bf16.mxu0 0
        %934 = vmatpush1.bf16.msra.mxu0 0
        %935 = vmatprep.subr.bf16.mxu0 0
        %936 = vmatpush1.bf16.msra.mxu0 0
        %937 = vmatprep.subr.bf16.mxu0 0
        %938 = vmatpush1.bf16.msra.mxu0 0
        %939 = vmatprep.subr.bf16.mxu0 0
        %940 = vmatpush1.bf16.msra.mxu0 0
        %941 = vmatprep.subr.bf16.mxu0 0
        %942 = vmatpush1.bf16.msra.mxu0 %v922
        %943 = vmatprep.subr.bf16.mxu0 0
        %944 = vmatpush1.bf16.msra.mxu0 %v921
        %945 = vmatprep.subr.bf16.mxu0 0
        %946 = vmatpush1.bf16.msra.mxu0 %v920
        %947 = vmatprep.subr.bf16.mxu0 0
        %948 = vmatpush1.bf16.msra.mxu0 %v919
        %949 = vmatprep.subr.bf16.mxu0 0
        %950 = vmatpush2.bf16.msra.mxu0 0
        %951 = vmatprep.subr.bf16.mxu0 0
        %952 = vmatpush2.bf16.msra.mxu0 0
        %953 = vmatprep.subr.bf16.mxu0 0
        %954 = vmatpush2.bf16.msra.mxu0 0
        %955 = vmatprep.subr.bf16.mxu0 0
        %956 = vmatpush2.bf16.msra.mxu0 0
        %957 = vmatprep.subr.bf16.mxu0 0
        %958 = vmatpush2.bf16.msra.mxu0 0
        %959 = vmatprep.subr.bf16.mxu0 0
        %960 = vmatpush2.bf16.msra.mxu0 0
        %961 = vmatprep.subr.bf16.mxu0 0
        %962 = vmatpush2.bf16.msra.mxu0 0
        %963 = vmatprep.subr.bf16.mxu0 0
        %964 = vmatpush2.bf16.msra.mxu0 0
        %965 = vmatprep.mubr.bf16.mxu0 0
        %966 = vmatmul.mubr.bf16.gmra.mxu0 %v928
        %v967 = vpop.f32.mrf.mxu0
        %v968 = vadd.f32 %v902, %v967
        %v969 = vpop.f32.mrf.mxu0
        %v970 = vpop.f32.mrf.mxu0
        %v971 = vadd.f32 %v902, %v970
        %v972 = vpop.f32.mrf.mxu0
        %973 = vmatprep.mubr.bf16.mxu0 0
        %974 = vmatmul.mubr.bf16.gmra.mxu0 %v931
        %v975 = vpop.f32.mrf.mxu0
        %v976 = vadd.f32 %v902, %v975
        %v977 = vpop.f32.mrf.mxu0
        %v978 = vpop.f32.mrf.mxu0
        %v979 = vadd.f32 %v902, %v978
        %v980 = vpop.f32.mrf.mxu0
        %981 = vdwg.mxu0
        %v982 = vmax.f32 %v968, 0.0
        %v983 = vmax.f32 %v971, 0.0
        %v984 = vmax.f32 %v976, 0.0
        %v985 = vmax.f32 %v979, 0.0
        %v986 = vmul.f32 %v982, %v982
        %v987 = vmul.f32 %v983, %v983
        %v988 = vmul.f32 %v984, %v984
        %v989 = vmul.f32 %v985, %v985
        %v990 = vpack.c.bf16 %v987, %v986
        %v991 = vpack.c.bf16 %v989, %v988
        %v992 = vld [vmem:[%s8] sm:$0xf]
        %v993 = vld [vmem:[%s8 + $0x4] sm:$0xf]
        %v994 = vld [vmem:[%s8 + $0x8] sm:$0xf]
        %v995 = vld [vmem:[%s8 + $0xc] sm:$0xf]
        %v996 = vld [vmem:[%s8 + $0x10] sm:$0xf]
        %v997 = vld [vmem:[%s8 + $0x14] sm:$0xf]
        %v998 = vld [vmem:[%s8 + $0x18] sm:$0xf]
        %v999 = vld [vmem:[%s8 + $0x1c] sm:$0xf]
        %v1000 = vld [vmem:[%s8 + $0x20] sm:$0xf]
        %v1001 = vld [vmem:[%s8 + $0x24] sm:$0xf]
        %v1002 = vld [vmem:[%s8 + $0x28] sm:$0xf]
        %v1003 = vld [vmem:[%s8 + $0x2c] sm:$0xf]
        %v1004 = vld [vmem:[%s8 + $0x30] sm:$0xf]
        %v1005 = vld [vmem:[%s8 + $0x34] sm:$0xf]
        %v1006 = vld [vmem:[%s8 + $0x38] sm:$0xf]
        %v1007 = vld [vmem:[%s8 + $0x3c] sm:$0xf]
        %v1008 = vld [vmem:[%s9] sm:$0x1]
        %v1009 = vlaneseq
        %v1010 = vshrl.u32 %v1009, 7
        %v1011 = vsub.s32 0, %v1010
        %v1012 = vrot.slane %v1008, %v1011
        %v1029 = vunpack.c.l.b16 %v992
        %v1030 = vunpack.c.l.b16 %v993
        %v1031 = vunpack.c.l.b16 %v994
        %v1032 = vunpack.c.l.b16 %v995
        %v1033 = vunpack.c.l.b16 %v996
        %v1034 = vunpack.c.l.b16 %v997
        %v1035 = vunpack.c.l.b16 %v998
        %v1036 = vunpack.c.l.b16 %v999
        %v1037 = vunpack.c.l.b16 %v1000
        %v1038 = vunpack.c.l.b16 %v1001
        %v1039 = vunpack.c.l.b16 %v1002
        %v1040 = vunpack.c.l.b16 %v1003
        %v1041 = vunpack.c.l.b16 %v1004
        %v1042 = vunpack.c.l.b16 %v1005
        %v1043 = vunpack.c.l.b16 %v1006
        %v1044 = vunpack.c.l.b16 %v1007
        %v1045 = vpack.c.b16 %v1030, %v1029
        %v1046 = vpack.c.b16 %v1032, %v1031
        %v1047 = vpack.c.b16 %v1034, %v1033
        %v1048 = vpack.c.b16 %v1036, %v1035
        %v1049 = vpack.c.b16 %v1038, %v1037
        %v1050 = vpack.c.b16 %v1040, %v1039
        %v1051 = vpack.c.b16 %v1042, %v1041
        %v1052 = vpack.c.b16 %v1044, %v1043
        %1061 = vmatprep.subr.bf16.mxu0 0
        %1062 = vmatpush1.bf16.msra.mxu0 %v1052
        %1063 = vmatprep.subr.bf16.mxu0 0
        %1064 = vmatpush1.bf16.msra.mxu0 %v1051
        %1065 = vmatprep.subr.bf16.mxu0 0
        %1066 = vmatpush1.bf16.msra.mxu0 %v1050
        %1067 = vmatprep.subr.bf16.mxu0 0
        %1068 = vmatpush1.bf16.msra.mxu0 %v1049
        %1069 = vmatprep.subr.bf16.mxu0 0
        %1070 = vmatpush1.bf16.msra.mxu0 %v1048
        %1071 = vmatprep.subr.bf16.mxu0 0
        %1072 = vmatpush1.bf16.msra.mxu0 %v1047
        %1073 = vmatprep.subr.bf16.mxu0 0
        %1074 = vmatpush1.bf16.msra.mxu0 %v1046
        %1075 = vmatprep.subr.bf16.mxu0 0
        %1076 = vmatpush1.bf16.msra.mxu0 %v1045
        %1077 = vmatprep.subr.bf16.mxu0 0
        %1078 = vmatpush2.bf16.msra.mxu0 0
        %1079 = vmatprep.subr.bf16.mxu0 0
        %1080 = vmatpush2.bf16.msra.mxu0 0
        %1081 = vmatprep.subr.bf16.mxu0 0
        %1082 = vmatpush2.bf16.msra.mxu0 0
        %1083 = vmatprep.subr.bf16.mxu0 0
        %1084 = vmatpush2.bf16.msra.mxu0 0
        %1085 = vmatprep.subr.bf16.mxu0 0
        %1086 = vmatpush2.bf16.msra.mxu0 0
        %1087 = vmatprep.subr.bf16.mxu0 0
        %1088 = vmatpush2.bf16.msra.mxu0 0
        %1089 = vmatprep.subr.bf16.mxu0 0
        %1090 = vmatpush2.bf16.msra.mxu0 0
        %1091 = vmatprep.subr.bf16.mxu0 0
        %1092 = vmatpush2.bf16.msra.mxu0 0
        %1093 = vmatprep.mubr.bf16.mxu0 0
        %1094 = vmatmul.mubr.bf16.gmra.mxu0 %v990
        %v1095 = vpop.f32.mrf.mxu0
        %v1096 = vadd.f32 %v1012, %v1095
        %v1097 = vpop.f32.mrf.mxu0
        %v1098 = vpop.f32.mrf.mxu0
        %v1099 = vadd.f32 %v1012, %v1098
        %v1100 = vpop.f32.mrf.mxu0
        %1101 = vmatprep.mubr.bf16.mxu0 0
        %1102 = vmatmul.mubr.bf16.gmra.mxu0 %v991
        %v1103 = vpop.f32.mrf.mxu0
        %v1104 = vadd.f32 %v1012, %v1103
        %v1105 = vpop.f32.mrf.mxu0
        %v1106 = vpop.f32.mrf.mxu0
        %v1107 = vadd.f32 %v1012, %v1106
        %v1108 = vpop.f32.mrf.mxu0
        %1109 = vdwg.mxu0
        %1111 = vset.pattern.permute.xlu0 5
        %1112 = vperm.xlu0 %1111, %v712
        %v1113 = vpop.permute.xlu0 %1112
        %1116 = vset.pattern.permute.xlu0 5
        %1117 = vperm.xlu0 %1116, %v713
        %v1118 = vpop.permute.xlu0 %1117
        %1121 = vset.pattern.permute.xlu0 5
        %1122 = vperm.xlu0 %1121, %v714
        %v1123 = vpop.permute.xlu0 %1122
        %1126 = vset.pattern.permute.xlu0 5
        %1127 = vperm.xlu0 %1126, %v715
        %v1128 = vpop.permute.xlu0 %1127
        %v1130 = vmul.f32 %v1096, %v1113
        %v1131 = vmul.f32 %v1099, %v1118
        %v1132 = vmul.f32 %v1104, %v1123
        %v1133 = vmul.f32 %v1107, %v1128
        %v1134 = vadd.f32 %v1130, %v792
        %v1135 = vadd.f32 %v1131, %v793
        %v1136 = vadd.f32 %v1132, %v794
        %v1137 = vadd.f32 %v1133, %v795
        %1139 = vset.pattern.permute.xlu0 5
        %1140 = vperm.xlu0 %1139, %v720
        %v1141 = vpop.permute.xlu0 %1140
        %1144 = vset.pattern.permute.xlu0 5
        %1145 = vperm.xlu0 %1144, %v721
        %v1146 = vpop.permute.xlu0 %1145
        %1149 = vset.pattern.permute.xlu0 5
        %1150 = vperm.xlu0 %1149, %v722
        %v1151 = vpop.permute.xlu0 %1150
        %1154 = vset.pattern.permute.xlu0 5
        %1155 = vperm.xlu0 %1154, %v723
        %v1156 = vpop.permute.xlu0 %1155
        %v1158 = vmul.f32 %v1096, %v1141
        %v1159 = vmul.f32 %v1099, %v1146
        %v1160 = vmul.f32 %v1104, %v1151
        %v1161 = vmul.f32 %v1107, %v1156
        %v1162 = vadd.f32 %v1158, %v812
        %v1163 = vadd.f32 %v1159, %v813
        %v1164 = vadd.f32 %v1160, %v814
        %v1165 = vadd.f32 %v1161, %v815
        %1167 = vset.pattern.permute.xlu0 5
        %1168 = vperm.xlu0 %1167, %v728
        %v1169 = vpop.permute.xlu0 %1168
        %1172 = vset.pattern.permute.xlu0 5
        %1173 = vperm.xlu0 %1172, %v729
        %v1174 = vpop.permute.xlu0 %1173
        %1177 = vset.pattern.permute.xlu0 5
        %1178 = vperm.xlu0 %1177, %v730
        %v1179 = vpop.permute.xlu0 %1178
        %1182 = vset.pattern.permute.xlu0 5
        %1183 = vperm.xlu0 %1182, %v731
        %v1184 = vpop.permute.xlu0 %1183
        %v1186 = vmul.f32 %v1096, %v1169
        %v1187 = vmul.f32 %v1099, %v1174
        %v1188 = vmul.f32 %v1104, %v1179
        %v1189 = vmul.f32 %v1107, %v1184
        %v1190 = vadd.f32 %v1186, %v832
        %v1191 = vadd.f32 %v1187, %v833
        %v1192 = vadd.f32 %v1188, %v834
        %v1193 = vadd.f32 %v1189, %v835
        %1195 = vset.pattern.permute.xlu0 5
        %1196 = vperm.xlu0 %1195, %v736
        %v1197 = vpop.permute.xlu0 %1196
        %1200 = vset.pattern.permute.xlu0 5
        %1201 = vperm.xlu0 %1200, %v737
        %v1202 = vpop.permute.xlu0 %1201
        %1205 = vset.pattern.permute.xlu0 5
        %1206 = vperm.xlu0 %1205, %v738
        %v1207 = vpop.permute.xlu0 %1206
        %1210 = vset.pattern.permute.xlu0 5
        %1211 = vperm.xlu0 %1210, %v739
        %v1212 = vpop.permute.xlu0 %1211
        %v1214 = vmul.f32 %v1096, %v1197
        %v1215 = vmul.f32 %v1099, %v1202
        %v1216 = vmul.f32 %v1104, %v1207
        %v1217 = vmul.f32 %v1107, %v1212
        %v1218 = vadd.f32 %v1214, %v852
        %v1219 = vadd.f32 %v1215, %v853
        %v1220 = vadd.f32 %v1216, %v854
        %v1221 = vadd.f32 %v1217, %v855
        %v1222 = vld [vmem:[%s4 + $0x1] sm:$0x1]
        %s1223 = scalar_lea.vmem %s5, 4
        %v1224 = vld [vmem:[%s1223] sm:$0xf]
        %v1225 = vmul.f32 %v1134, %v1134
        %v1226 = vmul.f32 %v1135, %v1135
        %v1227 = vmul.f32 %v1136, %v1136
        %v1228 = vmul.f32 %v1137, %v1137
        %v1229 = vsel %vm561, %v1225, 0.0
        %1230 = vadd.xlane.f32.xlu0 %v1229
        %v1231 = vpop.xlane.xlu0 %1230
        %v1232 = vsel %vm561, %v1226, 0.0
        %1233 = vadd.xlane.f32.xlu0 %v1232
        %v1234 = vpop.xlane.xlu0 %1233
        %v1235 = vsel %vm561, %v1227, 0.0
        %1236 = vadd.xlane.f32.xlu0 %v1235
        %v1237 = vpop.xlane.xlu0 %1236
        %v1238 = vsel %vm561, %v1228, 0.0
        %1239 = vadd.xlane.f32.xlu0 %v1238
        %v1240 = vpop.xlane.xlu0 %1239
        %v1241 = vmul.f32 %v1231, %v574
        %v1242 = vmul.f32 %v1234, %v574
        %v1243 = vmul.f32 %v1237, %v574
        %v1244 = vmul.f32 %v1240, %v574
        %v1245 = vadd.f32 %v1241, 1.1920929e-07
        %v1246 = vadd.f32 %v1242, 1.1920929e-07
        %v1247 = vadd.f32 %v1243, 1.1920929e-07
        %v1248 = vadd.f32 %v1244, 1.1920929e-07
        %v1249 = vrsqrt.pop %v1245
        %v1250 = vrsqrt.pop %v1246
        %v1251 = vrsqrt.pop %v1247
        %v1252 = vrsqrt.pop %v1248
        %v1253 = vmul.f32 %v1134, %v1249
        %v1254 = vmul.f32 %v1135, %v1250
        %v1255 = vmul.f32 %v1136, %v1251
        %v1256 = vmul.f32 %v1137, %v1252
        %s1257 = scalar_lea.vmem %s3, 64
        %v1258 = vld [vmem:[%s1257] sm:$0xff]
        %v1259 = vld [vmem:[%s1257 + $0x8] sm:$0xff]
        %v1260 = vld [vmem:[%s1257 + $0x10] sm:$0xff]
        %v1261 = vld [vmem:[%s1257 + $0x18] sm:$0xff]
        %v1262 = vld [vmem:[%s1257 + $0x20] sm:$0xff]
        %v1263 = vld [vmem:[%s1257 + $0x28] sm:$0xff]
        %v1264 = vld [vmem:[%s1257 + $0x30] sm:$0xff]
        %v1265 = vld [vmem:[%s1257 + $0x38] sm:$0xff]
        %v1267 = vsel %vm561, %v1253, 0
        %v1270 = vsel %vm561, %v1254, 0
        %v1273 = vsel %vm561, %v1255, 0
        %v1276 = vsel %vm561, %v1256, 0
        %1278 = vmatprep.subr.mxu0 0.0
        %1279 = vmatpush1.msra.mxu0 0.0
        %1280 = vmatprep.subr.mxu0 0.0
        %1281 = vmatpush1.msra.mxu0 0.0
        %1282 = vmatprep.subr.mxu0 0.0
        %1283 = vmatpush1.msra.mxu0 0.0
        %1284 = vmatprep.subr.mxu0 0.0
        %1285 = vmatpush1.msra.mxu0 0.0
        %1286 = vmatprep.subr.mxu0 0.0
        %1287 = vmatpush1.msra.mxu0 0.0
        %1288 = vmatprep.subr.mxu0 0.0
        %1289 = vmatpush1.msra.mxu0 0.0
        %1290 = vmatprep.subr.mxu0 0.0
        %1291 = vmatpush1.msra.mxu0 0.0
        %1292 = vmatprep.subr.mxu0 0.0
        %1293 = vmatpush1.msra.mxu0 0.0
        %1294 = vmatprep.subr.mxu0 0.0
        %1295 = vmatpush1.msra.mxu0 %v1265
        %1296 = vmatprep.subr.mxu0 0.0
        %1297 = vmatpush1.msra.mxu0 %v1264
        %1298 = vmatprep.subr.mxu0 0.0
        %1299 = vmatpush1.msra.mxu0 %v1263
        %1300 = vmatprep.subr.mxu0 0.0
        %1301 = vmatpush1.msra.mxu0 %v1262
        %1302 = vmatprep.subr.mxu0 0.0
        %1303 = vmatpush1.msra.mxu0 %v1261
        %1304 = vmatprep.subr.mxu0 0.0
        %1305 = vmatpush1.msra.mxu0 %v1260
        %1306 = vmatprep.subr.mxu0 0.0
        %1307 = vmatpush1.msra.mxu0 %v1259
        %1308 = vmatprep.subr.mxu0 0.0
        %1309 = vmatpush1.msra.mxu0 %v1258
        %1310 = vmatprep.subr.mxu0 0.0
        %1311 = vmatpush2.msra.mxu0 0.0
        %1312 = vmatprep.subr.mxu0 0.0
        %1313 = vmatpush2.msra.mxu0 0.0
        %1314 = vmatprep.subr.mxu0 0.0
        %1315 = vmatpush2.msra.mxu0 0.0
        %1316 = vmatprep.subr.mxu0 0.0
        %1317 = vmatpush2.msra.mxu0 0.0
        %1318 = vmatprep.subr.mxu0 0.0
        %1319 = vmatpush2.msra.mxu0 0.0
        %1320 = vmatprep.subr.mxu0 0.0
        %1321 = vmatpush2.msra.mxu0 0.0
        %1322 = vmatprep.subr.mxu0 0.0
        %1323 = vmatpush2.msra.mxu0 0.0
        %1324 = vmatprep.subr.mxu0 0.0
        %1325 = vmatpush2.msra.mxu0 0.0
        %1326 = vmatprep.subr.mxu0 0.0
        %1327 = vmatpush2.msra.mxu0 0.0
        %1328 = vmatprep.subr.mxu0 0.0
        %1329 = vmatpush2.msra.mxu0 0.0
        %1330 = vmatprep.subr.mxu0 0.0
        %1331 = vmatpush2.msra.mxu0 0.0
        %1332 = vmatprep.subr.mxu0 0.0
        %1333 = vmatpush2.msra.mxu0 0.0
        %1334 = vmatprep.subr.mxu0 0.0
        %1335 = vmatpush2.msra.mxu0 0.0
        %1336 = vmatprep.subr.mxu0 0.0
        %1337 = vmatpush2.msra.mxu0 0.0
        %1338 = vmatprep.subr.mxu0 0.0
        %1339 = vmatpush2.msra.mxu0 0.0
        %1340 = vmatprep.subr.mxu0 0.0
        %1341 = vmatpush2.msra.mxu0 0.0
        %1342 = vmatprep.mubr.f32.mxu0 0.0
        %1343 = vmatmul.mubr.f32.gmra.mxu0 %v1267
        %v1344 = vpop.f32.mrf.mxu0
        %v1345 = vadd.f32 0.0, %v1344
        %v1346 = vpop.f32.mrf.mxu0
        %1347 = vmatprep.mubr.f32.mxu0 0.0
        %1348 = vmatmul.mubr.f32.gmra.mxu0 %v1270
        %v1349 = vpop.f32.mrf.mxu0
        %v1350 = vadd.f32 0.0, %v1349
        %v1351 = vpop.f32.mrf.mxu0
        %1352 = vmatprep.mubr.f32.mxu0 0.0
        %1353 = vmatmul.mubr.f32.gmra.mxu0 %v1273
        %v1354 = vpop.f32.mrf.mxu0
        %v1355 = vadd.f32 0.0, %v1354
        %v1356 = vpop.f32.mrf.mxu0
        %1357 = vmatprep.mubr.f32.mxu0 0.0
        %1358 = vmatmul.mubr.f32.gmra.mxu0 %v1276
        %v1359 = vpop.f32.mrf.mxu0
        %v1360 = vadd.f32 0.0, %v1359
        %v1361 = vpop.f32.mrf.mxu0
        %1362 = vdwg.mxu0
        %v1363 = vtanh.pop %v1345
        %v1364 = vtanh.pop %v1350
        %v1365 = vtanh.pop %v1355
        %v1366 = vtanh.pop %v1360
        %v1367 = vlaneseq
        %v1368 = vshrl.u32 %v1367, 7
        %v1369 = vsub.s32 0, %v1368
        %v1370 = vrot.slane %v1222, %v1369
        %v1371 = vmul.f32 %v1363, %v1370
        %v1372 = vmul.f32 %v1364, %v1370
        %v1373 = vmul.f32 %v1365, %v1370
        %v1374 = vmul.f32 %v1366, %v1370
        %v1375 = vlaneseq
        %v1376 = vshrl.u32 %v1375, 7
        %v1377 = vsub.s32 0, %v1376
        %v1378 = vrot.slane %v1224, %v1377
        %v1379 = vadd.f32 %v1371, %v1378
        %v1380 = vadd.f32 %v1372, %v1378
        %v1381 = vadd.f32 %v1373, %v1378
        %v1382 = vadd.f32 %v1374, %v1378
        %v1383 = vmul.f32 %v1162, %v1162
        %v1384 = vmul.f32 %v1163, %v1163
        %v1385 = vmul.f32 %v1164, %v1164
        %v1386 = vmul.f32 %v1165, %v1165
        %v1387 = vsel %vm561, %v1383, 0.0
        %1388 = vadd.xlane.f32.xlu0 %v1387
        %v1389 = vpop.xlane.xlu0 %1388
        %v1390 = vsel %vm561, %v1384, 0.0
        %1391 = vadd.xlane.f32.xlu0 %v1390
        %v1392 = vpop.xlane.xlu0 %1391
        %v1393 = vsel %vm561, %v1385, 0.0
        %1394 = vadd.xlane.f32.xlu0 %v1393
        %v1395 = vpop.xlane.xlu0 %1394
        %v1396 = vsel %vm561, %v1386, 0.0
        %1397 = vadd.xlane.f32.xlu0 %v1396
        %v1398 = vpop.xlane.xlu0 %1397
        %v1399 = vmul.f32 %v1389, %v574
        %v1400 = vmul.f32 %v1392, %v574
        %v1401 = vmul.f32 %v1395, %v574
        %v1402 = vmul.f32 %v1398, %v574
        %v1403 = vadd.f32 %v1399, 1.1920929e-07
        %v1404 = vadd.f32 %v1400, 1.1920929e-07
        %v1405 = vadd.f32 %v1401, 1.1920929e-07
        %v1406 = vadd.f32 %v1402, 1.1920929e-07
        %v1407 = vrsqrt.pop %v1403
        %v1408 = vrsqrt.pop %v1404
        %v1409 = vrsqrt.pop %v1405
        %v1410 = vrsqrt.pop %v1406
        %v1411 = vmul.f32 %v1162, %v1407
        %v1412 = vmul.f32 %v1163, %v1408
        %v1413 = vmul.f32 %v1164, %v1409
        %v1414 = vmul.f32 %v1165, %v1410
        %v1416 = vsel %vm561, %v1411, 0
        %v1419 = vsel %vm561, %v1412, 0
        %v1422 = vsel %vm561, %v1413, 0
        %v1425 = vsel %vm561, %v1414, 0
        %1427 = vmatprep.subr.mxu0 0.0
        %1428 = vmatpush1.msra.mxu0 0.0
        %1429 = vmatprep.subr.mxu0 0.0
        %1430 = vmatpush1.msra.mxu0 0.0
        %1431 = vmatprep.subr.mxu0 0.0
        %1432 = vmatpush1.msra.mxu0 0.0
        %1433 = vmatprep.subr.mxu0 0.0
        %1434 = vmatpush1.msra.mxu0 0.0
        %1435 = vmatprep.subr.mxu0 0.0
        %1436 = vmatpush1.msra.mxu0 0.0
        %1437 = vmatprep.subr.mxu0 0.0
        %1438 = vmatpush1.msra.mxu0 0.0
        %1439 = vmatprep.subr.mxu0 0.0
        %1440 = vmatpush1.msra.mxu0 0.0
        %1441 = vmatprep.subr.mxu0 0.0
        %1442 = vmatpush1.msra.mxu0 0.0
        %1443 = vmatprep.subr.mxu0 0.0
        %1444 = vmatpush1.msra.mxu0 %v1265
        %1445 = vmatprep.subr.mxu0 0.0
        %1446 = vmatpush1.msra.mxu0 %v1264
        %1447 = vmatprep.subr.mxu0 0.0
        %1448 = vmatpush1.msra.mxu0 %v1263
        %1449 = vmatprep.subr.mxu0 0.0
        %1450 = vmatpush1.msra.mxu0 %v1262
        %1451 = vmatprep.subr.mxu0 0.0
        %1452 = vmatpush1.msra.mxu0 %v1261
        %1453 = vmatprep.subr.mxu0 0.0
        %1454 = vmatpush1.msra.mxu0 %v1260
        %1455 = vmatprep.subr.mxu0 0.0
        %1456 = vmatpush1.msra.mxu0 %v1259
        %1457 = vmatprep.subr.mxu0 0.0
        %1458 = vmatpush1.msra.mxu0 %v1258
        %1459 = vmatprep.subr.mxu0 0.0
        %1460 = vmatpush2.msra.mxu0 0.0
        %1461 = vmatprep.subr.mxu0 0.0
        %1462 = vmatpush2.msra.mxu0 0.0
        %1463 = vmatprep.subr.mxu0 0.0
        %1464 = vmatpush2.msra.mxu0 0.0
        %1465 = vmatprep.subr.mxu0 0.0
        %1466 = vmatpush2.msra.mxu0 0.0
        %1467 = vmatprep.subr.mxu0 0.0
        %1468 = vmatpush2.msra.mxu0 0.0
        %1469 = vmatprep.subr.mxu0 0.0
        %1470 = vmatpush2.msra.mxu0 0.0
        %1471 = vmatprep.subr.mxu0 0.0
        %1472 = vmatpush2.msra.mxu0 0.0
        %1473 = vmatprep.subr.mxu0 0.0
        %1474 = vmatpush2.msra.mxu0 0.0
        %1475 = vmatprep.subr.mxu0 0.0
        %1476 = vmatpush2.msra.mxu0 0.0
        %1477 = vmatprep.subr.mxu0 0.0
        %1478 = vmatpush2.msra.mxu0 0.0
        %1479 = vmatprep.subr.mxu0 0.0
        %1480 = vmatpush2.msra.mxu0 0.0
        %1481 = vmatprep.subr.mxu0 0.0
        %1482 = vmatpush2.msra.mxu0 0.0
        %1483 = vmatprep.subr.mxu0 0.0
        %1484 = vmatpush2.msra.mxu0 0.0
        %1485 = vmatprep.subr.mxu0 0.0
        %1486 = vmatpush2.msra.mxu0 0.0
        %1487 = vmatprep.subr.mxu0 0.0
        %1488 = vmatpush2.msra.mxu0 0.0
        %1489 = vmatprep.subr.mxu0 0.0
        %1490 = vmatpush2.msra.mxu0 0.0
        %1491 = vmatprep.mubr.f32.mxu0 0.0
        %1492 = vmatmul.mubr.f32.gmra.mxu0 %v1416
        %v1493 = vpop.f32.mrf.mxu0
        %v1494 = vadd.f32 0.0, %v1493
        %v1495 = vpop.f32.mrf.mxu0
        %1496 = vmatprep.mubr.f32.mxu0 0.0
        %1497 = vmatmul.mubr.f32.gmra.mxu0 %v1419
        %v1498 = vpop.f32.mrf.mxu0
        %v1499 = vadd.f32 0.0, %v1498
        %v1500 = vpop.f32.mrf.mxu0
        %1501 = vmatprep.mubr.f32.mxu0 0.0
        %1502 = vmatmul.mubr.f32.gmra.mxu0 %v1422
        %v1503 = vpop.f32.mrf.mxu0
        %v1504 = vadd.f32 0.0, %v1503
        %v1505 = vpop.f32.mrf.mxu0
        %1506 = vmatprep.mubr.f32.mxu0 0.0
        %1507 = vmatmul.mubr.f32.gmra.mxu0 %v1425
        %v1508 = vpop.f32.mrf.mxu0
        %v1509 = vadd.f32 0.0, %v1508
        %v1510 = vpop.f32.mrf.mxu0
        %1511 = vdwg.mxu0
        %v1512 = vtanh.pop %v1494
        %v1513 = vtanh.pop %v1499
        %v1514 = vtanh.pop %v1504
        %v1515 = vtanh.pop %v1509
        %v1516 = vmul.f32 %v1512, %v1370
        %v1517 = vmul.f32 %v1513, %v1370
        %v1518 = vmul.f32 %v1514, %v1370
        %v1519 = vmul.f32 %v1515, %v1370
        %v1520 = vlaneseq
        %v1521 = vshrl.u32 %v1520, 7
        %v1522 = vsub.s32 1, %v1521
        %v1523 = vrot.slane %v1224, %v1522
        %v1524 = vadd.f32 %v1516, %v1523
        %v1525 = vadd.f32 %v1517, %v1523
        %v1526 = vadd.f32 %v1518, %v1523
        %v1527 = vadd.f32 %v1519, %v1523
        %v1528 = vmul.f32 %v1190, %v1190
        %v1529 = vmul.f32 %v1191, %v1191
        %v1530 = vmul.f32 %v1192, %v1192
        %v1531 = vmul.f32 %v1193, %v1193
        %v1532 = vsel %vm561, %v1528, 0.0
        %1533 = vadd.xlane.f32.xlu0 %v1532
        %v1534 = vpop.xlane.xlu0 %1533
        %v1535 = vsel %vm561, %v1529, 0.0
        %1536 = vadd.xlane.f32.xlu0 %v1535
        %v1537 = vpop.xlane.xlu0 %1536
        %v1538 = vsel %vm561, %v1530, 0.0
        %1539 = vadd.xlane.f32.xlu0 %v1538
        %v1540 = vpop.xlane.xlu0 %1539
        %v1541 = vsel %vm561, %v1531, 0.0
        %1542 = vadd.xlane.f32.xlu0 %v1541
        %v1543 = vpop.xlane.xlu0 %1542
        %v1544 = vmul.f32 %v1534, %v574
        %v1545 = vmul.f32 %v1537, %v574
        %v1546 = vmul.f32 %v1540, %v574
        %v1547 = vmul.f32 %v1543, %v574
        %v1548 = vadd.f32 %v1544, 1.1920929e-07
        %v1549 = vadd.f32 %v1545, 1.1920929e-07
        %v1550 = vadd.f32 %v1546, 1.1920929e-07
        %v1551 = vadd.f32 %v1547, 1.1920929e-07
        %v1552 = vrsqrt.pop %v1548
        %v1553 = vrsqrt.pop %v1549
        %v1554 = vrsqrt.pop %v1550
        %v1555 = vrsqrt.pop %v1551
        %v1556 = vmul.f32 %v1190, %v1552
        %v1557 = vmul.f32 %v1191, %v1553
        %v1558 = vmul.f32 %v1192, %v1554
        %v1559 = vmul.f32 %v1193, %v1555
        %v1561 = vsel %vm561, %v1556, 0
        %v1564 = vsel %vm561, %v1557, 0
        %v1567 = vsel %vm561, %v1558, 0
        %v1570 = vsel %vm561, %v1559, 0
        %1572 = vmatprep.subr.mxu0 0.0
        %1573 = vmatpush1.msra.mxu0 0.0
        %1574 = vmatprep.subr.mxu0 0.0
        %1575 = vmatpush1.msra.mxu0 0.0
        %1576 = vmatprep.subr.mxu0 0.0
        %1577 = vmatpush1.msra.mxu0 0.0
        %1578 = vmatprep.subr.mxu0 0.0
        %1579 = vmatpush1.msra.mxu0 0.0
        %1580 = vmatprep.subr.mxu0 0.0
        %1581 = vmatpush1.msra.mxu0 0.0
        %1582 = vmatprep.subr.mxu0 0.0
        %1583 = vmatpush1.msra.mxu0 0.0
        %1584 = vmatprep.subr.mxu0 0.0
        %1585 = vmatpush1.msra.mxu0 0.0
        %1586 = vmatprep.subr.mxu0 0.0
        %1587 = vmatpush1.msra.mxu0 0.0
        %1588 = vmatprep.subr.mxu0 0.0
        %1589 = vmatpush1.msra.mxu0 %v1265
        %1590 = vmatprep.subr.mxu0 0.0
        %1591 = vmatpush1.msra.mxu0 %v1264
        %1592 = vmatprep.subr.mxu0 0.0
        %1593 = vmatpush1.msra.mxu0 %v1263
        %1594 = vmatprep.subr.mxu0 0.0
        %1595 = vmatpush1.msra.mxu0 %v1262
        %1596 = vmatprep.subr.mxu0 0.0
        %1597 = vmatpush1.msra.mxu0 %v1261
        %1598 = vmatprep.subr.mxu0 0.0
        %1599 = vmatpush1.msra.mxu0 %v1260
        %1600 = vmatprep.subr.mxu0 0.0
        %1601 = vmatpush1.msra.mxu0 %v1259
        %1602 = vmatprep.subr.mxu0 0.0
        %1603 = vmatpush1.msra.mxu0 %v1258
        %1604 = vmatprep.subr.mxu0 0.0
        %1605 = vmatpush2.msra.mxu0 0.0
        %1606 = vmatprep.subr.mxu0 0.0
        %1607 = vmatpush2.msra.mxu0 0.0
        %1608 = vmatprep.subr.mxu0 0.0
        %1609 = vmatpush2.msra.mxu0 0.0
        %1610 = vmatprep.subr.mxu0 0.0
        %1611 = vmatpush2.msra.mxu0 0.0
        %1612 = vmatprep.subr.mxu0 0.0
        %1613 = vmatpush2.msra.mxu0 0.0
        %1614 = vmatprep.subr.mxu0 0.0
        %1615 = vmatpush2.msra.mxu0 0.0
        %1616 = vmatprep.subr.mxu0 0.0
        %1617 = vmatpush2.msra.mxu0 0.0
        %1618 = vmatprep.subr.mxu0 0.0
        %1619 = vmatpush2.msra.mxu0 0.0
        %1620 = vmatprep.subr.mxu0 0.0
        %1621 = vmatpush2.msra.mxu0 0.0
        %1622 = vmatprep.subr.mxu0 0.0
        %1623 = vmatpush2.msra.mxu0 0.0
        %1624 = vmatprep.subr.mxu0 0.0
        %1625 = vmatpush2.msra.mxu0 0.0
        %1626 = vmatprep.subr.mxu0 0.0
        %1627 = vmatpush2.msra.mxu0 0.0
        %1628 = vmatprep.subr.mxu0 0.0
        %1629 = vmatpush2.msra.mxu0 0.0
        %1630 = vmatprep.subr.mxu0 0.0
        %1631 = vmatpush2.msra.mxu0 0.0
        %1632 = vmatprep.subr.mxu0 0.0
        %1633 = vmatpush2.msra.mxu0 0.0
        %1634 = vmatprep.subr.mxu0 0.0
        %1635 = vmatpush2.msra.mxu0 0.0
        %1636 = vmatprep.mubr.f32.mxu0 0.0
        %1637 = vmatmul.mubr.f32.gmra.mxu0 %v1561
        %v1638 = vpop.f32.mrf.mxu0
        %v1639 = vadd.f32 0.0, %v1638
        %v1640 = vpop.f32.mrf.mxu0
        %1641 = vmatprep.mubr.f32.mxu0 0.0
        %1642 = vmatmul.mubr.f32.gmra.mxu0 %v1564
        %v1643 = vpop.f32.mrf.mxu0
        %v1644 = vadd.f32 0.0, %v1643
        %v1645 = vpop.f32.mrf.mxu0
        %1646 = vmatprep.mubr.f32.mxu0 0.0
        %1647 = vmatmul.mubr.f32.gmra.mxu0 %v1567
        %v1648 = vpop.f32.mrf.mxu0
        %v1649 = vadd.f32 0.0, %v1648
        %v1650 = vpop.f32.mrf.mxu0
        %1651 = vmatprep.mubr.f32.mxu0 0.0
        %1652 = vmatmul.mubr.f32.gmra.mxu0 %v1570
        %v1653 = vpop.f32.mrf.mxu0
        %v1654 = vadd.f32 0.0, %v1653
        %v1655 = vpop.f32.mrf.mxu0
        %1656 = vdwg.mxu0
        %v1657 = vtanh.pop %v1639
        %v1658 = vtanh.pop %v1644
        %v1659 = vtanh.pop %v1649
        %v1660 = vtanh.pop %v1654
        %v1661 = vmul.f32 %v1657, %v1370
        %v1662 = vmul.f32 %v1658, %v1370
        %v1663 = vmul.f32 %v1659, %v1370
        %v1664 = vmul.f32 %v1660, %v1370
        %v1665 = vlaneseq
        %v1666 = vshrl.u32 %v1665, 7
        %v1667 = vsub.s32 2, %v1666
        %v1668 = vrot.slane %v1224, %v1667
        %v1669 = vadd.f32 %v1661, %v1668
        %v1670 = vadd.f32 %v1662, %v1668
        %v1671 = vadd.f32 %v1663, %v1668
        %v1672 = vadd.f32 %v1664, %v1668
        %v1673 = vmul.f32 %v1218, %v1218
        %v1674 = vmul.f32 %v1219, %v1219
        %v1675 = vmul.f32 %v1220, %v1220
        %v1676 = vmul.f32 %v1221, %v1221
        %v1677 = vsel %vm561, %v1673, 0.0
        %1678 = vadd.xlane.f32.xlu0 %v1677
        %v1679 = vpop.xlane.xlu0 %1678
        %v1680 = vsel %vm561, %v1674, 0.0
        %1681 = vadd.xlane.f32.xlu0 %v1680
        %v1682 = vpop.xlane.xlu0 %1681
        %v1683 = vsel %vm561, %v1675, 0.0
        %1684 = vadd.xlane.f32.xlu0 %v1683
        %v1685 = vpop.xlane.xlu0 %1684
        %v1686 = vsel %vm561, %v1676, 0.0
        %1687 = vadd.xlane.f32.xlu0 %v1686
        %v1688 = vpop.xlane.xlu0 %1687
        %v1689 = vmul.f32 %v1679, %v574
        %v1690 = vmul.f32 %v1682, %v574
        %v1691 = vmul.f32 %v1685, %v574
        %v1692 = vmul.f32 %v1688, %v574
        %v1693 = vadd.f32 %v1689, 1.1920929e-07
        %v1694 = vadd.f32 %v1690, 1.1920929e-07
        %v1695 = vadd.f32 %v1691, 1.1920929e-07
        %v1696 = vadd.f32 %v1692, 1.1920929e-07
        %v1697 = vrsqrt.pop %v1693
        %v1698 = vrsqrt.pop %v1694
        %v1699 = vrsqrt.pop %v1695
        %v1700 = vrsqrt.pop %v1696
        %v1701 = vmul.f32 %v1218, %v1697
        %v1702 = vmul.f32 %v1219, %v1698
        %v1703 = vmul.f32 %v1220, %v1699
        %v1704 = vmul.f32 %v1221, %v1700
        %v1706 = vsel %vm561, %v1701, 0
        %v1709 = vsel %vm561, %v1702, 0
        %v1712 = vsel %vm561, %v1703, 0
        %v1715 = vsel %vm561, %v1704, 0
        %1717 = vmatprep.subr.mxu0 0.0
        %1718 = vmatpush1.msra.mxu0 0.0
        %1719 = vmatprep.subr.mxu0 0.0
        %1720 = vmatpush1.msra.mxu0 0.0
        %1721 = vmatprep.subr.mxu0 0.0
        %1722 = vmatpush1.msra.mxu0 0.0
        %1723 = vmatprep.subr.mxu0 0.0
        %1724 = vmatpush1.msra.mxu0 0.0
        %1725 = vmatprep.subr.mxu0 0.0
        %1726 = vmatpush1.msra.mxu0 0.0
        %1727 = vmatprep.subr.mxu0 0.0
        %1728 = vmatpush1.msra.mxu0 0.0
        %1729 = vmatprep.subr.mxu0 0.0
        %1730 = vmatpush1.msra.mxu0 0.0
        %1731 = vmatprep.subr.mxu0 0.0
        %1732 = vmatpush1.msra.mxu0 0.0
        %1733 = vmatprep.subr.mxu0 0.0
        %1734 = vmatpush1.msra.mxu0 %v1265
        %1735 = vmatprep.subr.mxu0 0.0
        %1736 = vmatpush1.msra.mxu0 %v1264
        %1737 = vmatprep.subr.mxu0 0.0
        %1738 = vmatpush1.msra.mxu0 %v1263
        %1739 = vmatprep.subr.mxu0 0.0
        %1740 = vmatpush1.msra.mxu0 %v1262
        %1741 = vmatprep.subr.mxu0 0.0
        %1742 = vmatpush1.msra.mxu0 %v1261
        %1743 = vmatprep.subr.mxu0 0.0
        %1744 = vmatpush1.msra.mxu0 %v1260
        %1745 = vmatprep.subr.mxu0 0.0
        %1746 = vmatpush1.msra.mxu0 %v1259
        %1747 = vmatprep.subr.mxu0 0.0
        %1748 = vmatpush1.msra.mxu0 %v1258
        %1749 = vmatprep.subr.mxu0 0.0
        %1750 = vmatpush2.msra.mxu0 0.0
        %1751 = vmatprep.subr.mxu0 0.0
        %1752 = vmatpush2.msra.mxu0 0.0
        %1753 = vmatprep.subr.mxu0 0.0
        %1754 = vmatpush2.msra.mxu0 0.0
        %1755 = vmatprep.subr.mxu0 0.0
        %1756 = vmatpush2.msra.mxu0 0.0
        %1757 = vmatprep.subr.mxu0 0.0
        %1758 = vmatpush2.msra.mxu0 0.0
        %1759 = vmatprep.subr.mxu0 0.0
        %1760 = vmatpush2.msra.mxu0 0.0
        %1761 = vmatprep.subr.mxu0 0.0
        %1762 = vmatpush2.msra.mxu0 0.0
        %1763 = vmatprep.subr.mxu0 0.0
        %1764 = vmatpush2.msra.mxu0 0.0
        %1765 = vmatprep.subr.mxu0 0.0
        %1766 = vmatpush2.msra.mxu0 0.0
        %1767 = vmatprep.subr.mxu0 0.0
        %1768 = vmatpush2.msra.mxu0 0.0
        %1769 = vmatprep.subr.mxu0 0.0
        %1770 = vmatpush2.msra.mxu0 0.0
        %1771 = vmatprep.subr.mxu0 0.0
        %1772 = vmatpush2.msra.mxu0 0.0
        %1773 = vmatprep.subr.mxu0 0.0
        %1774 = vmatpush2.msra.mxu0 0.0
        %1775 = vmatprep.subr.mxu0 0.0
        %1776 = vmatpush2.msra.mxu0 0.0
        %1777 = vmatprep.subr.mxu0 0.0
        %1778 = vmatpush2.msra.mxu0 0.0
        %1779 = vmatprep.subr.mxu0 0.0
        %1780 = vmatpush2.msra.mxu0 0.0
        %1781 = vmatprep.mubr.f32.mxu0 0.0
        %1782 = vmatmul.mubr.f32.gmra.mxu0 %v1706
        %v1783 = vpop.f32.mrf.mxu0
        %v1784 = vadd.f32 0.0, %v1783
        %v1785 = vpop.f32.mrf.mxu0
        %1786 = vmatprep.mubr.f32.mxu0 0.0
        %1787 = vmatmul.mubr.f32.gmra.mxu0 %v1709
        %v1788 = vpop.f32.mrf.mxu0
        %v1789 = vadd.f32 0.0, %v1788
        %v1790 = vpop.f32.mrf.mxu0
        %1791 = vmatprep.mubr.f32.mxu0 0.0
        %1792 = vmatmul.mubr.f32.gmra.mxu0 %v1712
        %v1793 = vpop.f32.mrf.mxu0
        %v1794 = vadd.f32 0.0, %v1793
        %v1795 = vpop.f32.mrf.mxu0
        %1796 = vmatprep.mubr.f32.mxu0 0.0
        %1797 = vmatmul.mubr.f32.gmra.mxu0 %v1715
        %v1798 = vpop.f32.mrf.mxu0
        %v1799 = vadd.f32 0.0, %v1798
        %v1800 = vpop.f32.mrf.mxu0
        %1801 = vdwg.mxu0
        %v1802 = vtanh.pop %v1784
        %v1803 = vtanh.pop %v1789
        %v1804 = vtanh.pop %v1794
        %v1805 = vtanh.pop %v1799
        %v1806 = vmul.f32 %v1802, %v1370
        %v1807 = vmul.f32 %v1803, %v1370
        %v1808 = vmul.f32 %v1804, %v1370
        %v1809 = vmul.f32 %v1805, %v1370
        %v1810 = vlaneseq
        %v1811 = vshrl.u32 %v1810, 7
        %v1812 = vsub.s32 3, %v1811
        %v1813 = vrot.slane %v1224, %v1812
        %v1814 = vadd.f32 %v1806, %v1813
        %v1815 = vadd.f32 %v1807, %v1813
        %v1816 = vadd.f32 %v1808, %v1813
        %v1817 = vadd.f32 %v1809, %v1813
        %1819 = vset.pattern.permute.xlu0 0
        %1820 = vperm.xlu0 %1819, %v1379
        %v1821 = vpop.permute.xlu0 %1820
        %1824 = vset.pattern.permute.xlu0 0
        %1825 = vperm.xlu0 %1824, %v1380
        %v1826 = vpop.permute.xlu0 %1825
        %1829 = vset.pattern.permute.xlu0 0
        %1830 = vperm.xlu0 %1829, %v1381
        %v1831 = vpop.permute.xlu0 %1830
        %1834 = vset.pattern.permute.xlu0 0
        %1835 = vperm.xlu0 %1834, %v1382
        %v1836 = vpop.permute.xlu0 %1835
        %v1838 = vmul.f32 %v1821, %v1134
        %v1839 = vmul.f32 %v1826, %v1135
        %v1840 = vmul.f32 %v1831, %v1136
        %v1841 = vmul.f32 %v1836, %v1137
        %1842 = vset.pattern.permute.xlu0 1
        %1843 = vperm.xlu0 %1842, %v1379
        %v1844 = vpop.permute.xlu0 %1843
        %1846 = vset.pattern.permute.xlu0 1
        %1847 = vperm.xlu0 %1846, %v1380
        %v1848 = vpop.permute.xlu0 %1847
        %1850 = vset.pattern.permute.xlu0 1
        %1851 = vperm.xlu0 %1850, %v1381
        %v1852 = vpop.permute.xlu0 %1851
        %1854 = vset.pattern.permute.xlu0 1
        %1855 = vperm.xlu0 %1854, %v1382
        %v1856 = vpop.permute.xlu0 %1855
        %v1858 = vmul.f32 %v1844, %v1134
        %v1859 = vmul.f32 %v1848, %v1135
        %v1860 = vmul.f32 %v1852, %v1136
        %v1861 = vmul.f32 %v1856, %v1137
        %1862 = vset.pattern.permute.xlu0 2
        %1863 = vperm.xlu0 %1862, %v1379
        %v1864 = vpop.permute.xlu0 %1863
        %1866 = vset.pattern.permute.xlu0 2
        %1867 = vperm.xlu0 %1866, %v1380
        %v1868 = vpop.permute.xlu0 %1867
        %1870 = vset.pattern.permute.xlu0 2
        %1871 = vperm.xlu0 %1870, %v1381
        %v1872 = vpop.permute.xlu0 %1871
        %1874 = vset.pattern.permute.xlu0 2
        %1875 = vperm.xlu0 %1874, %v1382
        %v1876 = vpop.permute.xlu0 %1875
        %v1878 = vmul.f32 %v1864, %v1134
        %v1879 = vmul.f32 %v1868, %v1135
        %v1880 = vmul.f32 %v1872, %v1136
        %v1881 = vmul.f32 %v1876, %v1137
        %1882 = vset.pattern.permute.xlu0 3
        %1883 = vperm.xlu0 %1882, %v1379
        %v1884 = vpop.permute.xlu0 %1883
        %1886 = vset.pattern.permute.xlu0 3
        %1887 = vperm.xlu0 %1886, %v1380
        %v1888 = vpop.permute.xlu0 %1887
        %1890 = vset.pattern.permute.xlu0 3
        %1891 = vperm.xlu0 %1890, %v1381
        %v1892 = vpop.permute.xlu0 %1891
        %1894 = vset.pattern.permute.xlu0 3
        %1895 = vperm.xlu0 %1894, %v1382
        %v1896 = vpop.permute.xlu0 %1895
        %v1898 = vmul.f32 %v1884, %v1134
        %v1899 = vmul.f32 %v1888, %v1135
        %v1900 = vmul.f32 %v1892, %v1136
        %v1901 = vmul.f32 %v1896, %v1137
        %1902 = vset.pattern.permute.xlu0 4
        %1903 = vperm.xlu0 %1902, %v1379
        %v1904 = vpop.permute.xlu0 %1903
        %1906 = vset.pattern.permute.xlu0 4
        %1907 = vperm.xlu0 %1906, %v1380
        %v1908 = vpop.permute.xlu0 %1907
        %1910 = vset.pattern.permute.xlu0 4
        %1911 = vperm.xlu0 %1910, %v1381
        %v1912 = vpop.permute.xlu0 %1911
        %1914 = vset.pattern.permute.xlu0 4
        %1915 = vperm.xlu0 %1914, %v1382
        %v1916 = vpop.permute.xlu0 %1915
        %v1918 = vmul.f32 %v1904, %v1134
        %v1919 = vmul.f32 %v1908, %v1135
        %v1920 = vmul.f32 %v1912, %v1136
        %v1921 = vmul.f32 %v1916, %v1137
        %1923 = vset.pattern.permute.xlu0 0
        %1924 = vperm.xlu0 %1923, %v1524
        %v1925 = vpop.permute.xlu0 %1924
        %1928 = vset.pattern.permute.xlu0 0
        %1929 = vperm.xlu0 %1928, %v1525
        %v1930 = vpop.permute.xlu0 %1929
        %1933 = vset.pattern.permute.xlu0 0
        %1934 = vperm.xlu0 %1933, %v1526
        %v1935 = vpop.permute.xlu0 %1934
        %1938 = vset.pattern.permute.xlu0 0
        %1939 = vperm.xlu0 %1938, %v1527
        %v1940 = vpop.permute.xlu0 %1939
        %v1942 = vmul.f32 %v1925, %v1162
        %v1943 = vmul.f32 %v1930, %v1163
        %v1944 = vmul.f32 %v1935, %v1164
        %v1945 = vmul.f32 %v1940, %v1165
        %v1946 = vadd.f32 %v1838, %v1942
        %v1947 = vadd.f32 %v1839, %v1943
        %v1948 = vadd.f32 %v1840, %v1944
        %v1949 = vadd.f32 %v1841, %v1945
        %1950 = vset.pattern.permute.xlu0 1
        %1951 = vperm.xlu0 %1950, %v1524
        %v1952 = vpop.permute.xlu0 %1951
        %1954 = vset.pattern.permute.xlu0 1
        %1955 = vperm.xlu0 %1954, %v1525
        %v1956 = vpop.permute.xlu0 %1955
        %1958 = vset.pattern.permute.xlu0 1
        %1959 = vperm.xlu0 %1958, %v1526
        %v1960 = vpop.permute.xlu0 %1959
        %1962 = vset.pattern.permute.xlu0 1
        %1963 = vperm.xlu0 %1962, %v1527
        %v1964 = vpop.permute.xlu0 %1963
        %v1966 = vmul.f32 %v1952, %v1162
        %v1967 = vmul.f32 %v1956, %v1163
        %v1968 = vmul.f32 %v1960, %v1164
        %v1969 = vmul.f32 %v1964, %v1165
        %v1970 = vadd.f32 %v1858, %v1966
        %v1971 = vadd.f32 %v1859, %v1967
        %v1972 = vadd.f32 %v1860, %v1968
        %v1973 = vadd.f32 %v1861, %v1969
        %1974 = vset.pattern.permute.xlu0 2
        %1975 = vperm.xlu0 %1974, %v1524
        %v1976 = vpop.permute.xlu0 %1975
        %1978 = vset.pattern.permute.xlu0 2
        %1979 = vperm.xlu0 %1978, %v1525
        %v1980 = vpop.permute.xlu0 %1979
        %1982 = vset.pattern.permute.xlu0 2
        %1983 = vperm.xlu0 %1982, %v1526
        %v1984 = vpop.permute.xlu0 %1983
        %1986 = vset.pattern.permute.xlu0 2
        %1987 = vperm.xlu0 %1986, %v1527
        %v1988 = vpop.permute.xlu0 %1987
        %v1990 = vmul.f32 %v1976, %v1162
        %v1991 = vmul.f32 %v1980, %v1163
        %v1992 = vmul.f32 %v1984, %v1164
        %v1993 = vmul.f32 %v1988, %v1165
        %v1994 = vadd.f32 %v1878, %v1990
        %v1995 = vadd.f32 %v1879, %v1991
        %v1996 = vadd.f32 %v1880, %v1992
        %v1997 = vadd.f32 %v1881, %v1993
        %1998 = vset.pattern.permute.xlu0 3
        %1999 = vperm.xlu0 %1998, %v1524
        %v2000 = vpop.permute.xlu0 %1999
        %2002 = vset.pattern.permute.xlu0 3
        %2003 = vperm.xlu0 %2002, %v1525
        %v2004 = vpop.permute.xlu0 %2003
        %2006 = vset.pattern.permute.xlu0 3
        %2007 = vperm.xlu0 %2006, %v1526
        %v2008 = vpop.permute.xlu0 %2007
        %2010 = vset.pattern.permute.xlu0 3
        %2011 = vperm.xlu0 %2010, %v1527
        %v2012 = vpop.permute.xlu0 %2011
        %v2014 = vmul.f32 %v2000, %v1162
        %v2015 = vmul.f32 %v2004, %v1163
        %v2016 = vmul.f32 %v2008, %v1164
        %v2017 = vmul.f32 %v2012, %v1165
        %v2018 = vadd.f32 %v1898, %v2014
        %v2019 = vadd.f32 %v1899, %v2015
        %v2020 = vadd.f32 %v1900, %v2016
        %v2021 = vadd.f32 %v1901, %v2017
        %2022 = vset.pattern.permute.xlu0 4
        %2023 = vperm.xlu0 %2022, %v1524
        %v2024 = vpop.permute.xlu0 %2023
        %2026 = vset.pattern.permute.xlu0 4
        %2027 = vperm.xlu0 %2026, %v1525
        %v2028 = vpop.permute.xlu0 %2027
        %2030 = vset.pattern.permute.xlu0 4
        %2031 = vperm.xlu0 %2030, %v1526
        %v2032 = vpop.permute.xlu0 %2031
        %2034 = vset.pattern.permute.xlu0 4
        %2035 = vperm.xlu0 %2034, %v1527
        %v2036 = vpop.permute.xlu0 %2035
        %v2038 = vmul.f32 %v2024, %v1162
        %v2039 = vmul.f32 %v2028, %v1163
        %v2040 = vmul.f32 %v2032, %v1164
        %v2041 = vmul.f32 %v2036, %v1165
        %v2042 = vadd.f32 %v1918, %v2038
        %v2043 = vadd.f32 %v1919, %v2039
        %v2044 = vadd.f32 %v1920, %v2040
        %v2045 = vadd.f32 %v1921, %v2041
        %2047 = vset.pattern.permute.xlu0 0
        %2048 = vperm.xlu0 %2047, %v1669
        %v2049 = vpop.permute.xlu0 %2048
        %2052 = vset.pattern.permute.xlu0 0
        %2053 = vperm.xlu0 %2052, %v1670
        %v2054 = vpop.permute.xlu0 %2053
        %2057 = vset.pattern.permute.xlu0 0
        %2058 = vperm.xlu0 %2057, %v1671
        %v2059 = vpop.permute.xlu0 %2058
        %2062 = vset.pattern.permute.xlu0 0
        %2063 = vperm.xlu0 %2062, %v1672
        %v2064 = vpop.permute.xlu0 %2063
        %v2066 = vmul.f32 %v2049, %v1190
        %v2067 = vmul.f32 %v2054, %v1191
        %v2068 = vmul.f32 %v2059, %v1192
        %v2069 = vmul.f32 %v2064, %v1193
        %v2070 = vadd.f32 %v1946, %v2066
        %v2071 = vadd.f32 %v1947, %v2067
        %v2072 = vadd.f32 %v1948, %v2068
        %v2073 = vadd.f32 %v1949, %v2069
        %2074 = vset.pattern.permute.xlu0 1
        %2075 = vperm.xlu0 %2074, %v1669
        %v2076 = vpop.permute.xlu0 %2075
        %2078 = vset.pattern.permute.xlu0 1
        %2079 = vperm.xlu0 %2078, %v1670
        %v2080 = vpop.permute.xlu0 %2079
        %2082 = vset.pattern.permute.xlu0 1
        %2083 = vperm.xlu0 %2082, %v1671
        %v2084 = vpop.permute.xlu0 %2083
        %2086 = vset.pattern.permute.xlu0 1
        %2087 = vperm.xlu0 %2086, %v1672
        %v2088 = vpop.permute.xlu0 %2087
        %v2090 = vmul.f32 %v2076, %v1190
        %v2091 = vmul.f32 %v2080, %v1191
        %v2092 = vmul.f32 %v2084, %v1192
        %v2093 = vmul.f32 %v2088, %v1193
        %v2094 = vadd.f32 %v1970, %v2090
        %v2095 = vadd.f32 %v1971, %v2091
        %v2096 = vadd.f32 %v1972, %v2092
        %v2097 = vadd.f32 %v1973, %v2093
        %2098 = vset.pattern.permute.xlu0 2
        %2099 = vperm.xlu0 %2098, %v1669
        %v2100 = vpop.permute.xlu0 %2099
        %2102 = vset.pattern.permute.xlu0 2
        %2103 = vperm.xlu0 %2102, %v1670
        %v2104 = vpop.permute.xlu0 %2103
        %2106 = vset.pattern.permute.xlu0 2
        %2107 = vperm.xlu0 %2106, %v1671
        %v2108 = vpop.permute.xlu0 %2107
        %2110 = vset.pattern.permute.xlu0 2
        %2111 = vperm.xlu0 %2110, %v1672
        %v2112 = vpop.permute.xlu0 %2111
        %v2114 = vmul.f32 %v2100, %v1190
        %v2115 = vmul.f32 %v2104, %v1191
        %v2116 = vmul.f32 %v2108, %v1192
        %v2117 = vmul.f32 %v2112, %v1193
        %v2118 = vadd.f32 %v1994, %v2114
        %v2119 = vadd.f32 %v1995, %v2115
        %v2120 = vadd.f32 %v1996, %v2116
        %v2121 = vadd.f32 %v1997, %v2117
        %2122 = vset.pattern.permute.xlu0 3
        %2123 = vperm.xlu0 %2122, %v1669
        %v2124 = vpop.permute.xlu0 %2123
        %2126 = vset.pattern.permute.xlu0 3
        %2127 = vperm.xlu0 %2126, %v1670
        %v2128 = vpop.permute.xlu0 %2127
        %2130 = vset.pattern.permute.xlu0 3
        %2131 = vperm.xlu0 %2130, %v1671
        %v2132 = vpop.permute.xlu0 %2131
        %2134 = vset.pattern.permute.xlu0 3
        %2135 = vperm.xlu0 %2134, %v1672
        %v2136 = vpop.permute.xlu0 %2135
        %v2138 = vmul.f32 %v2124, %v1190
        %v2139 = vmul.f32 %v2128, %v1191
        %v2140 = vmul.f32 %v2132, %v1192
        %v2141 = vmul.f32 %v2136, %v1193
        %v2142 = vadd.f32 %v2018, %v2138
        %v2143 = vadd.f32 %v2019, %v2139
        %v2144 = vadd.f32 %v2020, %v2140
        %v2145 = vadd.f32 %v2021, %v2141
        %2146 = vset.pattern.permute.xlu0 4
        %2147 = vperm.xlu0 %2146, %v1669
        %v2148 = vpop.permute.xlu0 %2147
        %2150 = vset.pattern.permute.xlu0 4
        %2151 = vperm.xlu0 %2150, %v1670
        %v2152 = vpop.permute.xlu0 %2151
        %2154 = vset.pattern.permute.xlu0 4
        %2155 = vperm.xlu0 %2154, %v1671
        %v2156 = vpop.permute.xlu0 %2155
        %2158 = vset.pattern.permute.xlu0 4
        %2159 = vperm.xlu0 %2158, %v1672
        %v2160 = vpop.permute.xlu0 %2159
        %v2162 = vmul.f32 %v2148, %v1190
        %v2163 = vmul.f32 %v2152, %v1191
        %v2164 = vmul.f32 %v2156, %v1192
        %v2165 = vmul.f32 %v2160, %v1193
        %v2166 = vadd.f32 %v2042, %v2162
        %v2167 = vadd.f32 %v2043, %v2163
        %v2168 = vadd.f32 %v2044, %v2164
        %v2169 = vadd.f32 %v2045, %v2165
        %2171 = vset.pattern.permute.xlu0 0
        %2172 = vperm.xlu0 %2171, %v1814
        %v2173 = vpop.permute.xlu0 %2172
        %2176 = vset.pattern.permute.xlu0 0
        %2177 = vperm.xlu0 %2176, %v1815
        %v2178 = vpop.permute.xlu0 %2177
        %2181 = vset.pattern.permute.xlu0 0
        %2182 = vperm.xlu0 %2181, %v1816
        %v2183 = vpop.permute.xlu0 %2182
        %2186 = vset.pattern.permute.xlu0 0
        %2187 = vperm.xlu0 %2186, %v1817
        %v2188 = vpop.permute.xlu0 %2187
        %v2190 = vmul.f32 %v2173, %v1218
        %v2191 = vmul.f32 %v2178, %v1219
        %v2192 = vmul.f32 %v2183, %v1220
        %v2193 = vmul.f32 %v2188, %v1221
        %v2194 = vadd.f32 %v2070, %v2190
        %v2195 = vadd.f32 %v2071, %v2191
        %v2196 = vadd.f32 %v2072, %v2192
        %v2197 = vadd.f32 %v2073, %v2193
        %2198 = vset.pattern.permute.xlu0 1
        %2199 = vperm.xlu0 %2198, %v1814
        %v2200 = vpop.permute.xlu0 %2199
        %2202 = vset.pattern.permute.xlu0 1
        %2203 = vperm.xlu0 %2202, %v1815
        %v2204 = vpop.permute.xlu0 %2203
        %2206 = vset.pattern.permute.xlu0 1
        %2207 = vperm.xlu0 %2206, %v1816
        %v2208 = vpop.permute.xlu0 %2207
        %2210 = vset.pattern.permute.xlu0 1
        %2211 = vperm.xlu0 %2210, %v1817
        %v2212 = vpop.permute.xlu0 %2211
        %v2214 = vmul.f32 %v2200, %v1218
        %v2215 = vmul.f32 %v2204, %v1219
        %v2216 = vmul.f32 %v2208, %v1220
        %v2217 = vmul.f32 %v2212, %v1221
        %v2218 = vadd.f32 %v2094, %v2214
        %v2219 = vadd.f32 %v2095, %v2215
        %v2220 = vadd.f32 %v2096, %v2216
        %v2221 = vadd.f32 %v2097, %v2217
        %2222 = vset.pattern.permute.xlu0 2
        %2223 = vperm.xlu0 %2222, %v1814
        %v2224 = vpop.permute.xlu0 %2223
        %2226 = vset.pattern.permute.xlu0 2
        %2227 = vperm.xlu0 %2226, %v1815
        %v2228 = vpop.permute.xlu0 %2227
        %2230 = vset.pattern.permute.xlu0 2
        %2231 = vperm.xlu0 %2230, %v1816
        %v2232 = vpop.permute.xlu0 %2231
        %2234 = vset.pattern.permute.xlu0 2
        %2235 = vperm.xlu0 %2234, %v1817
        %v2236 = vpop.permute.xlu0 %2235
        %v2238 = vmul.f32 %v2224, %v1218
        %v2239 = vmul.f32 %v2228, %v1219
        %v2240 = vmul.f32 %v2232, %v1220
        %v2241 = vmul.f32 %v2236, %v1221
        %v2242 = vadd.f32 %v2118, %v2238
        %v2243 = vadd.f32 %v2119, %v2239
        %v2244 = vadd.f32 %v2120, %v2240
        %v2245 = vadd.f32 %v2121, %v2241
        %2246 = vset.pattern.permute.xlu0 3
        %2247 = vperm.xlu0 %2246, %v1814
        %v2248 = vpop.permute.xlu0 %2247
        %2250 = vset.pattern.permute.xlu0 3
        %2251 = vperm.xlu0 %2250, %v1815
        %v2252 = vpop.permute.xlu0 %2251
        %2254 = vset.pattern.permute.xlu0 3
        %2255 = vperm.xlu0 %2254, %v1816
        %v2256 = vpop.permute.xlu0 %2255
        %2258 = vset.pattern.permute.xlu0 3
        %2259 = vperm.xlu0 %2258, %v1817
        %v2260 = vpop.permute.xlu0 %2259
        %v2262 = vmul.f32 %v2248, %v1218
        %v2263 = vmul.f32 %v2252, %v1219
        %v2264 = vmul.f32 %v2256, %v1220
        %v2265 = vmul.f32 %v2260, %v1221
        %v2266 = vadd.f32 %v2142, %v2262
        %v2267 = vadd.f32 %v2143, %v2263
        %v2268 = vadd.f32 %v2144, %v2264
        %v2269 = vadd.f32 %v2145, %v2265
        %2270 = vset.pattern.permute.xlu0 4
        %2271 = vperm.xlu0 %2270, %v1814
        %v2272 = vpop.permute.xlu0 %2271
        %2274 = vset.pattern.permute.xlu0 4
        %2275 = vperm.xlu0 %2274, %v1815
        %v2276 = vpop.permute.xlu0 %2275
        %2278 = vset.pattern.permute.xlu0 4
        %2279 = vperm.xlu0 %2278, %v1816
        %v2280 = vpop.permute.xlu0 %2279
        %2282 = vset.pattern.permute.xlu0 4
        %2283 = vperm.xlu0 %2282, %v1817
        %v2284 = vpop.permute.xlu0 %2283
        %v2286 = vmul.f32 %v2272, %v1218
        %v2287 = vmul.f32 %v2276, %v1219
        %v2288 = vmul.f32 %v2280, %v1220
        %v2289 = vmul.f32 %v2284, %v1221
        %v2290 = vadd.f32 %v2166, %v2286
        %v2291 = vadd.f32 %v2167, %v2287
        %v2292 = vadd.f32 %v2168, %v2288
        %v2293 = vadd.f32 %v2169, %v2289
        %v2294 = vmul.f32 %v2194, %v2194
        %v2295 = vmul.f32 %v2195, %v2195
        %v2296 = vmul.f32 %v2196, %v2196
        %v2297 = vmul.f32 %v2197, %v2197
        %v2298 = vsel %vm561, %v2294, 0.0
        %2299 = vadd.xlane.f32.xlu0 %v2298
        %v2300 = vpop.xlane.xlu0 %2299
        %v2301 = vsel %vm561, %v2295, 0.0
        %2302 = vadd.xlane.f32.xlu0 %v2301
        %v2303 = vpop.xlane.xlu0 %2302
        %v2304 = vsel %vm561, %v2296, 0.0
        %2305 = vadd.xlane.f32.xlu0 %v2304
        %v2306 = vpop.xlane.xlu0 %2305
        %v2307 = vsel %vm561, %v2297, 0.0
        %2308 = vadd.xlane.f32.xlu0 %v2307
        %v2309 = vpop.xlane.xlu0 %2308
        %v2310 = vmul.f32 %v2300, %v574
        %v2311 = vmul.f32 %v2303, %v574
        %v2312 = vmul.f32 %v2306, %v574
        %v2313 = vmul.f32 %v2309, %v574
        %v2314 = vadd.f32 %v2310, 1.1920929e-07
        %v2315 = vadd.f32 %v2311, 1.1920929e-07
        %v2316 = vadd.f32 %v2312, 1.1920929e-07
        %v2317 = vadd.f32 %v2313, 1.1920929e-07
        %v2318 = vrsqrt.pop %v2314
        %v2319 = vrsqrt.pop %v2315
        %v2320 = vrsqrt.pop %v2316
        %v2321 = vrsqrt.pop %v2317
        %v2322 = vmul.f32 %v2194, %v2318
        %v2323 = vmul.f32 %v2195, %v2319
        %v2324 = vmul.f32 %v2196, %v2320
        %v2325 = vmul.f32 %v2197, %v2321
        %v2326 = vpack.c.bf16 %v2323, %v2322
        %v2327 = vpack.c.bf16 %v2325, %v2324
        %s2328 = scalar_lea.vmem %s6, 32
        %v2329 = vld [vmem:[%s2328] sm:$0xf]
        %v2330 = vld [vmem:[%s2328 + $0x4] sm:$0xf]
        %v2331 = vld [vmem:[%s2328 + $0x8] sm:$0xf]
        %v2332 = vld [vmem:[%s2328 + $0xc] sm:$0xf]
        %v2333 = vld [vmem:[%s2328 + $0x10] sm:$0xf]
        %v2334 = vld [vmem:[%s2328 + $0x14] sm:$0xf]
        %v2335 = vld [vmem:[%s2328 + $0x18] sm:$0xf]
        %v2336 = vld [vmem:[%s2328 + $0x1c] sm:$0xf]
        %v2337 = vld [vmem:[%s7 + $0x1] sm:$0x1]
        %v2338 = vlaneseq
        %v2339 = vshrl.u32 %v2338, 7
        %v2340 = vsub.s32 0, %v2339
        %v2341 = vrot.slane %v2337, %v2340
        %v2350 = vunpack.c.l.b16 %v2329
        %v2351 = vunpack.c.l.b16 %v2330
        %v2352 = vunpack.c.l.b16 %v2331
        %v2353 = vunpack.c.l.b16 %v2332
        %v2354 = vunpack.c.l.b16 %v2333
        %v2355 = vunpack.c.l.b16 %v2334
        %v2356 = vunpack.c.l.b16 %v2335
        %v2357 = vunpack.c.l.b16 %v2336
        %v2358 = vpack.c.b16 %v2351, %v2350
        %v2359 = vpack.c.b16 %v2353, %v2352
        %v2360 = vpack.c.b16 %v2355, %v2354
        %v2361 = vpack.c.b16 %v2357, %v2356
        %v2367 = vsel %vm561, %v2326, 0
        %v2370 = vsel %vm561, %v2327, 0
        %2372 = vmatprep.subr.bf16.mxu0 0
        %2373 = vmatpush1.bf16.msra.mxu0 0
        %2374 = vmatprep.subr.bf16.mxu0 0
        %2375 = vmatpush1.bf16.msra.mxu0 0
        %2376 = vmatprep.subr.bf16.mxu0 0
        %2377 = vmatpush1.bf16.msra.mxu0 0
        %2378 = vmatprep.subr.bf16.mxu0 0
        %2379 = vmatpush1.bf16.msra.mxu0 0
        %2380 = vmatprep.subr.bf16.mxu0 0
        %2381 = vmatpush1.bf16.msra.mxu0 %v2361
        %2382 = vmatprep.subr.bf16.mxu0 0
        %2383 = vmatpush1.bf16.msra.mxu0 %v2360
        %2384 = vmatprep.subr.bf16.mxu0 0
        %2385 = vmatpush1.bf16.msra.mxu0 %v2359
        %2386 = vmatprep.subr.bf16.mxu0 0
        %2387 = vmatpush1.bf16.msra.mxu0 %v2358
        %2388 = vmatprep.subr.bf16.mxu0 0
        %2389 = vmatpush2.bf16.msra.mxu0 0
        %2390 = vmatprep.subr.bf16.mxu0 0
        %2391 = vmatpush2.bf16.msra.mxu0 0
        %2392 = vmatprep.subr.bf16.mxu0 0
        %2393 = vmatpush2.bf16.msra.mxu0 0
        %2394 = vmatprep.subr.bf16.mxu0 0
        %2395 = vmatpush2.bf16.msra.mxu0 0
        %2396 = vmatprep.subr.bf16.mxu0 0
        %2397 = vmatpush2.bf16.msra.mxu0 0
        %2398 = vmatprep.subr.bf16.mxu0 0
        %2399 = vmatpush2.bf16.msra.mxu0 0
        %2400 = vmatprep.subr.bf16.mxu0 0
        %2401 = vmatpush2.bf16.msra.mxu0 0
        %2402 = vmatprep.subr.bf16.mxu0 0
        %2403 = vmatpush2.bf16.msra.mxu0 0
        %2404 = vmatprep.mubr.bf16.mxu0 0
        %2405 = vmatmul.mubr.bf16.gmra.mxu0 %v2367
        %v2406 = vpop.f32.mrf.mxu0
        %v2407 = vadd.f32 %v2341, %v2406
        %v2408 = vpop.f32.mrf.mxu0
        %v2409 = vpop.f32.mrf.mxu0
        %v2410 = vadd.f32 %v2341, %v2409
        %v2411 = vpop.f32.mrf.mxu0
        %2412 = vmatprep.mubr.bf16.mxu0 0
        %2413 = vmatmul.mubr.bf16.gmra.mxu0 %v2370
        %v2414 = vpop.f32.mrf.mxu0
        %v2415 = vadd.f32 %v2341, %v2414
        %v2416 = vpop.f32.mrf.mxu0
        %v2417 = vpop.f32.mrf.mxu0
        %v2418 = vadd.f32 %v2341, %v2417
        %v2419 = vpop.f32.mrf.mxu0
        %2420 = vdwg.mxu0
        %v2421 = vmax.f32 %v2407, 0.0
        %v2422 = vmax.f32 %v2410, 0.0
        %v2423 = vmax.f32 %v2415, 0.0
        %v2424 = vmax.f32 %v2418, 0.0
        %v2425 = vmul.f32 %v2421, %v2421
        %v2426 = vmul.f32 %v2422, %v2422
        %v2427 = vmul.f32 %v2423, %v2423
        %v2428 = vmul.f32 %v2424, %v2424
        %v2429 = vpack.c.bf16 %v2426, %v2425
        %v2430 = vpack.c.bf16 %v2428, %v2427
        %s2431 = scalar_lea.vmem %s8, 64
        %v2432 = vld [vmem:[%s2431] sm:$0xf]
        %v2433 = vld [vmem:[%s2431 + $0x4] sm:$0xf]
        %v2434 = vld [vmem:[%s2431 + $0x8] sm:$0xf]
        %v2435 = vld [vmem:[%s2431 + $0xc] sm:$0xf]
        %v2436 = vld [vmem:[%s2431 + $0x10] sm:$0xf]
        %v2437 = vld [vmem:[%s2431 + $0x14] sm:$0xf]
        %v2438 = vld [vmem:[%s2431 + $0x18] sm:$0xf]
        %v2439 = vld [vmem:[%s2431 + $0x1c] sm:$0xf]
        %v2440 = vld [vmem:[%s2431 + $0x20] sm:$0xf]
        %v2441 = vld [vmem:[%s2431 + $0x24] sm:$0xf]
        %v2442 = vld [vmem:[%s2431 + $0x28] sm:$0xf]
        %v2443 = vld [vmem:[%s2431 + $0x2c] sm:$0xf]
        %v2444 = vld [vmem:[%s2431 + $0x30] sm:$0xf]
        %v2445 = vld [vmem:[%s2431 + $0x34] sm:$0xf]
        %v2446 = vld [vmem:[%s2431 + $0x38] sm:$0xf]
        %v2447 = vld [vmem:[%s2431 + $0x3c] sm:$0xf]
        %v2448 = vld [vmem:[%s9 + $0x1] sm:$0x1]
        %v2449 = vlaneseq
        %v2450 = vshrl.u32 %v2449, 7
        %v2451 = vsub.s32 0, %v2450
        %v2452 = vrot.slane %v2448, %v2451
        %v2469 = vunpack.c.l.b16 %v2432
        %v2470 = vunpack.c.l.b16 %v2433
        %v2471 = vunpack.c.l.b16 %v2434
        %v2472 = vunpack.c.l.b16 %v2435
        %v2473 = vunpack.c.l.b16 %v2436
        %v2474 = vunpack.c.l.b16 %v2437
        %v2475 = vunpack.c.l.b16 %v2438
        %v2476 = vunpack.c.l.b16 %v2439
        %v2477 = vunpack.c.l.b16 %v2440
        %v2478 = vunpack.c.l.b16 %v2441
        %v2479 = vunpack.c.l.b16 %v2442
        %v2480 = vunpack.c.l.b16 %v2443
        %v2481 = vunpack.c.l.b16 %v2444
        %v2482 = vunpack.c.l.b16 %v2445
        %v2483 = vunpack.c.l.b16 %v2446
        %v2484 = vunpack.c.l.b16 %v2447
        %v2485 = vpack.c.b16 %v2470, %v2469
        %v2486 = vpack.c.b16 %v2472, %v2471
        %v2487 = vpack.c.b16 %v2474, %v2473
        %v2488 = vpack.c.b16 %v2476, %v2475
        %v2489 = vpack.c.b16 %v2478, %v2477
        %v2490 = vpack.c.b16 %v2480, %v2479
        %v2491 = vpack.c.b16 %v2482, %v2481
        %v2492 = vpack.c.b16 %v2484, %v2483
        %2501 = vmatprep.subr.bf16.mxu0 0
        %2502 = vmatpush1.bf16.msra.mxu0 %v2492
        %2503 = vmatprep.subr.bf16.mxu0 0
        %2504 = vmatpush1.bf16.msra.mxu0 %v2491
        %2505 = vmatprep.subr.bf16.mxu0 0
        %2506 = vmatpush1.bf16.msra.mxu0 %v2490
        %2507 = vmatprep.subr.bf16.mxu0 0
        %2508 = vmatpush1.bf16.msra.mxu0 %v2489
        %2509 = vmatprep.subr.bf16.mxu0 0
        %2510 = vmatpush1.bf16.msra.mxu0 %v2488
        %2511 = vmatprep.subr.bf16.mxu0 0
        %2512 = vmatpush1.bf16.msra.mxu0 %v2487
        %2513 = vmatprep.subr.bf16.mxu0 0
        %2514 = vmatpush1.bf16.msra.mxu0 %v2486
        %2515 = vmatprep.subr.bf16.mxu0 0
        %2516 = vmatpush1.bf16.msra.mxu0 %v2485
        %2517 = vmatprep.subr.bf16.mxu0 0
        %2518 = vmatpush2.bf16.msra.mxu0 0
        %2519 = vmatprep.subr.bf16.mxu0 0
        %2520 = vmatpush2.bf16.msra.mxu0 0
        %2521 = vmatprep.subr.bf16.mxu0 0
        %2522 = vmatpush2.bf16.msra.mxu0 0
        %2523 = vmatprep.subr.bf16.mxu0 0
        %2524 = vmatpush2.bf16.msra.mxu0 0
        %2525 = vmatprep.subr.bf16.mxu0 0
        %2526 = vmatpush2.bf16.msra.mxu0 0
        %2527 = vmatprep.subr.bf16.mxu0 0
        %2528 = vmatpush2.bf16.msra.mxu0 0
        %2529 = vmatprep.subr.bf16.mxu0 0
        %2530 = vmatpush2.bf16.msra.mxu0 0
        %2531 = vmatprep.subr.bf16.mxu0 0
        %2532 = vmatpush2.bf16.msra.mxu0 0
        %2533 = vmatprep.mubr.bf16.mxu0 0
        %2534 = vmatmul.mubr.bf16.gmra.mxu0 %v2429
        %v2535 = vpop.f32.mrf.mxu0
        %v2536 = vadd.f32 %v2452, %v2535
        %v2537 = vpop.f32.mrf.mxu0
        %v2538 = vpop.f32.mrf.mxu0
        %v2539 = vadd.f32 %v2452, %v2538
        %v2540 = vpop.f32.mrf.mxu0
        %2541 = vmatprep.mubr.bf16.mxu0 0
        %2542 = vmatmul.mubr.bf16.gmra.mxu0 %v2430
        %v2543 = vpop.f32.mrf.mxu0
        %v2544 = vadd.f32 %v2452, %v2543
        %v2545 = vpop.f32.mrf.mxu0
        %v2546 = vpop.f32.mrf.mxu0
        %v2547 = vadd.f32 %v2452, %v2546
        %v2548 = vpop.f32.mrf.mxu0
        %2549 = vdwg.mxu0
        %2550 = vset.pattern.permute.xlu0 5
        %2551 = vperm.xlu0 %2550, %v1379
        %v2552 = vpop.permute.xlu0 %2551
        %2554 = vset.pattern.permute.xlu0 5
        %2555 = vperm.xlu0 %2554, %v1380
        %v2556 = vpop.permute.xlu0 %2555
        %2558 = vset.pattern.permute.xlu0 5
        %2559 = vperm.xlu0 %2558, %v1381
        %v2560 = vpop.permute.xlu0 %2559
        %2562 = vset.pattern.permute.xlu0 5
        %2563 = vperm.xlu0 %2562, %v1382
        %v2564 = vpop.permute.xlu0 %2563
        %v2566 = vmul.f32 %v2536, %v2552
        %v2567 = vmul.f32 %v2539, %v2556
        %v2568 = vmul.f32 %v2544, %v2560
        %v2569 = vmul.f32 %v2547, %v2564
        %v2570 = vadd.f32 %v2566, %v2218
        %v2571 = vadd.f32 %v2567, %v2219
        %v2572 = vadd.f32 %v2568, %v2220
        %v2573 = vadd.f32 %v2569, %v2221
        %2574 = vset.pattern.permute.xlu0 5
        %2575 = vperm.xlu0 %2574, %v1524
        %v2576 = vpop.permute.xlu0 %2575
        %2578 = vset.pattern.permute.xlu0 5
        %2579 = vperm.xlu0 %2578, %v1525
        %v2580 = vpop.permute.xlu0 %2579
        %2582 = vset.pattern.permute.xlu0 5
        %2583 = vperm.xlu0 %2582, %v1526
        %v2584 = vpop.permute.xlu0 %2583
        %2586 = vset.pattern.permute.xlu0 5
        %2587 = vperm.xlu0 %2586, %v1527
        %v2588 = vpop.permute.xlu0 %2587
        %v2590 = vmul.f32 %v2536, %v2576
        %v2591 = vmul.f32 %v2539, %v2580
        %v2592 = vmul.f32 %v2544, %v2584
        %v2593 = vmul.f32 %v2547, %v2588
        %v2594 = vadd.f32 %v2590, %v2242
        %v2595 = vadd.f32 %v2591, %v2243
        %v2596 = vadd.f32 %v2592, %v2244
        %v2597 = vadd.f32 %v2593, %v2245
        %2598 = vset.pattern.permute.xlu0 5
        %2599 = vperm.xlu0 %2598, %v1669
        %v2600 = vpop.permute.xlu0 %2599
        %2602 = vset.pattern.permute.xlu0 5
        %2603 = vperm.xlu0 %2602, %v1670
        %v2604 = vpop.permute.xlu0 %2603
        %2606 = vset.pattern.permute.xlu0 5
        %2607 = vperm.xlu0 %2606, %v1671
        %v2608 = vpop.permute.xlu0 %2607
        %2610 = vset.pattern.permute.xlu0 5
        %2611 = vperm.xlu0 %2610, %v1672
        %v2612 = vpop.permute.xlu0 %2611
        %v2614 = vmul.f32 %v2536, %v2600
        %v2615 = vmul.f32 %v2539, %v2604
        %v2616 = vmul.f32 %v2544, %v2608
        %v2617 = vmul.f32 %v2547, %v2612
        %v2618 = vadd.f32 %v2614, %v2266
        %v2619 = vadd.f32 %v2615, %v2267
        %v2620 = vadd.f32 %v2616, %v2268
        %v2621 = vadd.f32 %v2617, %v2269
        %2622 = vset.pattern.permute.xlu0 5
        %2623 = vperm.xlu0 %2622, %v1814
        %v2624 = vpop.permute.xlu0 %2623
        %2626 = vset.pattern.permute.xlu0 5
        %2627 = vperm.xlu0 %2626, %v1815
        %v2628 = vpop.permute.xlu0 %2627
        %2630 = vset.pattern.permute.xlu0 5
        %2631 = vperm.xlu0 %2630, %v1816
        %v2632 = vpop.permute.xlu0 %2631
        %2634 = vset.pattern.permute.xlu0 5
        %2635 = vperm.xlu0 %2634, %v1817
        %v2636 = vpop.permute.xlu0 %2635
        %v2638 = vmul.f32 %v2536, %v2624
        %v2639 = vmul.f32 %v2539, %v2628
        %v2640 = vmul.f32 %v2544, %v2632
        %v2641 = vmul.f32 %v2547, %v2636
        %v2642 = vadd.f32 %v2638, %v2290
        %v2643 = vadd.f32 %v2639, %v2291
        %v2644 = vadd.f32 %v2640, %v2292
        %v2645 = vadd.f32 %v2641, %v2293
        %v2646 = vadd.f32 %v2570, %v2594
        %v2647 = vadd.f32 %v2571, %v2595
        %v2648 = vadd.f32 %v2572, %v2596
        %v2649 = vadd.f32 %v2573, %v2597
        %v2650 = vadd.f32 %v2646, %v2618
        %v2651 = vadd.f32 %v2647, %v2619
        %v2652 = vadd.f32 %v2648, %v2620
        %v2653 = vadd.f32 %v2649, %v2621
        %v2654 = vadd.f32 %v2650, %v2642
        %v2655 = vadd.f32 %v2651, %v2643
        %v2656 = vadd.f32 %v2652, %v2644
        %v2657 = vadd.f32 %v2653, %v2645
        %v2658 = vmul.f32 %v2654, %v2654
        %v2659 = vmul.f32 %v2655, %v2655
        %v2660 = vmul.f32 %v2656, %v2656
        %v2661 = vmul.f32 %v2657, %v2657
        %v2662 = vsel %vm561, %v2658, 0.0
        %2663 = vadd.xlane.f32.xlu0 %v2662
        %v2664 = vpop.xlane.xlu0 %2663
        %v2665 = vsel %vm561, %v2659, 0.0
        %2666 = vadd.xlane.f32.xlu0 %v2665
        %v2667 = vpop.xlane.xlu0 %2666
        %v2668 = vsel %vm561, %v2660, 0.0
        %2669 = vadd.xlane.f32.xlu0 %v2668
        %v2670 = vpop.xlane.xlu0 %2669
        %v2671 = vsel %vm561, %v2661, 0.0
        %2672 = vadd.xlane.f32.xlu0 %v2671
        %v2673 = vpop.xlane.xlu0 %2672
        %v2674 = vmul.f32 %v2664, %v574
        %v2675 = vmul.f32 %v2667, %v574
        %v2676 = vmul.f32 %v2670, %v574
        %v2677 = vmul.f32 %v2673, %v574
        %v2678 = vadd.f32 %v2674, 1.1920929e-07
        %v2679 = vadd.f32 %v2675, 1.1920929e-07
        %v2680 = vadd.f32 %v2676, 1.1920929e-07
        %v2681 = vadd.f32 %v2677, 1.1920929e-07
        %v2682 = vrsqrt.pop %v2678
        %v2683 = vrsqrt.pop %v2679
        %v2684 = vrsqrt.pop %v2680
        %v2685 = vrsqrt.pop %v2681
        %v2686 = vmul.f32 %v2654, %v2682
        %v2687 = vmul.f32 %v2655, %v2683
        %v2688 = vmul.f32 %v2656, %v2684
        %v2689 = vmul.f32 %v2657, %v2685
        %v2690 = vpack.c.bf16 %v2687, %v2686
        %v2691 = vpack.c.bf16 %v2689, %v2688
        %v2692 = vld [vmem:[%s10] sm:$0xf]
        %v2693 = vld [vmem:[%s10 + $0x4] sm:$0xf]
        %v2694 = vld [vmem:[%s10 + $0x8] sm:$0xf]
        %v2695 = vld [vmem:[%s10 + $0xc] sm:$0xf]
        %v2696 = vld [vmem:[%s10 + $0x10] sm:$0xf]
        %v2697 = vld [vmem:[%s10 + $0x14] sm:$0xf]
        %v2698 = vld [vmem:[%s10 + $0x18] sm:$0xf]
        %v2699 = vld [vmem:[%s10 + $0x1c] sm:$0xf]
        %v2700 = vld [vmem:[%s11] sm:$0x1]
        %v2702 = vlaneseq
        %v2703 = vshrl.u32 %v2702, 7
        %v2704 = vsub.s32 0, %v2703
        %v2705 = vrot.slane %v2700, %v2704
        %v2715 = vunpack.c.l.b16 %v2692
        %v2716 = vunpack.c.l.b16 %v2693
        %v2717 = vunpack.c.l.b16 %v2694
        %v2718 = vunpack.c.l.b16 %v2695
        %v2719 = vunpack.c.l.b16 %v2696
        %v2720 = vunpack.c.l.b16 %v2697
        %v2721 = vunpack.c.l.b16 %v2698
        %v2722 = vunpack.c.l.b16 %v2699
        %v2723 = vpack.c.b16 %v2716, %v2715
        %v2724 = vpack.c.b16 %v2718, %v2717
        %v2725 = vpack.c.b16 %v2720, %v2719
        %v2726 = vpack.c.b16 %v2722, %v2721
        %v2732 = vsel %vm561, %v2690, 0
        %v2735 = vsel %vm561, %v2691, 0
        %2737 = vmatprep.subr.bf16.mxu0 0
        %2738 = vmatpush1.bf16.msra.mxu0 0
        %2739 = vmatprep.subr.bf16.mxu0 0
        %2740 = vmatpush1.bf16.msra.mxu0 0
        %2741 = vmatprep.subr.bf16.mxu0 0
        %2742 = vmatpush1.bf16.msra.mxu0 0
        %2743 = vmatprep.subr.bf16.mxu0 0
        %2744 = vmatpush1.bf16.msra.mxu0 0
        %2745 = vmatprep.subr.bf16.mxu0 0
        %2746 = vmatpush1.bf16.msra.mxu0 %v2726
        %2747 = vmatprep.subr.bf16.mxu0 0
        %2748 = vmatpush1.bf16.msra.mxu0 %v2725
        %2749 = vmatprep.subr.bf16.mxu0 0
        %2750 = vmatpush1.bf16.msra.mxu0 %v2724
        %2751 = vmatprep.subr.bf16.mxu0 0
        %2752 = vmatpush1.bf16.msra.mxu0 %v2723
        %2753 = vmatprep.subr.bf16.mxu0 0
        %2754 = vmatpush2.bf16.msra.mxu0 0
        %2755 = vmatprep.subr.bf16.mxu0 0
        %2756 = vmatpush2.bf16.msra.mxu0 0
        %2757 = vmatprep.subr.bf16.mxu0 0
        %2758 = vmatpush2.bf16.msra.mxu0 0
        %2759 = vmatprep.subr.bf16.mxu0 0
        %2760 = vmatpush2.bf16.msra.mxu0 0
        %2761 = vmatprep.subr.bf16.mxu0 0
        %2762 = vmatpush2.bf16.msra.mxu0 0
        %2763 = vmatprep.subr.bf16.mxu0 0
        %2764 = vmatpush2.bf16.msra.mxu0 0
        %2765 = vmatprep.subr.bf16.mxu0 0
        %2766 = vmatpush2.bf16.msra.mxu0 0
        %2767 = vmatprep.subr.bf16.mxu0 0
        %2768 = vmatpush2.bf16.msra.mxu0 0
        %2769 = vmatprep.mubr.bf16.mxu0 0
        %2770 = vmatmul.mubr.bf16.gmra.mxu0 %v2732
        %v2771 = vpop.f32.mrf.mxu0
        %v2772 = vadd.f32 %v2705, %v2771
        %v2773 = vpop.f32.mrf.mxu0
        %v2774 = vpop.f32.mrf.mxu0
        %v2775 = vadd.f32 %v2705, %v2774
        %v2776 = vpop.f32.mrf.mxu0
        %2777 = vmatprep.mubr.bf16.mxu0 0
        %2778 = vmatmul.mubr.bf16.gmra.mxu0 %v2735
        %v2779 = vpop.f32.mrf.mxu0
        %v2780 = vadd.f32 %v2705, %v2779
        %v2781 = vpop.f32.mrf.mxu0
        %v2782 = vpop.f32.mrf.mxu0
        %v2783 = vadd.f32 %v2705, %v2782
        %v2784 = vpop.f32.mrf.mxu0
        %2785 = vdwg.mxu0
        %v2786 = vmax.f32 %v2772, 0.0
        %v2787 = vmax.f32 %v2775, 0.0
        %v2788 = vmax.f32 %v2780, 0.0
        %v2789 = vmax.f32 %v2783, 0.0
        %v2790 = vmul.f32 %v2786, %v2786
        %v2791 = vmul.f32 %v2787, %v2787
        %v2792 = vmul.f32 %v2788, %v2788
        %v2793 = vmul.f32 %v2789, %v2789
        %v2794 = vpack.c.bf16 %v2791, %v2790
        %v2795 = vpack.c.bf16 %v2793, %v2792
        %v2796 = vld [vmem:[%s12] sm:$0xf]
        %v2797 = vld [vmem:[%s12 + $0x4] sm:$0xf]
        %v2798 = vld [vmem:[%s12 + $0x8] sm:$0xf]
        %v2799 = vld [vmem:[%s12 + $0xc] sm:$0xf]
        %v2800 = vld [vmem:[%s12 + $0x10] sm:$0xf]
        %v2801 = vld [vmem:[%s12 + $0x14] sm:$0xf]
        %v2802 = vld [vmem:[%s12 + $0x18] sm:$0xf]
        %v2803 = vld [vmem:[%s12 + $0x1c] sm:$0xf]
        %v2804 = vld [vmem:[%s13] sm:$0x1]
        %v2806 = vlaneseq
        %v2807 = vshrl.u32 %v2806, 7
        %v2808 = vsub.s32 0, %v2807
        %v2809 = vrot.slane %v2804, %v2808
        %v2819 = vunpack.c.l.b16 %v2796
        %v2820 = vunpack.c.l.b16 %v2797
        %v2821 = vunpack.c.l.b16 %v2798
        %v2822 = vunpack.c.l.b16 %v2799
        %v2823 = vunpack.c.l.b16 %v2800
        %v2824 = vunpack.c.l.b16 %v2801
        %v2825 = vunpack.c.l.b16 %v2802
        %v2826 = vunpack.c.l.b16 %v2803
        %v2827 = vpack.c.b16 %v2820, %v2819
        %v2828 = vpack.c.b16 %v2822, %v2821
        %v2829 = vpack.c.b16 %v2824, %v2823
        %v2830 = vpack.c.b16 %v2826, %v2825
        %v2836 = vsel %vm561, %v2794, 0
        %v2839 = vsel %vm561, %v2795, 0
        %2841 = vmatprep.subr.bf16.mxu0 0
        %2842 = vmatpush1.bf16.msra.mxu0 0
        %2843 = vmatprep.subr.bf16.mxu0 0
        %2844 = vmatpush1.bf16.msra.mxu0 0
        %2845 = vmatprep.subr.bf16.mxu0 0
        %2846 = vmatpush1.bf16.msra.mxu0 0
        %2847 = vmatprep.subr.bf16.mxu0 0
        %2848 = vmatpush1.bf16.msra.mxu0 0
        %2849 = vmatprep.subr.bf16.mxu0 0
        %2850 = vmatpush1.bf16.msra.mxu0 %v2830
        %2851 = vmatprep.subr.bf16.mxu0 0
        %2852 = vmatpush1.bf16.msra.mxu0 %v2829
        %2853 = vmatprep.subr.bf16.mxu0 0
        %2854 = vmatpush1.bf16.msra.mxu0 %v2828
        %2855 = vmatprep.subr.bf16.mxu0 0
        %2856 = vmatpush1.bf16.msra.mxu0 %v2827
        %2857 = vmatprep.subr.bf16.mxu0 0
        %2858 = vmatpush2.bf16.msra.mxu0 0
        %2859 = vmatprep.subr.bf16.mxu0 0
        %2860 = vmatpush2.bf16.msra.mxu0 0
        %2861 = vmatprep.subr.bf16.mxu0 0
        %2862 = vmatpush2.bf16.msra.mxu0 0
        %2863 = vmatprep.subr.bf16.mxu0 0
        %2864 = vmatpush2.bf16.msra.mxu0 0
        %2865 = vmatprep.subr.bf16.mxu0 0
        %2866 = vmatpush2.bf16.msra.mxu0 0
        %2867 = vmatprep.subr.bf16.mxu0 0
        %2868 = vmatpush2.bf16.msra.mxu0 0
        %2869 = vmatprep.subr.bf16.mxu0 0
        %2870 = vmatpush2.bf16.msra.mxu0 0
        %2871 = vmatprep.subr.bf16.mxu0 0
        %2872 = vmatpush2.bf16.msra.mxu0 0
        %2873 = vmatprep.mubr.bf16.mxu0 0
        %2874 = vmatmul.mubr.bf16.gmra.mxu0 %v2836
        %v2875 = vpop.f32.mrf.mxu0
        %v2876 = vadd.f32 %v2809, %v2875
        %v2877 = vpop.f32.mrf.mxu0
        %v2878 = vpop.f32.mrf.mxu0
        %v2879 = vadd.f32 %v2809, %v2878
        %v2880 = vpop.f32.mrf.mxu0
        %2881 = vmatprep.mubr.bf16.mxu0 0
        %2882 = vmatmul.mubr.bf16.gmra.mxu0 %v2839
        %v2883 = vpop.f32.mrf.mxu0
        %v2884 = vadd.f32 %v2809, %v2883
        %v2885 = vpop.f32.mrf.mxu0
        %v2886 = vpop.f32.mrf.mxu0
        %v2887 = vadd.f32 %v2809, %v2886
        %v2888 = vpop.f32.mrf.mxu0
        %2889 = vdwg.mxu0
        %v2890 = vlaneseq
        %v2891 = vand.u32 %v2890, 127
        %vm2892 = vcmp.lt.s32.totalorder %v2891, 8
        %v2893 = vsel %vm2892, %v2876, -inf
        %v2894 = vsel %vm2892, %v2879, -inf
        %v2895 = vsel %vm2892, %v2884, -inf
        %v2896 = vsel %vm2892, %v2887, -inf
        %2897 = vmax.xlane.f32.xlu0 %v2893
        %v2898 = vpop.xlane.xlu0 %2897
        %2899 = vmax.xlane.f32.xlu0 %v2894
        %v2900 = vpop.xlane.xlu0 %2899
        %2901 = vmax.xlane.f32.xlu0 %v2895
        %v2902 = vpop.xlane.xlu0 %2901
        %2903 = vmax.xlane.f32.xlu0 %v2896
        %v2904 = vpop.xlane.xlu0 %2903
        %v2905 = vsub.f32 %v2893, %v2898
        %v2906 = vsub.f32 %v2894, %v2900
        %v2907 = vsub.f32 %v2895, %v2902
        %v2908 = vsub.f32 %v2896, %v2904
        %v2909 = vmul.f32 %v2905, 1.442695
        %v2910 = vpow.pop %v2909
        %v2911 = vmul.f32 %v2906, 1.442695
        %v2912 = vpow.pop %v2911
        %v2913 = vmul.f32 %v2907, 1.442695
        %v2914 = vpow.pop %v2913
        %v2915 = vmul.f32 %v2908, 1.442695
        %v2916 = vpow.pop %v2915
        %2917 = vadd.xlane.f32.xlu0 %v2910
        %v2918 = vpop.xlane.xlu0 %2917
        %2919 = vadd.xlane.f32.xlu0 %v2912
        %v2920 = vpop.xlane.xlu0 %2919
        %2921 = vadd.xlane.f32.xlu0 %v2914
        %v2922 = vpop.xlane.xlu0 %2921
        %2923 = vadd.xlane.f32.xlu0 %v2916
        %v2924 = vpop.xlane.xlu0 %2923
        %v2925 = vrcp.pop %v2918
        %v2926 = vrcp.pop %v2920
        %v2927 = vrcp.pop %v2922
        %v2928 = vrcp.pop %v2924
        %v2929 = vmul.f32 %v2910, %v2925
        %v2930 = vmul.f32 %v2912, %v2926
        %v2931 = vmul.f32 %v2914, %v2927
        %v2932 = vmul.f32 %v2916, %v2928
        %vm2933 = vcmp.eq.s32.totalorder %v2891, 8
        %v2934 = vsel %vm2933, %v2876, 0.0
        %v2935 = vsel %vm2933, %v2879, 0.0
        %v2936 = vsel %vm2933, %v2884, 0.0
        %v2937 = vsel %vm2933, %v2887, 0.0
        %v2938 = vsel %vm2892, %v2929, %v2934
        %v2939 = vsel %vm2892, %v2930, %v2935
        %v2940 = vsel %vm2892, %v2931, %v2936
        %v2941 = vsel %vm2892, %v2932, %v2937
        %2942 = vst [vmem:[%s461] sm:$0xff] %v2938
        %2943 = vst [vmem:[%s461 + $0x8] sm:$0xff] %v2939
        %2944 = vst [vmem:[%s461 + $0x10] sm:$0xff] %v2940
        %2945 = vst [vmem:[%s461 + $0x18] sm:$0xff] %v2941
        %s2946 = sand.u32 %s335, 1
        %s2947 = scalar_lea.sflag [#allocation3], %s2946
        %s2948 = sand.u32 %s335, 1
        %s2949 = smul.addr %s2948, 32
        %s2950 = scalar_lea.vmem [#allocation2], %s2949
        // Predicated region
        $region77: #{tpu_custom_call.1} parent=75 // pred_check
          %p2951 = pneg %p345
        $region78: #{tpu_custom_call.1} parent=75 // pred_check_branch
          %2953 = sbr.rel (%p2951) target = $region80
        $region79: #{tpu_custom_call.1} parent=75 // pred_region
          %s2954 = smul.u32 4, %s28
          %s2956 = ssub.s32 512, 512
          %2957 = vsyncadd %s2947, %s2956
          %s2958 = smul.addr %s2954, 128
          %s2959 = scalar_lea.hbm %s14, %s2958
          %s2960 = sshll.u32 %s2950, 4
          %s2961 = int_to_ptr.vmem [resolvable:$true] %s2960
          %2966 = dma.vmem_to_hbm [thread:$0]  %s2961, 512, %s2959, %s2947, 128, 128, 8
        $region80: #{tpu_custom_call.1} parent=75 // pred_fallthru
          _
      $region76: #{tpu_custom_call.1} parent=5 // pred_fallthru
        _
      %p2967 = scmp.le.s32.totalorder 2, %s23
      // Predicated region
      $region81: #{tpu_custom_call.1} parent=5 // pred_check
        %p2968 = pneg %p2967
      $region82: #{tpu_custom_call.1} parent=5 // pred_check_branch
        %2970 = sbr.rel (%p2968) target = $region84
      $region83: #{tpu_custom_call.1} parent=5 // pred_region
        %s2971 = ssub.s32 %s23, 2
        // Predicated region
        $region85: #{tpu_custom_call.1} parent=83 // pred_check
          %p2972 = pneg %p351
        $region86: #{tpu_custom_call.1} parent=83 // pred_check_branch
          %2974 = sbr.rel (%p2972) target = $region88
        $region87: #{tpu_custom_call.1} parent=83 // pred_region
          %s2975 = sand.u32 %s336, 1
          %s2976 = scalar_lea.sflag [#allocation3], %s2975
          %s2977 = sand.u32 %s336, 1
          %s2978 = smul.addr %s2977, 32
          %s2979 = scalar_lea.vmem [#allocation2], %s2978
          %2980 = dma.done %s2976, 512
        $region88: #{tpu_custom_call.1} parent=83 // pred_fallthru
          _
      $region84: #{tpu_custom_call.1} parent=5 // pred_fallthru
        _
    $region6: #{tpu_custom_call.1} parent=1 // loop_footer
      %s27 = sadd.s32 1, %s23
    $region7: #{tpu_custom_call.1} parent=1 // loop_footer_branch
      %22 = sbr.rel target = $region3
    $region8: #{tpu_custom_call.1} parent=1 // loop_exit
      _
    %2981 = vsyncpa [#allocation3], 1
    %s2982 = scalar_lea.sflag [#allocation3], 1
    %2983 = vsyncpa %s2982, 1

</llo_original>
